<compile_context>
chip_gen: v5e
topology: v5e:2x2
jax: 0.10.0
libtpu: 0.0.40
codegen_flags: <defaults>
</compile_context>

<pallas_src>
import functools
import math

import jax
import jax.numpy as jnp
from jax.experimental import pallas as pl
from jax.experimental.pallas import tpu as pltpu

# Make the pure-JAX reference use full-f32 matmuls so the comparison is apples-to-apples
# with the kernel's preferred_element_type=f32 MXU matmuls.
jax.config.update("jax_default_matmul_precision", "highest")


def _layernorm(x, g, b, eps=1e-5):
    mu = jnp.mean(x, axis=-1, keepdims=True)
    var = jnp.mean((x - mu) ** 2, axis=-1, keepdims=True)
    return (x - mu) * jax.lax.rsqrt(var + eps) * g + b


# ---------------------------------------------------------------------------
# Fused kernel: L encoder layers + classifier on a single (S, D) activation slab.
# ---------------------------------------------------------------------------
def fused_forward_kernel(x_ref, wattn_ref, w1_ref, w2_ref, bias_ref, o_ref, *,
                         nlayers, nhead):
    S = x_ref.shape[0]
    D = x_ref.shape[2]
    FF = w1_ref.shape[2]
    hd = D // nhead

    # Only transformed[:, -1, :] feeds the classifier and the encoder is batch-
    # independent -> compute the stack for the last batch slice only (in-kernel pick).
    x = x_ref[:, x_ref.shape[1] - 1, :]                                   # (S, D)

    for l in range(nlayers):                       # static unroll, L is small
        # lane-dense weight slab per layer: [ Wqkv_t (D,3D) | Wo_t (D,D) | pad ]
        wqkv = wattn_ref[l, :, :3 * D]                                    # (D, 3D)
        wo = wattn_ref[l, :, 3 * D:4 * D]                                 # (D, D)
        bqkv = bias_ref[l, 0:1, :3 * D]                                   # (1, 3D)
        bo = bias_ref[l, 1:2, :D]
        bf1 = bias_ref[l, 2:3, :FF]
        bf2 = bias_ref[l, 3:4, :D]
        g1 = bias_ref[l, 4:5, :D]
        b1 = bias_ref[l, 5:6, :D]
        g2 = bias_ref[l, 6:7, :D]
        b2 = bias_ref[l, 7:8, :D]

        # Fused QKV projection: one (S,D)@(D,3D) MXU pass.  1/sqrt(head_dim) is
        # already folded into the Q columns / Q bias at prep time.
        qkv = jnp.dot(x, wqkv, preferred_element_type=jnp.float32) + bqkv  # (S, 3D)

        # Per-head attention on small 2-D tiles; exact softmax division.
        heads = []
        for h in range(nhead):
            q_h = qkv[:, h * hd:(h + 1) * hd]                             # (S, hd)
            k_h = qkv[:, D + h * hd:D + (h + 1) * hd]                     # (S, hd)
            v_h = qkv[:, 2 * D + h * hd:2 * D + (h + 1) * hd]             # (S, hd)
            # q @ k^T expressed via dimension_numbers (no explicit transpose op).
            sc = jax.lax.dot_general(q_h, k_h, (((1,), (1,)), ((), ())),
                                     preferred_element_type=jnp.float32)  # (S, S)
            sc = sc - jnp.max(sc, axis=-1, keepdims=True)
            pr = jnp.exp(sc)
            pr = pr / jnp.sum(pr, axis=-1, keepdims=True)                 # exact
            heads.append(jnp.dot(pr, v_h, preferred_element_type=jnp.float32))
        ctx = jnp.concatenate(heads, axis=-1)                             # (S, D)

        # Out-projection collapsed into one (S,D)@(D,D) matmul over concatenated heads.
        attn = jnp.dot(ctx, wo, preferred_element_type=jnp.float32) + bo

        # dropout = identity (eval); post-norm residuals.
        x1 = _layernorm(x + attn, g1, b1)
        h1 = jnp.maximum(
            jnp.dot(x1, w1_ref[l], preferred_element_type=jnp.float32) + bf1, 0.0)
        ff = jnp.dot(h1, w2_ref[l], preferred_element_type=jnp.float32) + bf2
        x = _layernorm(x1 + ff, g2, b2)

    # Classifier head: lane-dense (weights/bias zero-padded to LANES columns) so the
    # final store is a full-lane unmasked vst.
    wc = wattn_ref[nlayers]                                               # (D, LANES)
    bc = bias_ref[nlayers, 0:1, :]                                        # (1, LANES)
    o_ref[...] = jnp.dot(x, wc, preferred_element_type=jnp.float32) + bc


# ---------------------------------------------------------------------------
# One-time parameter prep: PyTorch-layout params -> a few lane-dense kernel slabs.
# ---------------------------------------------------------------------------
def prepare_kernel_params(params):
    layers = params["layers"]
    H = params["nhead"]
    L = len(layers)
    D = layers[0]["wqkv"].shape[1]
    FF = layers[0]["w1"].shape[0]
    C = params["wc"].shape[0]
    hd = D // H
    scale = 1.0 / math.sqrt(hd)

    LANES = max(4 * D, 128)            # 128 for D=32: exactly [Wqkv | Wo] per layer
    assert 3 * D <= LANES and C <= LANES and FF <= LANES and D <= LANES

    # fold attention scale into the Q third of the packed in_proj
    scale_vec = jnp.concatenate(
        [jnp.full((D,), scale, jnp.float32), jnp.ones((2 * D,), jnp.float32)])

    w_attn, w_ffn1, w_ffn2, biases = [], [], [], []
    for p in layers:
        wqkv_t = p["wqkv"].T * scale_vec[None, :]             # (D, 3D)
        bqkv = p["bqkv"] * scale_vec                          # (3D,)
        wa = jnp.zeros((D, LANES), jnp.float32)
        wa = wa.at[:, :3 * D].set(wqkv_t)
        wa = wa.at[:, 3 * D:4 * D].set(p["wo"].T)             # (D, D)
        w_attn.append(wa)
        w_ffn1.append(p["w1"].T)                              # (D, FF)
        w_ffn2.append(p["w2"].T)                              # (FF, D)

        b = jnp.zeros((8, LANES), jnp.float32)                # one sublane row / bias
        b = b.at[0, :3 * D].set(bqkv)
        b = b.at[1, :D].set(p["bo"])
        b = b.at[2, :FF].set(p["bf1"])
        b = b.at[3, :D].set(p["bf2"])
        b = b.at[4, :D].set(p["g1"])
        b = b.at[5, :D].set(p["b1"])
        b = b.at[6, :D].set(p["g2"])
        b = b.at[7, :D].set(p["b2"])
        biases.append(b)

    # classifier packed as an extra "layer" row of the same slabs (zero-padded lanes)
    w_attn.append(jnp.zeros((D, LANES), jnp.float32).at[:, :C].set(params["wc"].T))
    biases.append(jnp.zeros((8, LANES), jnp.float32).at[0, :C].set(params["bc"]))

    return dict(
        w_attn=jnp.stack(w_attn),       # (L+1, D, LANES)   attn weights + classifier
        w_ffn1=jnp.stack(w_ffn1),       # (L,   D, FF)
        w_ffn2=jnp.stack(w_ffn2),       # (L,   FF, D)
        biases=jnp.stack(biases),       # (L+1, 8, LANES)   biases + LN params + bc
        nhead=H, nlayers=L, num_classes=C)


# ---------------------------------------------------------------------------
# Full model forward (mirrors VideoTransformerModel.forward)
# ---------------------------------------------------------------------------
def video_transformer_forward(x_sbd, kparams):
    S, B, D = x_sbd.shape
    L = kparams["nlayers"]
    LANES = kparams["w_attn"].shape[-1]
    kernel = functools.partial(fused_forward_kernel,
                               nlayers=L, nhead=kparams["nhead"])
    out = pl.pallas_call(
        kernel,
        grid=(1,),
        in_specs=[
            pl.BlockSpec((S, B, D), lambda i: (0, 0, 0)),
            pl.BlockSpec(kparams["w_attn"].shape, lambda i: (0, 0, 0)),
            pl.BlockSpec(kparams["w_ffn1"].shape, lambda i: (0, 0, 0)),
            pl.BlockSpec(kparams["w_ffn2"].shape, lambda i: (0, 0, 0)),
            pl.BlockSpec(kparams["biases"].shape, lambda i: (0, 0, 0)),
        ],
        out_specs=pl.BlockSpec((S, LANES), lambda i: (0, 0)),
        out_shape=jax.ShapeDtypeStruct((S, LANES), jnp.float32),
        compiler_params=pltpu.CompilerParams(dimension_semantics=("arbitrary",)),
    )(x_sbd, kparams["w_attn"], kparams["w_ffn1"], kparams["w_ffn2"],
      kparams["biases"])
    return out[:, :kparams["num_classes"]]


# ---------------------------------------------------------------------------
# Pure-JAX reference (full-batch path, PyTorch-layout weights) for validation.
# ---------------------------------------------------------------------------
def reference_forward(x_sbd, params):
    x = jnp.transpose(x_sbd, (1, 0, 2))              # (B, S, D)
    H = params["nhead"]
    for p in params["layers"]:
        B, S, D = x.shape
        hd = D // H
        qkv = x @ p["wqkv"].T + p["bqkv"]
        q, k, v = qkv[..., :D], qkv[..., D:2 * D], qkv[..., 2 * D:]
        qh = q.reshape(B, S, H, hd)
        kh = k.reshape(B, S, H, hd)
        vh = v.reshape(B, S, H, hd)
        sc = jnp.einsum("bshd,bthd->bhst", qh, kh) / math.sqrt(hd)
        pw = jax.nn.softmax(sc, axis=-1)
        attn = jnp.einsum("bhst,bthd->bshd", pw, vh).reshape(B, S, D)
        attn = attn @ p["wo"].T + p["bo"]
        x = _layernorm(x + attn, p["g1"], p["b1"])
        h = jax.nn.relu(x @ p["w1"].T + p["bf1"])
        ff = h @ p["w2"].T + p["bf2"]
        x = _layernorm(x + ff, p["g2"], p["b2"])
    transformed = jnp.transpose(x, (1, 0, 2))        # (S, B, D)
    return transformed[:, -1, :] @ params["wc"].T + params["bc"]


# ---------------------------------------------------------------------------
# Deterministic parameter init (PyTorch layout, small scale)
# ---------------------------------------------------------------------------
def init_params(key, D, H, FF, L, C=5):
    layers = []
    for l in range(L):
        ks = jax.random.split(jax.random.fold_in(key, l), 8)
        layers.append(dict(
            wqkv=jax.random.normal(ks[0], (3 * D, D), jnp.float32) * 0.05,
            bqkv=jax.random.normal(ks[1], (3 * D,), jnp.float32) * 0.02,
            wo=jax.random.normal(ks[2], (D, D), jnp.float32) * 0.05,
            bo=jax.random.normal(ks[3], (D,), jnp.float32) * 0.02,
            g1=jnp.ones((D,), jnp.float32), b1=jnp.zeros((D,), jnp.float32),
            w1=jax.random.normal(ks[4], (FF, D), jnp.float32) * 0.05,
            bf1=jax.random.normal(ks[5], (FF,), jnp.float32) * 0.02,
            w2=jax.random.normal(ks[6], (D, FF), jnp.float32) * 0.05,
            bf2=jax.random.normal(ks[7], (D,), jnp.float32) * 0.02,
            g2=jnp.ones((D,), jnp.float32), b2=jnp.zeros((D,), jnp.float32),
        ))
    ck = jax.random.fold_in(key, 1000)
    wc = jax.random.normal(ck, (C, D), jnp.float32) * 0.05
    bc = jnp.zeros((C,), jnp.float32)
    return dict(layers=layers, nhead=H, wc=wc, bc=bc)


if __name__ == "__main__":
    # Small shapes consistent with the module: d_model=32, nhead=4, ff=64, 2 layers,
    # seq=8, batch=2.  x uses the PyTorch (seq, batch, d_model) layout.
    # TODO(synk): training-mode dropout (nn.Dropout with RNG) is not implemented;
    # inference semantics (identity) are used.
    S, B, D, H, FF, L = 8, 2, 32, 4, 64, 2
    key = jax.random.PRNGKey(0)
    kx, kp = jax.random.split(key)
    x = jax.random.normal(kx, (S, B, D), jnp.float32)
    params = init_params(kp, D, H, FF, L)
    kparams = prepare_kernel_params(params)          # one-time weight repack

    out = video_transformer_forward(x, kparams)
    out = jax.block_until_ready(out)

    ref = reference_forward(x, params)
    assert out.shape == (S, 5), out.shape
    assert jnp.allclose(out, ref, rtol=2e-3, atol=2e-3), (
        float(jnp.max(jnp.abs(out - ref))))

    print("KERNEL_OK")
</pallas_src>

<mosaic_0001>
module attributes {stable_mosaic.version = 11 : i64} {
  func.func @fused_forward_kernel(%arg0: i32, %arg1: memref<8x2x32xf32, #tpu.memory_space<vmem>>, %arg2: memref<3x32x128xf32, #tpu.memory_space<vmem>>, %arg3: memref<2x32x64xf32, #tpu.memory_space<vmem>>, %arg4: memref<2x64x32xf32, #tpu.memory_space<vmem>>, %arg5: memref<3x8x128xf32, #tpu.memory_space<vmem>>, %arg6: memref<8x128xf32, #tpu.memory_space<vmem>>) attributes {dimension_semantics = [#tpu.dimension_semantics<arbitrary>], iteration_bounds = array<i64: 1>, scalar_prefetch = 0 : i64, scratch_operands = 0 : i64, tpu.core_type = #tpu.core_type<tc>, window_params = [{pipeline_mode = #tpu.pipeline_mode<synchronous>, transform_indices = @transform_0, window_bounds = array<i64: 8, 2, 32>}, {pipeline_mode = #tpu.pipeline_mode<synchronous>, transform_indices = @transform_1, window_bounds = array<i64: 3, 32, 128>}, {pipeline_mode = #tpu.pipeline_mode<synchronous>, transform_indices = @transform_2, window_bounds = array<i64: 2, 32, 64>}, {pipeline_mode = #tpu.pipeline_mode<synchronous>, transform_indices = @transform_3, window_bounds = array<i64: 2, 64, 32>}, {pipeline_mode = #tpu.pipeline_mode<synchronous>, transform_indices = @transform_4, window_bounds = array<i64: 3, 8, 128>}, {pipeline_mode = #tpu.pipeline_mode<synchronous>, transform_indices = @transform_5, window_bounds = array<i64: 8, 128>}]} {
    %c0 = arith.constant 0 : index
    %c1 = arith.constant 1 : index
    %c0_0 = arith.constant 0 : index
    %0 = vector.load %arg1[%c0, %c1, %c0_0] : memref<8x2x32xf32, #tpu.memory_space<vmem>>, vector<8x1x32xf32>
    %1 = vector.shape_cast %0 : vector<8x1x32xf32> to vector<8x32xf32>
    %c0_1 = arith.constant 0 : index
    %c0_2 = arith.constant 0 : index
    %c0_3 = arith.constant 0 : index
    %2 = vector.load %arg2[%c0_1, %c0_2, %c0_3] : memref<3x32x128xf32, #tpu.memory_space<vmem>>, vector<1x32x96xf32>
    %3 = vector.shape_cast %2 : vector<1x32x96xf32> to vector<32x96xf32>
    %c0_4 = arith.constant 0 : index
    %c0_5 = arith.constant 0 : index
    %c96 = arith.constant 96 : index
    %4 = vector.load %arg2[%c0_4, %c0_5, %c96] : memref<3x32x128xf32, #tpu.memory_space<vmem>>, vector<1x32x32xf32>
    %5 = vector.shape_cast %4 : vector<1x32x32xf32> to vector<32x32xf32>
    %c0_6 = arith.constant 0 : index
    %c0_7 = arith.constant 0 : index
    %c0_8 = arith.constant 0 : index
    %6 = vector.load %arg5[%c0_6, %c0_7, %c0_8] : memref<3x8x128xf32, #tpu.memory_space<vmem>>, vector<1x1x96xf32>
    %7 = vector.shape_cast %6 : vector<1x1x96xf32> to vector<1x96xf32>
    %c0_9 = arith.constant 0 : index
    %c1_10 = arith.constant 1 : index
    %c0_11 = arith.constant 0 : index
    %8 = vector.load %arg5[%c0_9, %c1_10, %c0_11] : memref<3x8x128xf32, #tpu.memory_space<vmem>>, vector<1x1x32xf32>
    %9 = vector.shape_cast %8 : vector<1x1x32xf32> to vector<1x32xf32>
    %c0_12 = arith.constant 0 : index
    %c2 = arith.constant 2 : index
    %c0_13 = arith.constant 0 : index
    %10 = vector.load %arg5[%c0_12, %c2, %c0_13] : memref<3x8x128xf32, #tpu.memory_space<vmem>>, vector<1x1x64xf32>
    %11 = vector.shape_cast %10 : vector<1x1x64xf32> to vector<1x64xf32>
    %c0_14 = arith.constant 0 : index
    %c3 = arith.constant 3 : index
    %c0_15 = arith.constant 0 : index
    %12 = vector.load %arg5[%c0_14, %c3, %c0_15] : memref<3x8x128xf32, #tpu.memory_space<vmem>>, vector<1x1x32xf32>
    %13 = vector.shape_cast %12 : vector<1x1x32xf32> to vector<1x32xf32>
    %c0_16 = arith.constant 0 : index
    %c4 = arith.constant 4 : index
    %c0_17 = arith.constant 0 : index
    %14 = vector.load %arg5[%c0_16, %c4, %c0_17] : memref<3x8x128xf32, #tpu.memory_space<vmem>>, vector<1x1x32xf32>
    %15 = vector.shape_cast %14 : vector<1x1x32xf32> to vector<1x32xf32>
    %c0_18 = arith.constant 0 : index
    %c5 = arith.constant 5 : index
    %c0_19 = arith.constant 0 : index
    %16 = vector.load %arg5[%c0_18, %c5, %c0_19] : memref<3x8x128xf32, #tpu.memory_space<vmem>>, vector<1x1x32xf32>
    %17 = vector.shape_cast %16 : vector<1x1x32xf32> to vector<1x32xf32>
    %c0_20 = arith.constant 0 : index
    %c6 = arith.constant 6 : index
    %c0_21 = arith.constant 0 : index
    %18 = vector.load %arg5[%c0_20, %c6, %c0_21] : memref<3x8x128xf32, #tpu.memory_space<vmem>>, vector<1x1x32xf32>
    %19 = vector.shape_cast %18 : vector<1x1x32xf32> to vector<1x32xf32>
    %c0_22 = arith.constant 0 : index
    %c7 = arith.constant 7 : index
    %c0_23 = arith.constant 0 : index
    %20 = vector.load %arg5[%c0_22, %c7, %c0_23] : memref<3x8x128xf32, #tpu.memory_space<vmem>>, vector<1x1x32xf32>
    %21 = vector.shape_cast %20 : vector<1x1x32xf32> to vector<1x32xf32>
    %cst = arith.constant dense<0.000000e+00> : vector<8x96xf32>
    %22 = tpu.matmul %1, %3, %cst {dimension_numbers = #tpu.dot_dimension_numbers<[1], [0], [0], [1], [0, 0, 1, 1], [], []>, precision = #tpu.contract_precision<fp32>} : vector<8x32xf32>, vector<32x96xf32>, vector<8x96xf32> -> vector<8x96xf32>
    %23 = vector.broadcast %7 : vector<1x96xf32> to vector<8x96xf32>
    %24 = arith.addf %22, %23 : vector<8x96xf32>
    %25 = vector.extract_strided_slice %24 {offsets = [0, 0], sizes = [8, 8], strides = [1, 1]} : vector<8x96xf32> to vector<8x8xf32>
    %26 = vector.extract_strided_slice %24 {offsets = [0, 32], sizes = [8, 8], strides = [1, 1]} : vector<8x96xf32> to vector<8x8xf32>
    %27 = vector.extract_strided_slice %24 {offsets = [0, 64], sizes = [8, 8], strides = [1, 1]} : vector<8x96xf32> to vector<8x8xf32>
    %cst_24 = arith.constant dense<0.000000e+00> : vector<8x8xf32>
    %28 = tpu.matmul %25, %26, %cst_24 {dimension_numbers = #tpu.dot_dimension_numbers<[1], [1], [0], [0], [0, 0, 1, 0], [], []>, precision = #tpu.contract_precision<fp32>} : vector<8x8xf32>, vector<8x8xf32>, vector<8x8xf32> -> vector<8x8xf32>
    %cst_25 = arith.constant dense<0xFF800000> : vector<8xf32>
    %29 = vector.multi_reduction <maximumf>, %28, %cst_25 [1] : vector<8x8xf32> to vector<8xf32>
    %30 = vector.shape_cast %29 : vector<8xf32> to vector<8x1xf32>
    %31 = vector.broadcast %30 : vector<8x1xf32> to vector<8x8xf32>
    %32 = arith.subf %28, %31 : vector<8x8xf32>
    %33 = math.exp %32 : vector<8x8xf32>
    %cst_26 = arith.constant dense<0.000000e+00> : vector<8xf32>
    %34 = vector.multi_reduction <add>, %33, %cst_26 [1] : vector<8x8xf32> to vector<8xf32>
    %35 = vector.shape_cast %34 : vector<8xf32> to vector<8x1xf32>
    %36 = vector.broadcast %35 : vector<8x1xf32> to vector<8x8xf32>
    %37 = arith.divf %33, %36 : vector<8x8xf32>
    %cst_27 = arith.constant dense<0.000000e+00> : vector<8x8xf32>
    %38 = tpu.matmul %37, %27, %cst_27 {dimension_numbers = #tpu.dot_dimension_numbers<[1], [0], [0], [1], [0, 0, 1, 1], [], []>, precision = #tpu.contract_precision<fp32>} : vector<8x8xf32>, vector<8x8xf32>, vector<8x8xf32> -> vector<8x8xf32>
    %39 = vector.extract_strided_slice %24 {offsets = [0, 8], sizes = [8, 8], strides = [1, 1]} : vector<8x96xf32> to vector<8x8xf32>
    %40 = vector.extract_strided_slice %24 {offsets = [0, 40], sizes = [8, 8], strides = [1, 1]} : vector<8x96xf32> to vector<8x8xf32>
    %41 = vector.extract_strided_slice %24 {offsets = [0, 72], sizes = [8, 8], strides = [1, 1]} : vector<8x96xf32> to vector<8x8xf32>
    %cst_28 = arith.constant dense<0.000000e+00> : vector<8x8xf32>
    %42 = tpu.matmul %39, %40, %cst_28 {dimension_numbers = #tpu.dot_dimension_numbers<[1], [1], [0], [0], [0, 0, 1, 0], [], []>, precision = #tpu.contract_precision<fp32>} : vector<8x8xf32>, vector<8x8xf32>, vector<8x8xf32> -> vector<8x8xf32>
    %cst_29 = arith.constant dense<0xFF800000> : vector<8xf32>
    %43 = vector.multi_reduction <maximumf>, %42, %cst_29 [1] : vector<8x8xf32> to vector<8xf32>
    %44 = vector.shape_cast %43 : vector<8xf32> to vector<8x1xf32>
    %45 = vector.broadcast %44 : vector<8x1xf32> to vector<8x8xf32>
    %46 = arith.subf %42, %45 : vector<8x8xf32>
    %47 = math.exp %46 : vector<8x8xf32>
    %cst_30 = arith.constant dense<0.000000e+00> : vector<8xf32>
    %48 = vector.multi_reduction <add>, %47, %cst_30 [1] : vector<8x8xf32> to vector<8xf32>
    %49 = vector.shape_cast %48 : vector<8xf32> to vector<8x1xf32>
    %50 = vector.broadcast %49 : vector<8x1xf32> to vector<8x8xf32>
    %51 = arith.divf %47, %50 : vector<8x8xf32>
    %cst_31 = arith.constant dense<0.000000e+00> : vector<8x8xf32>
    %52 = tpu.matmul %51, %41, %cst_31 {dimension_numbers = #tpu.dot_dimension_numbers<[1], [0], [0], [1], [0, 0, 1, 1], [], []>, precision = #tpu.contract_precision<fp32>} : vector<8x8xf32>, vector<8x8xf32>, vector<8x8xf32> -> vector<8x8xf32>
    %53 = vector.extract_strided_slice %24 {offsets = [0, 16], sizes = [8, 8], strides = [1, 1]} : vector<8x96xf32> to vector<8x8xf32>
    %54 = vector.extract_strided_slice %24 {offsets = [0, 48], sizes = [8, 8], strides = [1, 1]} : vector<8x96xf32> to vector<8x8xf32>
    %55 = vector.extract_strided_slice %24 {offsets = [0, 80], sizes = [8, 8], strides = [1, 1]} : vector<8x96xf32> to vector<8x8xf32>
    %cst_32 = arith.constant dense<0.000000e+00> : vector<8x8xf32>
    %56 = tpu.matmul %53, %54, %cst_32 {dimension_numbers = #tpu.dot_dimension_numbers<[1], [1], [0], [0], [0, 0, 1, 0], [], []>, precision = #tpu.contract_precision<fp32>} : vector<8x8xf32>, vector<8x8xf32>, vector<8x8xf32> -> vector<8x8xf32>
    %cst_33 = arith.constant dense<0xFF800000> : vector<8xf32>
    %57 = vector.multi_reduction <maximumf>, %56, %cst_33 [1] : vector<8x8xf32> to vector<8xf32>
    %58 = vector.shape_cast %57 : vector<8xf32> to vector<8x1xf32>
    %59 = vector.broadcast %58 : vector<8x1xf32> to vector<8x8xf32>
    %60 = arith.subf %56, %59 : vector<8x8xf32>
    %61 = math.exp %60 : vector<8x8xf32>
    %cst_34 = arith.constant dense<0.000000e+00> : vector<8xf32>
    %62 = vector.multi_reduction <add>, %61, %cst_34 [1] : vector<8x8xf32> to vector<8xf32>
    %63 = vector.shape_cast %62 : vector<8xf32> to vector<8x1xf32>
    %64 = vector.broadcast %63 : vector<8x1xf32> to vector<8x8xf32>
    %65 = arith.divf %61, %64 : vector<8x8xf32>
    %cst_35 = arith.constant dense<0.000000e+00> : vector<8x8xf32>
    %66 = tpu.matmul %65, %55, %cst_35 {dimension_numbers = #tpu.dot_dimension_numbers<[1], [0], [0], [1], [0, 0, 1, 1], [], []>, precision = #tpu.contract_precision<fp32>} : vector<8x8xf32>, vector<8x8xf32>, vector<8x8xf32> -> vector<8x8xf32>
    %67 = vector.extract_strided_slice %24 {offsets = [0, 24], sizes = [8, 8], strides = [1, 1]} : vector<8x96xf32> to vector<8x8xf32>
    %68 = vector.extract_strided_slice %24 {offsets = [0, 56], sizes = [8, 8], strides = [1, 1]} : vector<8x96xf32> to vector<8x8xf32>
    %69 = vector.extract_strided_slice %24 {offsets = [0, 88], sizes = [8, 8], strides = [1, 1]} : vector<8x96xf32> to vector<8x8xf32>
    %cst_36 = arith.constant dense<0.000000e+00> : vector<8x8xf32>
    %70 = tpu.matmul %67, %68, %cst_36 {dimension_numbers = #tpu.dot_dimension_numbers<[1], [1], [0], [0], [0, 0, 1, 0], [], []>, precision = #tpu.contract_precision<fp32>} : vector<8x8xf32>, vector<8x8xf32>, vector<8x8xf32> -> vector<8x8xf32>
    %cst_37 = arith.constant dense<0xFF800000> : vector<8xf32>
    %71 = vector.multi_reduction <maximumf>, %70, %cst_37 [1] : vector<8x8xf32> to vector<8xf32>
    %72 = vector.shape_cast %71 : vector<8xf32> to vector<8x1xf32>
    %73 = vector.broadcast %72 : vector<8x1xf32> to vector<8x8xf32>
    %74 = arith.subf %70, %73 : vector<8x8xf32>
    %75 = math.exp %74 : vector<8x8xf32>
    %cst_38 = arith.constant dense<0.000000e+00> : vector<8xf32>
    %76 = vector.multi_reduction <add>, %75, %cst_38 [1] : vector<8x8xf32> to vector<8xf32>
    %77 = vector.shape_cast %76 : vector<8xf32> to vector<8x1xf32>
    %78 = vector.broadcast %77 : vector<8x1xf32> to vector<8x8xf32>
    %79 = arith.divf %75, %78 : vector<8x8xf32>
    %cst_39 = arith.constant dense<0.000000e+00> : vector<8x8xf32>
    %80 = tpu.matmul %79, %69, %cst_39 {dimension_numbers = #tpu.dot_dimension_numbers<[1], [0], [0], [1], [0, 0, 1, 1], [], []>, precision = #tpu.contract_precision<fp32>} : vector<8x8xf32>, vector<8x8xf32>, vector<8x8xf32> -> vector<8x8xf32>
    %81 = tpu.concatenate %38, %52, %66, %80 in 1 : vector<8x8xf32>, vector<8x8xf32>, vector<8x8xf32>, vector<8x8xf32> -> vector<8x32xf32>
    %cst_40 = arith.constant dense<0.000000e+00> : vector<8x32xf32>
    %82 = tpu.matmul %81, %5, %cst_40 {dimension_numbers = #tpu.dot_dimension_numbers<[1], [0], [0], [1], [0, 0, 1, 1], [], []>, precision = #tpu.contract_precision<fp32>} : vector<8x32xf32>, vector<32x32xf32>, vector<8x32xf32> -> vector<8x32xf32>
    %83 = vector.broadcast %9 : vector<1x32xf32> to vector<8x32xf32>
    %84 = arith.addf %82, %83 : vector<8x32xf32>
    %85 = arith.addf %1, %84 : vector<8x32xf32>
    %cst_41 = arith.constant dense<0.000000e+00> : vector<8xf32>
    %86 = vector.multi_reduction <add>, %85, %cst_41 [1] : vector<8x32xf32> to vector<8xf32>
    %87 = vector.shape_cast %86 : vector<8xf32> to vector<8x1xf32>
    %cst_42 = arith.constant 3.200000e+01 : f32
    %88 = vector.broadcast %cst_42 : f32 to vector<8x1xf32>
    %89 = arith.divf %87, %88 : vector<8x1xf32>
    %90 = vector.broadcast %89 : vector<8x1xf32> to vector<8x32xf32>
    %91 = arith.subf %85, %90 : vector<8x32xf32>
    %92 = arith.mulf %91, %91 : vector<8x32xf32>
    %cst_43 = arith.constant dense<0.000000e+00> : vector<8xf32>
    %93 = vector.multi_reduction <add>, %92, %cst_43 [1] : vector<8x32xf32> to vector<8xf32>
    %94 = vector.shape_cast %93 : vector<8xf32> to vector<8x1xf32>
    %cst_44 = arith.constant 3.200000e+01 : f32
    %95 = vector.broadcast %cst_44 : f32 to vector<8x1xf32>
    %96 = arith.divf %94, %95 : vector<8x1xf32>
    %97 = vector.broadcast %89 : vector<8x1xf32> to vector<8x32xf32>
    %98 = arith.subf %85, %97 : vector<8x32xf32>
    %cst_45 = arith.constant 9.99999974E-6 : f32
    %99 = vector.broadcast %cst_45 : f32 to vector<8x1xf32>
    %100 = arith.addf %96, %99 : vector<8x1xf32>
    %101 = math.rsqrt %100 : vector<8x1xf32>
    %102 = vector.broadcast %101 : vector<8x1xf32> to vector<8x32xf32>
    %103 = arith.mulf %98, %102 : vector<8x32xf32>
    %104 = vector.broadcast %15 : vector<1x32xf32> to vector<8x32xf32>
    %105 = arith.mulf %103, %104 : vector<8x32xf32>
    %106 = vector.broadcast %17 : vector<1x32xf32> to vector<8x32xf32>
    %107 = arith.addf %105, %106 : vector<8x32xf32>
    %c0_46 = arith.constant 0 : index
    %c0_47 = arith.constant 0 : index
    %c0_48 = arith.constant 0 : index
    %108 = vector.load %arg3[%c0_46, %c0_47, %c0_48] : memref<2x32x64xf32, #tpu.memory_space<vmem>>, vector<1x32x64xf32>
    %109 = vector.shape_cast %108 : vector<1x32x64xf32> to vector<32x64xf32>
    %cst_49 = arith.constant dense<0.000000e+00> : vector<8x64xf32>
    %110 = tpu.matmul %107, %109, %cst_49 {dimension_numbers = #tpu.dot_dimension_numbers<[1], [0], [0], [1], [0, 0, 1, 1], [], []>, precision = #tpu.contract_precision<fp32>} : vector<8x32xf32>, vector<32x64xf32>, vector<8x64xf32> -> vector<8x64xf32>
    %111 = vector.broadcast %11 : vector<1x64xf32> to vector<8x64xf32>
    %112 = arith.addf %110, %111 : vector<8x64xf32>
    %cst_50 = arith.constant 0.000000e+00 : f32
    %113 = vector.broadcast %cst_50 : f32 to vector<8x64xf32>
    %114 = arith.maximumf %112, %113 : vector<8x64xf32>
    %c0_51 = arith.constant 0 : index
    %c0_52 = arith.constant 0 : index
    %c0_53 = arith.constant 0 : index
    %115 = vector.load %arg4[%c0_51, %c0_52, %c0_53] : memref<2x64x32xf32, #tpu.memory_space<vmem>>, vector<1x64x32xf32>
    %116 = vector.shape_cast %115 : vector<1x64x32xf32> to vector<64x32xf32>
    %cst_54 = arith.constant dense<0.000000e+00> : vector<8x32xf32>
    %117 = tpu.matmul %114, %116, %cst_54 {dimension_numbers = #tpu.dot_dimension_numbers<[1], [0], [0], [1], [0, 0, 1, 1], [], []>, precision = #tpu.contract_precision<fp32>} : vector<8x64xf32>, vector<64x32xf32>, vector<8x32xf32> -> vector<8x32xf32>
    %118 = vector.broadcast %13 : vector<1x32xf32> to vector<8x32xf32>
    %119 = arith.addf %117, %118 : vector<8x32xf32>
    %120 = arith.addf %107, %119 : vector<8x32xf32>
    %cst_55 = arith.constant dense<0.000000e+00> : vector<8xf32>
    %121 = vector.multi_reduction <add>, %120, %cst_55 [1] : vector<8x32xf32> to vector<8xf32>
    %122 = vector.shape_cast %121 : vector<8xf32> to vector<8x1xf32>
    %cst_56 = arith.constant 3.200000e+01 : f32
    %123 = vector.broadcast %cst_56 : f32 to vector<8x1xf32>
    %124 = arith.divf %122, %123 : vector<8x1xf32>
    %125 = vector.broadcast %124 : vector<8x1xf32> to vector<8x32xf32>
    %126 = arith.subf %120, %125 : vector<8x32xf32>
    %127 = arith.mulf %126, %126 : vector<8x32xf32>
    %cst_57 = arith.constant dense<0.000000e+00> : vector<8xf32>
    %128 = vector.multi_reduction <add>, %127, %cst_57 [1] : vector<8x32xf32> to vector<8xf32>
    %129 = vector.shape_cast %128 : vector<8xf32> to vector<8x1xf32>
    %cst_58 = arith.constant 3.200000e+01 : f32
    %130 = vector.broadcast %cst_58 : f32 to vector<8x1xf32>
    %131 = arith.divf %129, %130 : vector<8x1xf32>
    %132 = vector.broadcast %124 : vector<8x1xf32> to vector<8x32xf32>
    %133 = arith.subf %120, %132 : vector<8x32xf32>
    %cst_59 = arith.constant 9.99999974E-6 : f32
    %134 = vector.broadcast %cst_59 : f32 to vector<8x1xf32>
    %135 = arith.addf %131, %134 : vector<8x1xf32>
    %136 = math.rsqrt %135 : vector<8x1xf32>
    %137 = vector.broadcast %136 : vector<8x1xf32> to vector<8x32xf32>
    %138 = arith.mulf %133, %137 : vector<8x32xf32>
    %139 = vector.broadcast %19 : vector<1x32xf32> to vector<8x32xf32>
    %140 = arith.mulf %138, %139 : vector<8x32xf32>
    %141 = vector.broadcast %21 : vector<1x32xf32> to vector<8x32xf32>
    %142 = arith.addf %140, %141 : vector<8x32xf32>
    %c1_60 = arith.constant 1 : index
    %c0_61 = arith.constant 0 : index
    %c0_62 = arith.constant 0 : index
    %143 = vector.load %arg2[%c1_60, %c0_61, %c0_62] : memref<3x32x128xf32, #tpu.memory_space<vmem>>, vector<1x32x96xf32>
    %144 = vector.shape_cast %143 : vector<1x32x96xf32> to vector<32x96xf32>
    %c1_63 = arith.constant 1 : index
    %c0_64 = arith.constant 0 : index
    %c96_65 = arith.constant 96 : index
    %145 = vector.load %arg2[%c1_63, %c0_64, %c96_65] : memref<3x32x128xf32, #tpu.memory_space<vmem>>, vector<1x32x32xf32>
    %146 = vector.shape_cast %145 : vector<1x32x32xf32> to vector<32x32xf32>
    %c1_66 = arith.constant 1 : index
    %c0_67 = arith.constant 0 : index
    %c0_68 = arith.constant 0 : index
    %147 = vector.load %arg5[%c1_66, %c0_67, %c0_68] : memref<3x8x128xf32, #tpu.memory_space<vmem>>, vector<1x1x96xf32>
    %148 = vector.shape_cast %147 : vector<1x1x96xf32> to vector<1x96xf32>
    %c1_69 = arith.constant 1 : index
    %c1_70 = arith.constant 1 : index
    %c0_71 = arith.constant 0 : index
    %149 = vector.load %arg5[%c1_69, %c1_70, %c0_71] : memref<3x8x128xf32, #tpu.memory_space<vmem>>, vector<1x1x32xf32>
    %150 = vector.shape_cast %149 : vector<1x1x32xf32> to vector<1x32xf32>
    %c1_72 = arith.constant 1 : index
    %c2_73 = arith.constant 2 : index
    %c0_74 = arith.constant 0 : index
    %151 = vector.load %arg5[%c1_72, %c2_73, %c0_74] : memref<3x8x128xf32, #tpu.memory_space<vmem>>, vector<1x1x64xf32>
    %152 = vector.shape_cast %151 : vector<1x1x64xf32> to vector<1x64xf32>
    %c1_75 = arith.constant 1 : index
    %c3_76 = arith.constant 3 : index
    %c0_77 = arith.constant 0 : index
    %153 = vector.load %arg5[%c1_75, %c3_76, %c0_77] : memref<3x8x128xf32, #tpu.memory_space<vmem>>, vector<1x1x32xf32>
    %154 = vector.shape_cast %153 : vector<1x1x32xf32> to vector<1x32xf32>
    %c1_78 = arith.constant 1 : index
    %c4_79 = arith.constant 4 : index
    %c0_80 = arith.constant 0 : index
    %155 = vector.load %arg5[%c1_78, %c4_79, %c0_80] : memref<3x8x128xf32, #tpu.memory_space<vmem>>, vector<1x1x32xf32>
    %156 = vector.shape_cast %155 : vector<1x1x32xf32> to vector<1x32xf32>
    %c1_81 = arith.constant 1 : index
    %c5_82 = arith.constant 5 : index
    %c0_83 = arith.constant 0 : index
    %157 = vector.load %arg5[%c1_81, %c5_82, %c0_83] : memref<3x8x128xf32, #tpu.memory_space<vmem>>, vector<1x1x32xf32>
    %158 = vector.shape_cast %157 : vector<1x1x32xf32> to vector<1x32xf32>
    %c1_84 = arith.constant 1 : index
    %c6_85 = arith.constant 6 : index
    %c0_86 = arith.constant 0 : index
    %159 = vector.load %arg5[%c1_84, %c6_85, %c0_86] : memref<3x8x128xf32, #tpu.memory_space<vmem>>, vector<1x1x32xf32>
    %160 = vector.shape_cast %159 : vector<1x1x32xf32> to vector<1x32xf32>
    %c1_87 = arith.constant 1 : index
    %c7_88 = arith.constant 7 : index
    %c0_89 = arith.constant 0 : index
    %161 = vector.load %arg5[%c1_87, %c7_88, %c0_89] : memref<3x8x128xf32, #tpu.memory_space<vmem>>, vector<1x1x32xf32>
    %162 = vector.shape_cast %161 : vector<1x1x32xf32> to vector<1x32xf32>
    %cst_90 = arith.constant dense<0.000000e+00> : vector<8x96xf32>
    %163 = tpu.matmul %142, %144, %cst_90 {dimension_numbers = #tpu.dot_dimension_numbers<[1], [0], [0], [1], [0, 0, 1, 1], [], []>, precision = #tpu.contract_precision<fp32>} : vector<8x32xf32>, vector<32x96xf32>, vector<8x96xf32> -> vector<8x96xf32>
    %164 = vector.broadcast %148 : vector<1x96xf32> to vector<8x96xf32>
    %165 = arith.addf %163, %164 : vector<8x96xf32>
    %166 = vector.extract_strided_slice %165 {offsets = [0, 0], sizes = [8, 8], strides = [1, 1]} : vector<8x96xf32> to vector<8x8xf32>
    %167 = vector.extract_strided_slice %165 {offsets = [0, 32], sizes = [8, 8], strides = [1, 1]} : vector<8x96xf32> to vector<8x8xf32>
    %168 = vector.extract_strided_slice %165 {offsets = [0, 64], sizes = [8, 8], strides = [1, 1]} : vector<8x96xf32> to vector<8x8xf32>
    %cst_91 = arith.constant dense<0.000000e+00> : vector<8x8xf32>
    %169 = tpu.matmul %166, %167, %cst_91 {dimension_numbers = #tpu.dot_dimension_numbers<[1], [1], [0], [0], [0, 0, 1, 0], [], []>, precision = #tpu.contract_precision<fp32>} : vector<8x8xf32>, vector<8x8xf32>, vector<8x8xf32> -> vector<8x8xf32>
    %cst_92 = arith.constant dense<0xFF800000> : vector<8xf32>
    %170 = vector.multi_reduction <maximumf>, %169, %cst_92 [1] : vector<8x8xf32> to vector<8xf32>
    %171 = vector.shape_cast %170 : vector<8xf32> to vector<8x1xf32>
    %172 = vector.broadcast %171 : vector<8x1xf32> to vector<8x8xf32>
    %173 = arith.subf %169, %172 : vector<8x8xf32>
    %174 = math.exp %173 : vector<8x8xf32>
    %cst_93 = arith.constant dense<0.000000e+00> : vector<8xf32>
    %175 = vector.multi_reduction <add>, %174, %cst_93 [1] : vector<8x8xf32> to vector<8xf32>
    %176 = vector.shape_cast %175 : vector<8xf32> to vector<8x1xf32>
    %177 = vector.broadcast %176 : vector<8x1xf32> to vector<8x8xf32>
    %178 = arith.divf %174, %177 : vector<8x8xf32>
    %cst_94 = arith.constant dense<0.000000e+00> : vector<8x8xf32>
    %179 = tpu.matmul %178, %168, %cst_94 {dimension_numbers = #tpu.dot_dimension_numbers<[1], [0], [0], [1], [0, 0, 1, 1], [], []>, precision = #tpu.contract_precision<fp32>} : vector<8x8xf32>, vector<8x8xf32>, vector<8x8xf32> -> vector<8x8xf32>
    %180 = vector.extract_strided_slice %165 {offsets = [0, 8], sizes = [8, 8], strides = [1, 1]} : vector<8x96xf32> to vector<8x8xf32>
    %181 = vector.extract_strided_slice %165 {offsets = [0, 40], sizes = [8, 8], strides = [1, 1]} : vector<8x96xf32> to vector<8x8xf32>
    %182 = vector.extract_strided_slice %165 {offsets = [0, 72], sizes = [8, 8], strides = [1, 1]} : vector<8x96xf32> to vector<8x8xf32>
    %cst_95 = arith.constant dense<0.000000e+00> : vector<8x8xf32>
    %183 = tpu.matmul %180, %181, %cst_95 {dimension_numbers = #tpu.dot_dimension_numbers<[1], [1], [0], [0], [0, 0, 1, 0], [], []>, precision = #tpu.contract_precision<fp32>} : vector<8x8xf32>, vector<8x8xf32>, vector<8x8xf32> -> vector<8x8xf32>
    %cst_96 = arith.constant dense<0xFF800000> : vector<8xf32>
    %184 = vector.multi_reduction <maximumf>, %183, %cst_96 [1] : vector<8x8xf32> to vector<8xf32>
    %185 = vector.shape_cast %184 : vector<8xf32> to vector<8x1xf32>
    %186 = vector.broadcast %185 : vector<8x1xf32> to vector<8x8xf32>
    %187 = arith.subf %183, %186 : vector<8x8xf32>
    %188 = math.exp %187 : vector<8x8xf32>
    %cst_97 = arith.constant dense<0.000000e+00> : vector<8xf32>
    %189 = vector.multi_reduction <add>, %188, %cst_97 [1] : vector<8x8xf32> to vector<8xf32>
    %190 = vector.shape_cast %189 : vector<8xf32> to vector<8x1xf32>
    %191 = vector.broadcast %190 : vector<8x1xf32> to vector<8x8xf32>
    %192 = arith.divf %188, %191 : vector<8x8xf32>
    %cst_98 = arith.constant dense<0.000000e+00> : vector<8x8xf32>
    %193 = tpu.matmul %192, %182, %cst_98 {dimension_numbers = #tpu.dot_dimension_numbers<[1], [0], [0], [1], [0, 0, 1, 1], [], []>, precision = #tpu.contract_precision<fp32>} : vector<8x8xf32>, vector<8x8xf32>, vector<8x8xf32> -> vector<8x8xf32>
    %194 = vector.extract_strided_slice %165 {offsets = [0, 16], sizes = [8, 8], strides = [1, 1]} : vector<8x96xf32> to vector<8x8xf32>
    %195 = vector.extract_strided_slice %165 {offsets = [0, 48], sizes = [8, 8], strides = [1, 1]} : vector<8x96xf32> to vector<8x8xf32>
    %196 = vector.extract_strided_slice %165 {offsets = [0, 80], sizes = [8, 8], strides = [1, 1]} : vector<8x96xf32> to vector<8x8xf32>
    %cst_99 = arith.constant dense<0.000000e+00> : vector<8x8xf32>
    %197 = tpu.matmul %194, %195, %cst_99 {dimension_numbers = #tpu.dot_dimension_numbers<[1], [1], [0], [0], [0, 0, 1, 0], [], []>, precision = #tpu.contract_precision<fp32>} : vector<8x8xf32>, vector<8x8xf32>, vector<8x8xf32> -> vector<8x8xf32>
    %cst_100 = arith.constant dense<0xFF800000> : vector<8xf32>
    %198 = vector.multi_reduction <maximumf>, %197, %cst_100 [1] : vector<8x8xf32> to vector<8xf32>
    %199 = vector.shape_cast %198 : vector<8xf32> to vector<8x1xf32>
    %200 = vector.broadcast %199 : vector<8x1xf32> to vector<8x8xf32>
    %201 = arith.subf %197, %200 : vector<8x8xf32>
    %202 = math.exp %201 : vector<8x8xf32>
    %cst_101 = arith.constant dense<0.000000e+00> : vector<8xf32>
    %203 = vector.multi_reduction <add>, %202, %cst_101 [1] : vector<8x8xf32> to vector<8xf32>
    %204 = vector.shape_cast %203 : vector<8xf32> to vector<8x1xf32>
    %205 = vector.broadcast %204 : vector<8x1xf32> to vector<8x8xf32>
    %206 = arith.divf %202, %205 : vector<8x8xf32>
    %cst_102 = arith.constant dense<0.000000e+00> : vector<8x8xf32>
    %207 = tpu.matmul %206, %196, %cst_102 {dimension_numbers = #tpu.dot_dimension_numbers<[1], [0], [0], [1], [0, 0, 1, 1], [], []>, precision = #tpu.contract_precision<fp32>} : vector<8x8xf32>, vector<8x8xf32>, vector<8x8xf32> -> vector<8x8xf32>
    %208 = vector.extract_strided_slice %165 {offsets = [0, 24], sizes = [8, 8], strides = [1, 1]} : vector<8x96xf32> to vector<8x8xf32>
    %209 = vector.extract_strided_slice %165 {offsets = [0, 56], sizes = [8, 8], strides = [1, 1]} : vector<8x96xf32> to vector<8x8xf32>
    %210 = vector.extract_strided_slice %165 {offsets = [0, 88], sizes = [8, 8], strides = [1, 1]} : vector<8x96xf32> to vector<8x8xf32>
    %cst_103 = arith.constant dense<0.000000e+00> : vector<8x8xf32>
    %211 = tpu.matmul %208, %209, %cst_103 {dimension_numbers = #tpu.dot_dimension_numbers<[1], [1], [0], [0], [0, 0, 1, 0], [], []>, precision = #tpu.contract_precision<fp32>} : vector<8x8xf32>, vector<8x8xf32>, vector<8x8xf32> -> vector<8x8xf32>
    %cst_104 = arith.constant dense<0xFF800000> : vector<8xf32>
    %212 = vector.multi_reduction <maximumf>, %211, %cst_104 [1] : vector<8x8xf32> to vector<8xf32>
    %213 = vector.shape_cast %212 : vector<8xf32> to vector<8x1xf32>
    %214 = vector.broadcast %213 : vector<8x1xf32> to vector<8x8xf32>
    %215 = arith.subf %211, %214 : vector<8x8xf32>
    %216 = math.exp %215 : vector<8x8xf32>
    %cst_105 = arith.constant dense<0.000000e+00> : vector<8xf32>
    %217 = vector.multi_reduction <add>, %216, %cst_105 [1] : vector<8x8xf32> to vector<8xf32>
    %218 = vector.shape_cast %217 : vector<8xf32> to vector<8x1xf32>
    %219 = vector.broadcast %218 : vector<8x1xf32> to vector<8x8xf32>
    %220 = arith.divf %216, %219 : vector<8x8xf32>
    %cst_106 = arith.constant dense<0.000000e+00> : vector<8x8xf32>
    %221 = tpu.matmul %220, %210, %cst_106 {dimension_numbers = #tpu.dot_dimension_numbers<[1], [0], [0], [1], [0, 0, 1, 1], [], []>, precision = #tpu.contract_precision<fp32>} : vector<8x8xf32>, vector<8x8xf32>, vector<8x8xf32> -> vector<8x8xf32>
    %222 = tpu.concatenate %179, %193, %207, %221 in 1 : vector<8x8xf32>, vector<8x8xf32>, vector<8x8xf32>, vector<8x8xf32> -> vector<8x32xf32>
    %cst_107 = arith.constant dense<0.000000e+00> : vector<8x32xf32>
    %223 = tpu.matmul %222, %146, %cst_107 {dimension_numbers = #tpu.dot_dimension_numbers<[1], [0], [0], [1], [0, 0, 1, 1], [], []>, precision = #tpu.contract_precision<fp32>} : vector<8x32xf32>, vector<32x32xf32>, vector<8x32xf32> -> vector<8x32xf32>
    %224 = vector.broadcast %150 : vector<1x32xf32> to vector<8x32xf32>
    %225 = arith.addf %223, %224 : vector<8x32xf32>
    %226 = arith.addf %142, %225 : vector<8x32xf32>
    %cst_108 = arith.constant dense<0.000000e+00> : vector<8xf32>
    %227 = vector.multi_reduction <add>, %226, %cst_108 [1] : vector<8x32xf32> to vector<8xf32>
    %228 = vector.shape_cast %227 : vector<8xf32> to vector<8x1xf32>
    %cst_109 = arith.constant 3.200000e+01 : f32
    %229 = vector.broadcast %cst_109 : f32 to vector<8x1xf32>
    %230 = arith.divf %228, %229 : vector<8x1xf32>
    %231 = vector.broadcast %230 : vector<8x1xf32> to vector<8x32xf32>
    %232 = arith.subf %226, %231 : vector<8x32xf32>
    %233 = arith.mulf %232, %232 : vector<8x32xf32>
    %cst_110 = arith.constant dense<0.000000e+00> : vector<8xf32>
    %234 = vector.multi_reduction <add>, %233, %cst_110 [1] : vector<8x32xf32> to vector<8xf32>
    %235 = vector.shape_cast %234 : vector<8xf32> to vector<8x1xf32>
    %cst_111 = arith.constant 3.200000e+01 : f32
    %236 = vector.broadcast %cst_111 : f32 to vector<8x1xf32>
    %237 = arith.divf %235, %236 : vector<8x1xf32>
    %238 = vector.broadcast %230 : vector<8x1xf32> to vector<8x32xf32>
    %239 = arith.subf %226, %238 : vector<8x32xf32>
    %cst_112 = arith.constant 9.99999974E-6 : f32
    %240 = vector.broadcast %cst_112 : f32 to vector<8x1xf32>
    %241 = arith.addf %237, %240 : vector<8x1xf32>
    %242 = math.rsqrt %241 : vector<8x1xf32>
    %243 = vector.broadcast %242 : vector<8x1xf32> to vector<8x32xf32>
    %244 = arith.mulf %239, %243 : vector<8x32xf32>
    %245 = vector.broadcast %156 : vector<1x32xf32> to vector<8x32xf32>
    %246 = arith.mulf %244, %245 : vector<8x32xf32>
    %247 = vector.broadcast %158 : vector<1x32xf32> to vector<8x32xf32>
    %248 = arith.addf %246, %247 : vector<8x32xf32>
    %c1_113 = arith.constant 1 : index
    %c0_114 = arith.constant 0 : index
    %c0_115 = arith.constant 0 : index
    %249 = vector.load %arg3[%c1_113, %c0_114, %c0_115] : memref<2x32x64xf32, #tpu.memory_space<vmem>>, vector<1x32x64xf32>
    %250 = vector.shape_cast %249 : vector<1x32x64xf32> to vector<32x64xf32>
    %cst_116 = arith.constant dense<0.000000e+00> : vector<8x64xf32>
    %251 = tpu.matmul %248, %250, %cst_116 {dimension_numbers = #tpu.dot_dimension_numbers<[1], [0], [0], [1], [0, 0, 1, 1], [], []>, precision = #tpu.contract_precision<fp32>} : vector<8x32xf32>, vector<32x64xf32>, vector<8x64xf32> -> vector<8x64xf32>
    %252 = vector.broadcast %152 : vector<1x64xf32> to vector<8x64xf32>
    %253 = arith.addf %251, %252 : vector<8x64xf32>
    %cst_117 = arith.constant 0.000000e+00 : f32
    %254 = vector.broadcast %cst_117 : f32 to vector<8x64xf32>
    %255 = arith.maximumf %253, %254 : vector<8x64xf32>
    %c1_118 = arith.constant 1 : index
    %c0_119 = arith.constant 0 : index
    %c0_120 = arith.constant 0 : index
    %256 = vector.load %arg4[%c1_118, %c0_119, %c0_120] : memref<2x64x32xf32, #tpu.memory_space<vmem>>, vector<1x64x32xf32>
    %257 = vector.shape_cast %256 : vector<1x64x32xf32> to vector<64x32xf32>
    %cst_121 = arith.constant dense<0.000000e+00> : vector<8x32xf32>
    %258 = tpu.matmul %255, %257, %cst_121 {dimension_numbers = #tpu.dot_dimension_numbers<[1], [0], [0], [1], [0, 0, 1, 1], [], []>, precision = #tpu.contract_precision<fp32>} : vector<8x64xf32>, vector<64x32xf32>, vector<8x32xf32> -> vector<8x32xf32>
    %259 = vector.broadcast %154 : vector<1x32xf32> to vector<8x32xf32>
    %260 = arith.addf %258, %259 : vector<8x32xf32>
    %261 = arith.addf %248, %260 : vector<8x32xf32>
    %cst_122 = arith.constant dense<0.000000e+00> : vector<8xf32>
    %262 = vector.multi_reduction <add>, %261, %cst_122 [1] : vector<8x32xf32> to vector<8xf32>
    %263 = vector.shape_cast %262 : vector<8xf32> to vector<8x1xf32>
    %cst_123 = arith.constant 3.200000e+01 : f32
    %264 = vector.broadcast %cst_123 : f32 to vector<8x1xf32>
    %265 = arith.divf %263, %264 : vector<8x1xf32>
    %266 = vector.broadcast %265 : vector<8x1xf32> to vector<8x32xf32>
    %267 = arith.subf %261, %266 : vector<8x32xf32>
    %268 = arith.mulf %267, %267 : vector<8x32xf32>
    %cst_124 = arith.constant dense<0.000000e+00> : vector<8xf32>
    %269 = vector.multi_reduction <add>, %268, %cst_124 [1] : vector<8x32xf32> to vector<8xf32>
    %270 = vector.shape_cast %269 : vector<8xf32> to vector<8x1xf32>
    %cst_125 = arith.constant 3.200000e+01 : f32
    %271 = vector.broadcast %cst_125 : f32 to vector<8x1xf32>
    %272 = arith.divf %270, %271 : vector<8x1xf32>
    %273 = vector.broadcast %265 : vector<8x1xf32> to vector<8x32xf32>
    %274 = arith.subf %261, %273 : vector<8x32xf32>
    %cst_126 = arith.constant 9.99999974E-6 : f32
    %275 = vector.broadcast %cst_126 : f32 to vector<8x1xf32>
    %276 = arith.addf %272, %275 : vector<8x1xf32>
    %277 = math.rsqrt %276 : vector<8x1xf32>
    %278 = vector.broadcast %277 : vector<8x1xf32> to vector<8x32xf32>
    %279 = arith.mulf %274, %278 : vector<8x32xf32>
    %280 = vector.broadcast %160 : vector<1x32xf32> to vector<8x32xf32>
    %281 = arith.mulf %279, %280 : vector<8x32xf32>
    %282 = vector.broadcast %162 : vector<1x32xf32> to vector<8x32xf32>
    %283 = arith.addf %281, %282 : vector<8x32xf32>
    %c2_127 = arith.constant 2 : index
    %c0_128 = arith.constant 0 : index
    %c0_129 = arith.constant 0 : index
    %284 = vector.load %arg2[%c2_127, %c0_128, %c0_129] : memref<3x32x128xf32, #tpu.memory_space<vmem>>, vector<1x32x128xf32>
    %285 = vector.shape_cast %284 : vector<1x32x128xf32> to vector<32x128xf32>
    %c2_130 = arith.constant 2 : index
    %c0_131 = arith.constant 0 : index
    %c0_132 = arith.constant 0 : index
    %286 = vector.load %arg5[%c2_130, %c0_131, %c0_132] : memref<3x8x128xf32, #tpu.memory_space<vmem>>, vector<1x1x128xf32>
    %287 = vector.shape_cast %286 : vector<1x1x128xf32> to vector<1x128xf32>
    %cst_133 = arith.constant dense<0.000000e+00> : vector<8x128xf32>
    %288 = tpu.matmul %283, %285, %cst_133 {dimension_numbers = #tpu.dot_dimension_numbers<[1], [0], [0], [1], [0, 0, 1, 1], [], []>, precision = #tpu.contract_precision<fp32>} : vector<8x32xf32>, vector<32x128xf32>, vector<8x128xf32> -> vector<8x128xf32>
    %289 = vector.broadcast %287 : vector<1x128xf32> to vector<8x128xf32>
    %290 = arith.addf %288, %289 : vector<8x128xf32>
    %c0_134 = arith.constant 0 : index
    %c0_135 = arith.constant 0 : index
    %291 = vector.load %arg6[%c0_134, %c0_135] : memref<8x128xf32, #tpu.memory_space<vmem>>, vector<8x128xf32>
    tpu.vector_store %arg6[%c0_134, %c0_135], %290 {strides = array<i32>} : memref<8x128xf32, #tpu.memory_space<vmem>>, vector<8x128xf32>,
    return
  }
  func.func @transform_0(%arg0: i32) -> (i32, i32, i32) {
    %c0_i32 = arith.constant 0 : i32
    %c0_i32_0 = arith.constant 0 : i32
    %c0_i32_1 = arith.constant 0 : i32
    %c0_i32_2 = arith.constant 0 : i32
    return %c0_i32, %c0_i32_0, %c0_i32_1 : i32, i32, i32
  }
  func.func @transform_1(%arg0: i32) -> (i32, i32, i32) {
    %c0_i32 = arith.constant 0 : i32
    %c0_i32_0 = arith.constant 0 : i32
    %c0_i32_1 = arith.constant 0 : i32
    %c0_i32_2 = arith.constant 0 : i32
    return %c0_i32, %c0_i32_0, %c0_i32_1 : i32, i32, i32
  }
  func.func @transform_2(%arg0: i32) -> (i32, i32, i32) {
    %c0_i32 = arith.constant 0 : i32
    %c0_i32_0 = arith.constant 0 : i32
    %c0_i32_1 = arith.constant 0 : i32
    %c0_i32_2 = arith.constant 0 : i32
    return %c0_i32, %c0_i32_0, %c0_i32_1 : i32, i32, i32
  }
  func.func @transform_3(%arg0: i32) -> (i32, i32, i32) {
    %c0_i32 = arith.constant 0 : i32
    %c0_i32_0 = arith.constant 0 : i32
    %c0_i32_1 = arith.constant 0 : i32
    %c0_i32_2 = arith.constant 0 : i32
    return %c0_i32, %c0_i32_0, %c0_i32_1 : i32, i32, i32
  }
  func.func @transform_4(%arg0: i32) -> (i32, i32, i32) {
    %c0_i32 = arith.constant 0 : i32
    %c0_i32_0 = arith.constant 0 : i32
    %c0_i32_1 = arith.constant 0 : i32
    %c0_i32_2 = arith.constant 0 : i32
    return %c0_i32, %c0_i32_0, %c0_i32_1 : i32, i32, i32
  }
  func.func @transform_5(%arg0: i32) -> (i32, i32) {
    %c0_i32 = arith.constant 0 : i32
    %c0_i32_0 = arith.constant 0 : i32
    %c0_i32_1 = arith.constant 0 : i32
    return %c0_i32, %c0_i32_0 : i32, i32
  }
}

</mosaic_0001>

<llo_original>
// kernel: tpu_custom_call.1
$region0: #{tpu_custom_call.1}
  #allocation0 [shape = 'u32[]', space=smem, size = 0x4, offset = 0x4, fixed_abs, tag = 'smem constant byte address 0x4 - core index']
  #allocation1 [shape = 'u32[72,128]{1,0:T(1,128)}', space=vmem, size = 0x9000, scoped, tag = 'internal scratch']
  %s0 = inlined_call_operand.hbm [shape: f32[8,2,32], index: 0, kind: input, shape index: {}]
  %s1 = inlined_call_operand.vmem [shape: f32[3,32,128], index: 1, kind: input, shape index: {}]
  %s2 = inlined_call_operand.vmem [shape: f32[2,32,64], index: 2, kind: input, shape index: {}]
  %s3 = inlined_call_operand.vmem [shape: f32[2,64,32], index: 3, kind: input, shape index: {}]
  %s4 = inlined_call_operand.vmem [shape: f32[3,8,128], index: 4, kind: input, shape index: {}]
  %s5 = inlined_call_operand.hbm [shape: f32[8,128], index: 5, kind: output, shape index: {}]
  %s6 = sld [smem:[#allocation0]]
  $region34: #{tpu_custom_call.1} parent=0
    _
  %s8 = ssub.s32 1, %s6
  %s9 = scalar_select 0, %s8, %s6
  $region1: #{tpu_custom_call.1} parent=0
    #allocation2 [shape = 'u8[8192]{0}', space=vmem, size = 0x2000, scoped, tag = 'input window, operand 0, single buffered']
    #allocation3 [shape = 's32[1]{0}', space=sflag, size = 0x4, scoped, tag = 'scoped memory for tpu_custom_call.1']
    #allocation4 [shape = 's32[1]{0}', space=sflag, size = 0x4, scoped, tag = 'scoped memory for tpu_custom_call.1']
    #allocation5 [shape = 'u8[4096]{0}', space=vmem, size = 0x1000, scoped, tag = 'output window, operand 0, single buffered']
    %10 = vsyncpa [#allocation3], 0
    %11 = vsyncpa [#allocation4], 0
    // Predicated region
    $region2: #{tpu_custom_call.1} parent=1 // pred_check
      _
    $region3: #{tpu_custom_call.1} parent=1 // pred_check_branch
      %13 = sbr.rel (0) target = $region5
    $region4: #{tpu_custom_call.1} parent=1 // pred_region
      %15 = vsyncadd [#allocation3], 0
      %s16 = sshll.u32 %s0, 4
      %s17 = int_to_ptr.hbm [resolvable:$true] %s16
      %s18 = sshll.u32 [#allocation2], 4
      %s19 = int_to_ptr.vmem [resolvable:$true] %s18
      %24 = dma.hbm_to_vmem [thread:$0]  %s17, 256, %s19, [#allocation3], 32, 32, 2
    $region5: #{tpu_custom_call.1} parent=1 // pred_fallthru
      _
    // Predicated region
    $region6: #{tpu_custom_call.1} parent=1 // pred_check
      _
    $region7: #{tpu_custom_call.1} parent=1 // pred_check_branch
      %26 = sbr.rel (0) target = $region9
    $region8: #{tpu_custom_call.1} parent=1 // pred_region
      _
    $region9: #{tpu_custom_call.1} parent=1 // pred_fallthru
      _
    // Predicated region
    $region10: #{tpu_custom_call.1} parent=1 // pred_check
      _
    $region11: #{tpu_custom_call.1} parent=1 // pred_check_branch
      %28 = sbr.rel (0) target = $region13
    $region12: #{tpu_custom_call.1} parent=1 // pred_region
      _
    $region13: #{tpu_custom_call.1} parent=1 // pred_fallthru
      _
    // Predicated region
    $region14: #{tpu_custom_call.1} parent=1 // pred_check
      _
    $region15: #{tpu_custom_call.1} parent=1 // pred_check_branch
      %30 = sbr.rel (0) target = $region17
    $region16: #{tpu_custom_call.1} parent=1 // pred_region
      _
    $region17: #{tpu_custom_call.1} parent=1 // pred_fallthru
      _
    // Predicated region
    $region18: #{tpu_custom_call.1} parent=1 // pred_check
      _
    $region19: #{tpu_custom_call.1} parent=1 // pred_check_branch
      %32 = sbr.rel (0) target = $region21
    $region20: #{tpu_custom_call.1} parent=1 // pred_region
      _
    $region21: #{tpu_custom_call.1} parent=1 // pred_fallthru
      _
    // Predicated region
    $region22: #{tpu_custom_call.1} parent=1 // pred_check
      _
    $region23: #{tpu_custom_call.1} parent=1 // pred_check_branch
      %34 = sbr.rel (0) target = $region25
    $region24: #{tpu_custom_call.1} parent=1 // pred_region
      %36 = dma.done [#allocation3], 256
    $region25: #{tpu_custom_call.1} parent=1 // pred_fallthru
      _
    %v37 = vld [vmem:[#allocation2 + $0x1] sm:$0x1]
    %v38 = vld [vmem:[#allocation2 + $0x3] sm:$0x1]
    %v39 = vld [vmem:[#allocation2 + $0x5] sm:$0x1]
    %v40 = vld [vmem:[#allocation2 + $0x7] sm:$0x1]
    %v41 = vld [vmem:[#allocation2 + $0x9] sm:$0x1]
    %v42 = vld [vmem:[#allocation2 + $0xb] sm:$0x1]
    %v43 = vld [vmem:[#allocation2 + $0xd] sm:$0x1]
    %v44 = vld [vmem:[#allocation2 + $0xf] sm:$0x1]
    %v45 = vld [vmem:[%s1] sm:$0xff]
    %v46 = vld [vmem:[%s1 + $0x8] sm:$0xff]
    %v47 = vld [vmem:[%s1 + $0x10] sm:$0xff]
    %v48 = vld [vmem:[%s1 + $0x18] sm:$0xff]
    %v49 = vld [vmem:[%s4] sm:$0x1]
    %v50 = vld [vmem:[%s4 + $0x1] sm:$0x1]
    %v51 = vld [vmem:[%s4 + $0x2] sm:$0x1]
    %v52 = vld [vmem:[%s4 + $0x3] sm:$0x1]
    %v53 = vld [vmem:[%s4 + $0x4] sm:$0x1]
    %v54 = vld [vmem:[%s4 + $0x5] sm:$0x1]
    %v55 = vld [vmem:[%s4 + $0x6] sm:$0x1]
    %v56 = vld [vmem:[%s4 + $0x7] sm:$0x1]
    %v57 = vperm.slane %v49, 0
    %v66 = vrot.slane %v38, 7
    %vm67 = vcmask 1041409
    %v68 = vsel %vm67, %v66, %v37
    %v69 = vrot.slane %v39, 6
    %vm70 = vcmask 1042434
    %v71 = vsel %vm70, %v69, %v68
    %v72 = vrot.slane %v40, 5
    %vm73 = vcmask 1043459
    %v74 = vsel %vm73, %v72, %v71
    %v75 = vrot.slane %v41, 4
    %vm76 = vcmask 1044484
    %v77 = vsel %vm76, %v75, %v74
    %v78 = vrot.slane %v42, 3
    %vm79 = vcmask 1045509
    %v80 = vsel %vm79, %v78, %v77
    %v81 = vrot.slane %v43, 2
    %vm82 = vcmask 1046534
    %v83 = vsel %vm82, %v81, %v80
    %v84 = vrot.slane %v44, 1
    %vm85 = vcmask 1047559
    %v86 = vsel %vm85, %v84, %v83
    %vm87 = vcmask 261120
    %v88 = vsel %vm87, %v86, 0
    %90 = vmatpush.msra.mxu0 0.0
    %91 = vmatpush.msra.mxu0 0.0
    %92 = vmatpush.msra.mxu0 0.0
    %93 = vmatpush.msra.mxu0 0.0
    %94 = vmatpush.msra.mxu0 0.0
    %95 = vmatpush.msra.mxu0 0.0
    %96 = vmatpush.msra.mxu0 0.0
    %97 = vmatpush.msra.mxu0 0.0
    %98 = vmatpush.msra.mxu0 0.0
    %99 = vmatpush.msra.mxu0 0.0
    %100 = vmatpush.msra.mxu0 0.0
    %101 = vmatpush.msra.mxu0 0.0
    %v102 = vand.u32 %v48, 4294901760
    %103 = vmatpush.msra.mxu0 %v102
    %v104 = vand.u32 %v47, 4294901760
    %105 = vmatpush.msra.mxu0 %v104
    %v106 = vand.u32 %v46, 4294901760
    %107 = vmatpush.msra.mxu0 %v106
    %v108 = vand.u32 %v45, 4294901760
    %109 = vmatpush.msra.mxu0 %v108
    %v110 = vand.u32 %v88, 4294901760
    %v111 = vsub.f32 %v88, %v110
    %v112 = vand.u32 %v111, 4294901760
    %v113 = vsub.f32 %v111, %v112
    %v114 = vand.u32 %v113, 4294901760
    %115 = vmatmul.f32.gmra.mxu0 %v114
    %v116 = vpop.f32.mrf.mxu0
    %v117 = vadd.f32 %v57, %v116
    %118 = vdwg.mxu0
    %119 = vmatpush.msra.mxu0 0.0
    %120 = vmatpush.msra.mxu0 0.0
    %121 = vmatpush.msra.mxu0 0.0
    %122 = vmatpush.msra.mxu0 0.0
    %123 = vmatpush.msra.mxu0 0.0
    %124 = vmatpush.msra.mxu0 0.0
    %125 = vmatpush.msra.mxu0 0.0
    %126 = vmatpush.msra.mxu0 0.0
    %127 = vmatpush.msra.mxu0 0.0
    %128 = vmatpush.msra.mxu0 0.0
    %129 = vmatpush.msra.mxu0 0.0
    %130 = vmatpush.msra.mxu0 0.0
    %v131 = vand.u32 %v48, 4294901760
    %v132 = vsub.f32 %v48, %v131
    %v133 = vand.u32 %v132, 4294901760
    %v134 = vsub.f32 %v132, %v133
    %v135 = vand.u32 %v134, 4294901760
    %136 = vmatpush.msra.mxu0 %v135
    %v137 = vand.u32 %v47, 4294901760
    %v138 = vsub.f32 %v47, %v137
    %v139 = vand.u32 %v138, 4294901760
    %v140 = vsub.f32 %v138, %v139
    %v141 = vand.u32 %v140, 4294901760
    %142 = vmatpush.msra.mxu0 %v141
    %v143 = vand.u32 %v46, 4294901760
    %v144 = vsub.f32 %v46, %v143
    %v145 = vand.u32 %v144, 4294901760
    %v146 = vsub.f32 %v144, %v145
    %v147 = vand.u32 %v146, 4294901760
    %148 = vmatpush.msra.mxu0 %v147
    %v149 = vand.u32 %v45, 4294901760
    %v150 = vsub.f32 %v45, %v149
    %v151 = vand.u32 %v150, 4294901760
    %v152 = vsub.f32 %v150, %v151
    %v153 = vand.u32 %v152, 4294901760
    %154 = vmatpush.msra.mxu0 %v153
    %v155 = vand.u32 %v88, 4294901760
    %156 = vmatmul.f32.gmra.mxu0 %v155
    %v157 = vpop.f32.mrf.mxu0
    %v158 = vadd.f32 %v117, %v157
    %159 = vdwg.mxu0
    %160 = vmatpush.msra.mxu0 0.0
    %161 = vmatpush.msra.mxu0 0.0
    %162 = vmatpush.msra.mxu0 0.0
    %163 = vmatpush.msra.mxu0 0.0
    %164 = vmatpush.msra.mxu0 0.0
    %165 = vmatpush.msra.mxu0 0.0
    %166 = vmatpush.msra.mxu0 0.0
    %167 = vmatpush.msra.mxu0 0.0
    %168 = vmatpush.msra.mxu0 0.0
    %169 = vmatpush.msra.mxu0 0.0
    %170 = vmatpush.msra.mxu0 0.0
    %171 = vmatpush.msra.mxu0 0.0
    %v172 = vand.u32 %v48, 4294901760
    %v173 = vsub.f32 %v48, %v172
    %174 = vmatpush.msra.mxu0 %v173
    %v175 = vand.u32 %v47, 4294901760
    %v176 = vsub.f32 %v47, %v175
    %177 = vmatpush.msra.mxu0 %v176
    %v178 = vand.u32 %v46, 4294901760
    %v179 = vsub.f32 %v46, %v178
    %180 = vmatpush.msra.mxu0 %v179
    %v181 = vand.u32 %v45, 4294901760
    %v182 = vsub.f32 %v45, %v181
    %183 = vmatpush.msra.mxu0 %v182
    %v184 = vand.u32 %v88, 4294901760
    %v185 = vsub.f32 %v88, %v184
    %186 = vmatmul.f32.gmra.mxu0 %v185
    %v187 = vpop.f32.mrf.mxu0
    %v188 = vadd.f32 %v158, %v187
    %189 = vdwg.mxu0
    %190 = vmatpush.msra.mxu0 0.0
    %191 = vmatpush.msra.mxu0 0.0
    %192 = vmatpush.msra.mxu0 0.0
    %193 = vmatpush.msra.mxu0 0.0
    %194 = vmatpush.msra.mxu0 0.0
    %195 = vmatpush.msra.mxu0 0.0
    %196 = vmatpush.msra.mxu0 0.0
    %197 = vmatpush.msra.mxu0 0.0
    %198 = vmatpush.msra.mxu0 0.0
    %199 = vmatpush.msra.mxu0 0.0
    %200 = vmatpush.msra.mxu0 0.0
    %201 = vmatpush.msra.mxu0 0.0
    %v202 = vand.u32 %v48, 4294901760
    %203 = vmatpush.msra.mxu0 %v202
    %v204 = vand.u32 %v47, 4294901760
    %205 = vmatpush.msra.mxu0 %v204
    %v206 = vand.u32 %v46, 4294901760
    %207 = vmatpush.msra.mxu0 %v206
    %v208 = vand.u32 %v45, 4294901760
    %209 = vmatpush.msra.mxu0 %v208
    %v210 = vand.u32 %v88, 4294901760
    %v211 = vsub.f32 %v88, %v210
    %v212 = vand.u32 %v211, 4294901760
    %213 = vmatmul.f32.gmra.mxu0 %v212
    %v214 = vpop.f32.mrf.mxu0
    %v215 = vadd.f32 %v188, %v214
    %216 = vdwg.mxu0
    %217 = vmatpush.msra.mxu0 0.0
    %218 = vmatpush.msra.mxu0 0.0
    %219 = vmatpush.msra.mxu0 0.0
    %220 = vmatpush.msra.mxu0 0.0
    %221 = vmatpush.msra.mxu0 0.0
    %222 = vmatpush.msra.mxu0 0.0
    %223 = vmatpush.msra.mxu0 0.0
    %224 = vmatpush.msra.mxu0 0.0
    %225 = vmatpush.msra.mxu0 0.0
    %226 = vmatpush.msra.mxu0 0.0
    %227 = vmatpush.msra.mxu0 0.0
    %228 = vmatpush.msra.mxu0 0.0
    %v229 = vand.u32 %v48, 4294901760
    %v230 = vsub.f32 %v48, %v229
    %v231 = vand.u32 %v230, 4294901760
    %232 = vmatpush.msra.mxu0 %v231
    %v233 = vand.u32 %v47, 4294901760
    %v234 = vsub.f32 %v47, %v233
    %v235 = vand.u32 %v234, 4294901760
    %236 = vmatpush.msra.mxu0 %v235
    %v237 = vand.u32 %v46, 4294901760
    %v238 = vsub.f32 %v46, %v237
    %v239 = vand.u32 %v238, 4294901760
    %240 = vmatpush.msra.mxu0 %v239
    %v241 = vand.u32 %v45, 4294901760
    %v242 = vsub.f32 %v45, %v241
    %v243 = vand.u32 %v242, 4294901760
    %244 = vmatpush.msra.mxu0 %v243
    %v245 = vand.u32 %v88, 4294901760
    %246 = vmatmul.f32.gmra.mxu0 %v245
    %v247 = vpop.f32.mrf.mxu0
    %v248 = vadd.f32 %v215, %v247
    %249 = vdwg.mxu0
    %250 = vmatpush.msra.mxu0 0.0
    %251 = vmatpush.msra.mxu0 0.0
    %252 = vmatpush.msra.mxu0 0.0
    %253 = vmatpush.msra.mxu0 0.0
    %254 = vmatpush.msra.mxu0 0.0
    %255 = vmatpush.msra.mxu0 0.0
    %256 = vmatpush.msra.mxu0 0.0
    %257 = vmatpush.msra.mxu0 0.0
    %258 = vmatpush.msra.mxu0 0.0
    %259 = vmatpush.msra.mxu0 0.0
    %260 = vmatpush.msra.mxu0 0.0
    %261 = vmatpush.msra.mxu0 0.0
    %v262 = vand.u32 %v48, 4294901760
    %263 = vmatpush.msra.mxu0 %v262
    %v264 = vand.u32 %v47, 4294901760
    %265 = vmatpush.msra.mxu0 %v264
    %v266 = vand.u32 %v46, 4294901760
    %267 = vmatpush.msra.mxu0 %v266
    %v268 = vand.u32 %v45, 4294901760
    %269 = vmatpush.msra.mxu0 %v268
    %v270 = vand.u32 %v88, 4294901760
    %271 = vmatmul.f32.gmra.mxu0 %v270
    %v272 = vpop.f32.mrf.mxu0
    %v273 = vadd.f32 %v248, %v272
    %274 = vdwg.mxu0
    %276 = vrot.lane.b32.xlu0 %v273, 96
    %v277 = vpop.permute.xlu0 %276
    %vm278 = vcmask 64512
    %v279 = vsel %vm278, %v273, 0
    %v281 = vsel %vm278, %v277, 0
    %283 = vmatpush.xpose.msra.mxu0 0.0
    %284 = vmatpush.xpose.msra.mxu0 0.0
    %285 = vmatpush.xpose.msra.mxu0 0.0
    %286 = vmatpush.xpose.msra.mxu0 0.0
    %287 = vmatpush.xpose.msra.mxu0 0.0
    %288 = vmatpush.xpose.msra.mxu0 0.0
    %289 = vmatpush.xpose.msra.mxu0 0.0
    %290 = vmatpush.xpose.msra.mxu0 0.0
    %291 = vmatpush.xpose.msra.mxu0 0.0
    %292 = vmatpush.xpose.msra.mxu0 0.0
    %293 = vmatpush.xpose.msra.mxu0 0.0
    %294 = vmatpush.xpose.msra.mxu0 0.0
    %295 = vmatpush.xpose.msra.mxu0 0.0
    %296 = vmatpush.xpose.msra.mxu0 0.0
    %297 = vmatpush.xpose.msra.mxu0 0.0
    %v298 = vand.u32 %v281, 4294901760
    %299 = vmatpush.xpose.msra.mxu0 %v298
    %v300 = vand.u32 %v279, 4294901760
    %v301 = vsub.f32 %v279, %v300
    %v302 = vand.u32 %v301, 4294901760
    %v303 = vsub.f32 %v301, %v302
    %v304 = vand.u32 %v303, 4294901760
    %305 = vmatmul.f32.gmra.mxu0 %v304
    %v306 = vpop.f32.mrf.mxu0
    %v307 = vadd.f32 0.0, %v306
    %308 = vdwg.mxu0
    %309 = vmatpush.xpose.msra.mxu0 0.0
    %310 = vmatpush.xpose.msra.mxu0 0.0
    %311 = vmatpush.xpose.msra.mxu0 0.0
    %312 = vmatpush.xpose.msra.mxu0 0.0
    %313 = vmatpush.xpose.msra.mxu0 0.0
    %314 = vmatpush.xpose.msra.mxu0 0.0
    %315 = vmatpush.xpose.msra.mxu0 0.0
    %316 = vmatpush.xpose.msra.mxu0 0.0
    %317 = vmatpush.xpose.msra.mxu0 0.0
    %318 = vmatpush.xpose.msra.mxu0 0.0
    %319 = vmatpush.xpose.msra.mxu0 0.0
    %320 = vmatpush.xpose.msra.mxu0 0.0
    %321 = vmatpush.xpose.msra.mxu0 0.0
    %322 = vmatpush.xpose.msra.mxu0 0.0
    %323 = vmatpush.xpose.msra.mxu0 0.0
    %v324 = vand.u32 %v281, 4294901760
    %v325 = vsub.f32 %v281, %v324
    %v326 = vand.u32 %v325, 4294901760
    %v327 = vsub.f32 %v325, %v326
    %v328 = vand.u32 %v327, 4294901760
    %329 = vmatpush.xpose.msra.mxu0 %v328
    %v330 = vand.u32 %v279, 4294901760
    %331 = vmatmul.f32.gmra.mxu0 %v330
    %v332 = vpop.f32.mrf.mxu0
    %v333 = vadd.f32 %v307, %v332
    %334 = vdwg.mxu0
    %335 = vmatpush.xpose.msra.mxu0 0.0
    %336 = vmatpush.xpose.msra.mxu0 0.0
    %337 = vmatpush.xpose.msra.mxu0 0.0
    %338 = vmatpush.xpose.msra.mxu0 0.0
    %339 = vmatpush.xpose.msra.mxu0 0.0
    %340 = vmatpush.xpose.msra.mxu0 0.0
    %341 = vmatpush.xpose.msra.mxu0 0.0
    %342 = vmatpush.xpose.msra.mxu0 0.0
    %343 = vmatpush.xpose.msra.mxu0 0.0
    %344 = vmatpush.xpose.msra.mxu0 0.0
    %345 = vmatpush.xpose.msra.mxu0 0.0
    %346 = vmatpush.xpose.msra.mxu0 0.0
    %347 = vmatpush.xpose.msra.mxu0 0.0
    %348 = vmatpush.xpose.msra.mxu0 0.0
    %349 = vmatpush.xpose.msra.mxu0 0.0
    %v350 = vand.u32 %v281, 4294901760
    %v351 = vsub.f32 %v281, %v350
    %352 = vmatpush.xpose.msra.mxu0 %v351
    %v353 = vand.u32 %v279, 4294901760
    %v354 = vsub.f32 %v279, %v353
    %355 = vmatmul.f32.gmra.mxu0 %v354
    %v356 = vpop.f32.mrf.mxu0
    %v357 = vadd.f32 %v333, %v356
    %358 = vdwg.mxu0
    %359 = vmatpush.xpose.msra.mxu0 0.0
    %360 = vmatpush.xpose.msra.mxu0 0.0
    %361 = vmatpush.xpose.msra.mxu0 0.0
    %362 = vmatpush.xpose.msra.mxu0 0.0
    %363 = vmatpush.xpose.msra.mxu0 0.0
    %364 = vmatpush.xpose.msra.mxu0 0.0
    %365 = vmatpush.xpose.msra.mxu0 0.0
    %366 = vmatpush.xpose.msra.mxu0 0.0
    %367 = vmatpush.xpose.msra.mxu0 0.0
    %368 = vmatpush.xpose.msra.mxu0 0.0
    %369 = vmatpush.xpose.msra.mxu0 0.0
    %370 = vmatpush.xpose.msra.mxu0 0.0
    %371 = vmatpush.xpose.msra.mxu0 0.0
    %372 = vmatpush.xpose.msra.mxu0 0.0
    %373 = vmatpush.xpose.msra.mxu0 0.0
    %v374 = vand.u32 %v281, 4294901760
    %375 = vmatpush.xpose.msra.mxu0 %v374
    %v376 = vand.u32 %v279, 4294901760
    %v377 = vsub.f32 %v279, %v376
    %v378 = vand.u32 %v377, 4294901760
    %379 = vmatmul.f32.gmra.mxu0 %v378
    %v380 = vpop.f32.mrf.mxu0
    %v381 = vadd.f32 %v357, %v380
    %382 = vdwg.mxu0
    %383 = vmatpush.xpose.msra.mxu0 0.0
    %384 = vmatpush.xpose.msra.mxu0 0.0
    %385 = vmatpush.xpose.msra.mxu0 0.0
    %386 = vmatpush.xpose.msra.mxu0 0.0
    %387 = vmatpush.xpose.msra.mxu0 0.0
    %388 = vmatpush.xpose.msra.mxu0 0.0
    %389 = vmatpush.xpose.msra.mxu0 0.0
    %390 = vmatpush.xpose.msra.mxu0 0.0
    %391 = vmatpush.xpose.msra.mxu0 0.0
    %392 = vmatpush.xpose.msra.mxu0 0.0
    %393 = vmatpush.xpose.msra.mxu0 0.0
    %394 = vmatpush.xpose.msra.mxu0 0.0
    %395 = vmatpush.xpose.msra.mxu0 0.0
    %396 = vmatpush.xpose.msra.mxu0 0.0
    %397 = vmatpush.xpose.msra.mxu0 0.0
    %v398 = vand.u32 %v281, 4294901760
    %v399 = vsub.f32 %v281, %v398
    %v400 = vand.u32 %v399, 4294901760
    %401 = vmatpush.xpose.msra.mxu0 %v400
    %v402 = vand.u32 %v279, 4294901760
    %403 = vmatmul.f32.gmra.mxu0 %v402
    %v404 = vpop.f32.mrf.mxu0
    %v405 = vadd.f32 %v381, %v404
    %406 = vdwg.mxu0
    %407 = vmatpush.xpose.msra.mxu0 0.0
    %408 = vmatpush.xpose.msra.mxu0 0.0
    %409 = vmatpush.xpose.msra.mxu0 0.0
    %410 = vmatpush.xpose.msra.mxu0 0.0
    %411 = vmatpush.xpose.msra.mxu0 0.0
    %412 = vmatpush.xpose.msra.mxu0 0.0
    %413 = vmatpush.xpose.msra.mxu0 0.0
    %414 = vmatpush.xpose.msra.mxu0 0.0
    %415 = vmatpush.xpose.msra.mxu0 0.0
    %416 = vmatpush.xpose.msra.mxu0 0.0
    %417 = vmatpush.xpose.msra.mxu0 0.0
    %418 = vmatpush.xpose.msra.mxu0 0.0
    %419 = vmatpush.xpose.msra.mxu0 0.0
    %420 = vmatpush.xpose.msra.mxu0 0.0
    %421 = vmatpush.xpose.msra.mxu0 0.0
    %v422 = vand.u32 %v281, 4294901760
    %423 = vmatpush.xpose.msra.mxu0 %v422
    %v424 = vand.u32 %v279, 4294901760
    %425 = vmatmul.f32.gmra.mxu0 %v424
    %v426 = vpop.f32.mrf.mxu0
    %v427 = vadd.f32 %v405, %v426
    %428 = vdwg.mxu0
    %v429 = vsel %vm278, %v427, -inf
    %430 = vmax.xlane.f32.xlu0 %v429
    %v431 = vpop.xlane.xlu0 %430
    %v432 = vsub.f32 %v427, %v431
    %v433 = vmul.f32 %v432, 1.442695
    %v434 = vpow.pop %v433
    %v435 = vsel %vm278, %v434, 0.0
    %436 = vadd.xlane.f32.xlu0 %v435
    %v437 = vpop.xlane.xlu0 %436
    %v438 = vrcp.pop %v437
    %v439 = vmul.f32 %v437, %v438
    %v440 = vsub.f32 1.0, %v439
    %v441 = vmul.f32 %v438, %v440
    %v442 = vadd.f32 %v438, %v441
    %vm443 = vweird.f32 %v437
    %vm444 = vweird.f32 %v438
    %vm445 = vmor %vm443, %vm444
    %v446 = vsel %vm445, %v438, %v442
    %v447 = vand.u32 2147483647, %v437
    %vm448 = vcmp.eq.f32.partialorder %v447, 8.507059e+37
    %v449 = vand.u32 %v437, 2147483648
    %v450 = vor.u32 1.1754944e-38, %v449
    %v451 = vsel %vm448, %v450, %v446
    %v452 = vmul.f32 %v434, %v451
    %453 = vrot.lane.b32.xlu0 %v273, 64
    %v454 = vpop.permute.xlu0 %453
    %v457 = vsel %vm278, %v452, 0
    %459 = vmatpush.msra.mxu0 0.0
    %460 = vmatpush.msra.mxu0 0.0
    %461 = vmatpush.msra.mxu0 0.0
    %462 = vmatpush.msra.mxu0 0.0
    %463 = vmatpush.msra.mxu0 0.0
    %464 = vmatpush.msra.mxu0 0.0
    %465 = vmatpush.msra.mxu0 0.0
    %466 = vmatpush.msra.mxu0 0.0
    %467 = vmatpush.msra.mxu0 0.0
    %468 = vmatpush.msra.mxu0 0.0
    %469 = vmatpush.msra.mxu0 0.0
    %470 = vmatpush.msra.mxu0 0.0
    %471 = vmatpush.msra.mxu0 0.0
    %472 = vmatpush.msra.mxu0 0.0
    %473 = vmatpush.msra.mxu0 0.0
    %v474 = vand.u32 %v454, 4294901760
    %475 = vmatpush.msra.mxu0 %v474
    %v476 = vand.u32 %v457, 4294901760
    %v477 = vsub.f32 %v457, %v476
    %v478 = vand.u32 %v477, 4294901760
    %v479 = vsub.f32 %v477, %v478
    %v480 = vand.u32 %v479, 4294901760
    %481 = vmatmul.f32.gmra.mxu0 %v480
    %v482 = vpop.f32.mrf.mxu0
    %v483 = vadd.f32 0.0, %v482
    %484 = vdwg.mxu0
    %485 = vmatpush.msra.mxu0 0.0
    %486 = vmatpush.msra.mxu0 0.0
    %487 = vmatpush.msra.mxu0 0.0
    %488 = vmatpush.msra.mxu0 0.0
    %489 = vmatpush.msra.mxu0 0.0
    %490 = vmatpush.msra.mxu0 0.0
    %491 = vmatpush.msra.mxu0 0.0
    %492 = vmatpush.msra.mxu0 0.0
    %493 = vmatpush.msra.mxu0 0.0
    %494 = vmatpush.msra.mxu0 0.0
    %495 = vmatpush.msra.mxu0 0.0
    %496 = vmatpush.msra.mxu0 0.0
    %497 = vmatpush.msra.mxu0 0.0
    %498 = vmatpush.msra.mxu0 0.0
    %499 = vmatpush.msra.mxu0 0.0
    %v500 = vand.u32 %v454, 4294901760
    %v501 = vsub.f32 %v454, %v500
    %v502 = vand.u32 %v501, 4294901760
    %v503 = vsub.f32 %v501, %v502
    %v504 = vand.u32 %v503, 4294901760
    %505 = vmatpush.msra.mxu0 %v504
    %v506 = vand.u32 %v457, 4294901760
    %507 = vmatmul.f32.gmra.mxu0 %v506
    %v508 = vpop.f32.mrf.mxu0
    %v509 = vadd.f32 %v483, %v508
    %510 = vdwg.mxu0
    %511 = vmatpush.msra.mxu0 0.0
    %512 = vmatpush.msra.mxu0 0.0
    %513 = vmatpush.msra.mxu0 0.0
    %514 = vmatpush.msra.mxu0 0.0
    %515 = vmatpush.msra.mxu0 0.0
    %516 = vmatpush.msra.mxu0 0.0
    %517 = vmatpush.msra.mxu0 0.0
    %518 = vmatpush.msra.mxu0 0.0
    %519 = vmatpush.msra.mxu0 0.0
    %520 = vmatpush.msra.mxu0 0.0
    %521 = vmatpush.msra.mxu0 0.0
    %522 = vmatpush.msra.mxu0 0.0
    %523 = vmatpush.msra.mxu0 0.0
    %524 = vmatpush.msra.mxu0 0.0
    %525 = vmatpush.msra.mxu0 0.0
    %v526 = vand.u32 %v454, 4294901760
    %v527 = vsub.f32 %v454, %v526
    %528 = vmatpush.msra.mxu0 %v527
    %v529 = vand.u32 %v457, 4294901760
    %v530 = vsub.f32 %v457, %v529
    %531 = vmatmul.f32.gmra.mxu0 %v530
    %v532 = vpop.f32.mrf.mxu0
    %v533 = vadd.f32 %v509, %v532
    %534 = vdwg.mxu0
    %535 = vmatpush.msra.mxu0 0.0
    %536 = vmatpush.msra.mxu0 0.0
    %537 = vmatpush.msra.mxu0 0.0
    %538 = vmatpush.msra.mxu0 0.0
    %539 = vmatpush.msra.mxu0 0.0
    %540 = vmatpush.msra.mxu0 0.0
    %541 = vmatpush.msra.mxu0 0.0
    %542 = vmatpush.msra.mxu0 0.0
    %543 = vmatpush.msra.mxu0 0.0
    %544 = vmatpush.msra.mxu0 0.0
    %545 = vmatpush.msra.mxu0 0.0
    %546 = vmatpush.msra.mxu0 0.0
    %547 = vmatpush.msra.mxu0 0.0
    %548 = vmatpush.msra.mxu0 0.0
    %549 = vmatpush.msra.mxu0 0.0
    %v550 = vand.u32 %v454, 4294901760
    %551 = vmatpush.msra.mxu0 %v550
    %v552 = vand.u32 %v457, 4294901760
    %v553 = vsub.f32 %v457, %v552
    %v554 = vand.u32 %v553, 4294901760
    %555 = vmatmul.f32.gmra.mxu0 %v554
    %v556 = vpop.f32.mrf.mxu0
    %v557 = vadd.f32 %v533, %v556
    %558 = vdwg.mxu0
    %559 = vmatpush.msra.mxu0 0.0
    %560 = vmatpush.msra.mxu0 0.0
    %561 = vmatpush.msra.mxu0 0.0
    %562 = vmatpush.msra.mxu0 0.0
    %563 = vmatpush.msra.mxu0 0.0
    %564 = vmatpush.msra.mxu0 0.0
    %565 = vmatpush.msra.mxu0 0.0
    %566 = vmatpush.msra.mxu0 0.0
    %567 = vmatpush.msra.mxu0 0.0
    %568 = vmatpush.msra.mxu0 0.0
    %569 = vmatpush.msra.mxu0 0.0
    %570 = vmatpush.msra.mxu0 0.0
    %571 = vmatpush.msra.mxu0 0.0
    %572 = vmatpush.msra.mxu0 0.0
    %573 = vmatpush.msra.mxu0 0.0
    %v574 = vand.u32 %v454, 4294901760
    %v575 = vsub.f32 %v454, %v574
    %v576 = vand.u32 %v575, 4294901760
    %577 = vmatpush.msra.mxu0 %v576
    %v578 = vand.u32 %v457, 4294901760
    %579 = vmatmul.f32.gmra.mxu0 %v578
    %v580 = vpop.f32.mrf.mxu0
    %v581 = vadd.f32 %v557, %v580
    %582 = vdwg.mxu0
    %583 = vmatpush.msra.mxu0 0.0
    %584 = vmatpush.msra.mxu0 0.0
    %585 = vmatpush.msra.mxu0 0.0
    %586 = vmatpush.msra.mxu0 0.0
    %587 = vmatpush.msra.mxu0 0.0
    %588 = vmatpush.msra.mxu0 0.0
    %589 = vmatpush.msra.mxu0 0.0
    %590 = vmatpush.msra.mxu0 0.0
    %591 = vmatpush.msra.mxu0 0.0
    %592 = vmatpush.msra.mxu0 0.0
    %593 = vmatpush.msra.mxu0 0.0
    %594 = vmatpush.msra.mxu0 0.0
    %595 = vmatpush.msra.mxu0 0.0
    %596 = vmatpush.msra.mxu0 0.0
    %597 = vmatpush.msra.mxu0 0.0
    %v598 = vand.u32 %v454, 4294901760
    %599 = vmatpush.msra.mxu0 %v598
    %v600 = vand.u32 %v457, 4294901760
    %601 = vmatmul.f32.gmra.mxu0 %v600
    %v602 = vpop.f32.mrf.mxu0
    %v603 = vadd.f32 %v581, %v602
    %604 = vdwg.mxu0
    %605 = vrot.lane.b32.xlu0 %v273, 120
    %v606 = vpop.permute.xlu0 %605
    %607 = vrot.lane.b32.xlu0 %v273, 88
    %v608 = vpop.permute.xlu0 %607
    %v609 = vsel %vm278, %v606, 0
    %v611 = vsel %vm278, %v608, 0
    %613 = vmatpush.xpose.msra.mxu0 0.0
    %614 = vmatpush.xpose.msra.mxu0 0.0
    %615 = vmatpush.xpose.msra.mxu0 0.0
    %616 = vmatpush.xpose.msra.mxu0 0.0
    %617 = vmatpush.xpose.msra.mxu0 0.0
    %618 = vmatpush.xpose.msra.mxu0 0.0
    %619 = vmatpush.xpose.msra.mxu0 0.0
    %620 = vmatpush.xpose.msra.mxu0 0.0
    %621 = vmatpush.xpose.msra.mxu0 0.0
    %622 = vmatpush.xpose.msra.mxu0 0.0
    %623 = vmatpush.xpose.msra.mxu0 0.0
    %624 = vmatpush.xpose.msra.mxu0 0.0
    %625 = vmatpush.xpose.msra.mxu0 0.0
    %626 = vmatpush.xpose.msra.mxu0 0.0
    %627 = vmatpush.xpose.msra.mxu0 0.0
    %v628 = vand.u32 %v611, 4294901760
    %629 = vmatpush.xpose.msra.mxu0 %v628
    %v630 = vand.u32 %v609, 4294901760
    %v631 = vsub.f32 %v609, %v630
    %v632 = vand.u32 %v631, 4294901760
    %v633 = vsub.f32 %v631, %v632
    %v634 = vand.u32 %v633, 4294901760
    %635 = vmatmul.f32.gmra.mxu0 %v634
    %v636 = vpop.f32.mrf.mxu0
    %v637 = vadd.f32 0.0, %v636
    %638 = vdwg.mxu0
    %639 = vmatpush.xpose.msra.mxu0 0.0
    %640 = vmatpush.xpose.msra.mxu0 0.0
    %641 = vmatpush.xpose.msra.mxu0 0.0
    %642 = vmatpush.xpose.msra.mxu0 0.0
    %643 = vmatpush.xpose.msra.mxu0 0.0
    %644 = vmatpush.xpose.msra.mxu0 0.0
    %645 = vmatpush.xpose.msra.mxu0 0.0
    %646 = vmatpush.xpose.msra.mxu0 0.0
    %647 = vmatpush.xpose.msra.mxu0 0.0
    %648 = vmatpush.xpose.msra.mxu0 0.0
    %649 = vmatpush.xpose.msra.mxu0 0.0
    %650 = vmatpush.xpose.msra.mxu0 0.0
    %651 = vmatpush.xpose.msra.mxu0 0.0
    %652 = vmatpush.xpose.msra.mxu0 0.0
    %653 = vmatpush.xpose.msra.mxu0 0.0
    %v654 = vand.u32 %v611, 4294901760
    %v655 = vsub.f32 %v611, %v654
    %v656 = vand.u32 %v655, 4294901760
    %v657 = vsub.f32 %v655, %v656
    %v658 = vand.u32 %v657, 4294901760
    %659 = vmatpush.xpose.msra.mxu0 %v658
    %v660 = vand.u32 %v609, 4294901760
    %661 = vmatmul.f32.gmra.mxu0 %v660
    %v662 = vpop.f32.mrf.mxu0
    %v663 = vadd.f32 %v637, %v662
    %664 = vdwg.mxu0
    %665 = vmatpush.xpose.msra.mxu0 0.0
    %666 = vmatpush.xpose.msra.mxu0 0.0
    %667 = vmatpush.xpose.msra.mxu0 0.0
    %668 = vmatpush.xpose.msra.mxu0 0.0
    %669 = vmatpush.xpose.msra.mxu0 0.0
    %670 = vmatpush.xpose.msra.mxu0 0.0
    %671 = vmatpush.xpose.msra.mxu0 0.0
    %672 = vmatpush.xpose.msra.mxu0 0.0
    %673 = vmatpush.xpose.msra.mxu0 0.0
    %674 = vmatpush.xpose.msra.mxu0 0.0
    %675 = vmatpush.xpose.msra.mxu0 0.0
    %676 = vmatpush.xpose.msra.mxu0 0.0
    %677 = vmatpush.xpose.msra.mxu0 0.0
    %678 = vmatpush.xpose.msra.mxu0 0.0
    %679 = vmatpush.xpose.msra.mxu0 0.0
    %v680 = vand.u32 %v611, 4294901760
    %v681 = vsub.f32 %v611, %v680
    %682 = vmatpush.xpose.msra.mxu0 %v681
    %v683 = vand.u32 %v609, 4294901760
    %v684 = vsub.f32 %v609, %v683
    %685 = vmatmul.f32.gmra.mxu0 %v684
    %v686 = vpop.f32.mrf.mxu0
    %v687 = vadd.f32 %v663, %v686
    %688 = vdwg.mxu0
    %689 = vmatpush.xpose.msra.mxu0 0.0
    %690 = vmatpush.xpose.msra.mxu0 0.0
    %691 = vmatpush.xpose.msra.mxu0 0.0
    %692 = vmatpush.xpose.msra.mxu0 0.0
    %693 = vmatpush.xpose.msra.mxu0 0.0
    %694 = vmatpush.xpose.msra.mxu0 0.0
    %695 = vmatpush.xpose.msra.mxu0 0.0
    %696 = vmatpush.xpose.msra.mxu0 0.0
    %697 = vmatpush.xpose.msra.mxu0 0.0
    %698 = vmatpush.xpose.msra.mxu0 0.0
    %699 = vmatpush.xpose.msra.mxu0 0.0
    %700 = vmatpush.xpose.msra.mxu0 0.0
    %701 = vmatpush.xpose.msra.mxu0 0.0
    %702 = vmatpush.xpose.msra.mxu0 0.0
    %703 = vmatpush.xpose.msra.mxu0 0.0
    %v704 = vand.u32 %v611, 4294901760
    %705 = vmatpush.xpose.msra.mxu0 %v704
    %v706 = vand.u32 %v609, 4294901760
    %v707 = vsub.f32 %v609, %v706
    %v708 = vand.u32 %v707, 4294901760
    %709 = vmatmul.f32.gmra.mxu0 %v708
    %v710 = vpop.f32.mrf.mxu0
    %v711 = vadd.f32 %v687, %v710
    %712 = vdwg.mxu0
    %713 = vmatpush.xpose.msra.mxu0 0.0
    %714 = vmatpush.xpose.msra.mxu0 0.0
    %715 = vmatpush.xpose.msra.mxu0 0.0
    %716 = vmatpush.xpose.msra.mxu0 0.0
    %717 = vmatpush.xpose.msra.mxu0 0.0
    %718 = vmatpush.xpose.msra.mxu0 0.0
    %719 = vmatpush.xpose.msra.mxu0 0.0
    %720 = vmatpush.xpose.msra.mxu0 0.0
    %721 = vmatpush.xpose.msra.mxu0 0.0
    %722 = vmatpush.xpose.msra.mxu0 0.0
    %723 = vmatpush.xpose.msra.mxu0 0.0
    %724 = vmatpush.xpose.msra.mxu0 0.0
    %725 = vmatpush.xpose.msra.mxu0 0.0
    %726 = vmatpush.xpose.msra.mxu0 0.0
    %727 = vmatpush.xpose.msra.mxu0 0.0
    %v728 = vand.u32 %v611, 4294901760
    %v729 = vsub.f32 %v611, %v728
    %v730 = vand.u32 %v729, 4294901760
    %731 = vmatpush.xpose.msra.mxu0 %v730
    %v732 = vand.u32 %v609, 4294901760
    %733 = vmatmul.f32.gmra.mxu0 %v732
    %v734 = vpop.f32.mrf.mxu0
    %v735 = vadd.f32 %v711, %v734
    %736 = vdwg.mxu0
    %737 = vmatpush.xpose.msra.mxu0 0.0
    %738 = vmatpush.xpose.msra.mxu0 0.0
    %739 = vmatpush.xpose.msra.mxu0 0.0
    %740 = vmatpush.xpose.msra.mxu0 0.0
    %741 = vmatpush.xpose.msra.mxu0 0.0
    %742 = vmatpush.xpose.msra.mxu0 0.0
    %743 = vmatpush.xpose.msra.mxu0 0.0
    %744 = vmatpush.xpose.msra.mxu0 0.0
    %745 = vmatpush.xpose.msra.mxu0 0.0
    %746 = vmatpush.xpose.msra.mxu0 0.0
    %747 = vmatpush.xpose.msra.mxu0 0.0
    %748 = vmatpush.xpose.msra.mxu0 0.0
    %749 = vmatpush.xpose.msra.mxu0 0.0
    %750 = vmatpush.xpose.msra.mxu0 0.0
    %751 = vmatpush.xpose.msra.mxu0 0.0
    %v752 = vand.u32 %v611, 4294901760
    %753 = vmatpush.xpose.msra.mxu0 %v752
    %v754 = vand.u32 %v609, 4294901760
    %755 = vmatmul.f32.gmra.mxu0 %v754
    %v756 = vpop.f32.mrf.mxu0
    %v757 = vadd.f32 %v735, %v756
    %758 = vdwg.mxu0
    %v759 = vsel %vm278, %v757, -inf
    %760 = vmax.xlane.f32.xlu0 %v759
    %v761 = vpop.xlane.xlu0 %760
    %v762 = vsub.f32 %v757, %v761
    %v763 = vmul.f32 %v762, 1.442695
    %v764 = vpow.pop %v763
    %v765 = vsel %vm278, %v764, 0.0
    %766 = vadd.xlane.f32.xlu0 %v765
    %v767 = vpop.xlane.xlu0 %766
    %v768 = vrcp.pop %v767
    %v769 = vmul.f32 %v767, %v768
    %v770 = vsub.f32 1.0, %v769
    %v771 = vmul.f32 %v768, %v770
    %v772 = vadd.f32 %v768, %v771
    %vm773 = vweird.f32 %v767
    %vm774 = vweird.f32 %v768
    %vm775 = vmor %vm773, %vm774
    %v776 = vsel %vm775, %v768, %v772
    %v777 = vand.u32 2147483647, %v767
    %vm778 = vcmp.eq.f32.partialorder %v777, 8.507059e+37
    %v779 = vand.u32 %v767, 2147483648
    %v780 = vor.u32 1.1754944e-38, %v779
    %v781 = vsel %vm778, %v780, %v776
    %v782 = vmul.f32 %v764, %v781
    %783 = vrot.lane.b32.xlu0 %v273, 56
    %v784 = vpop.permute.xlu0 %783
    %v787 = vsel %vm278, %v782, 0
    %789 = vmatpush.msra.mxu0 0.0
    %790 = vmatpush.msra.mxu0 0.0
    %791 = vmatpush.msra.mxu0 0.0
    %792 = vmatpush.msra.mxu0 0.0
    %793 = vmatpush.msra.mxu0 0.0
    %794 = vmatpush.msra.mxu0 0.0
    %795 = vmatpush.msra.mxu0 0.0
    %796 = vmatpush.msra.mxu0 0.0
    %797 = vmatpush.msra.mxu0 0.0
    %798 = vmatpush.msra.mxu0 0.0
    %799 = vmatpush.msra.mxu0 0.0
    %800 = vmatpush.msra.mxu0 0.0
    %801 = vmatpush.msra.mxu0 0.0
    %802 = vmatpush.msra.mxu0 0.0
    %803 = vmatpush.msra.mxu0 0.0
    %v804 = vand.u32 %v784, 4294901760
    %805 = vmatpush.msra.mxu0 %v804
    %v806 = vand.u32 %v787, 4294901760
    %v807 = vsub.f32 %v787, %v806
    %v808 = vand.u32 %v807, 4294901760
    %v809 = vsub.f32 %v807, %v808
    %v810 = vand.u32 %v809, 4294901760
    %811 = vmatmul.f32.gmra.mxu0 %v810
    %v812 = vpop.f32.mrf.mxu0
    %v813 = vadd.f32 0.0, %v812
    %814 = vdwg.mxu0
    %815 = vmatpush.msra.mxu0 0.0
    %816 = vmatpush.msra.mxu0 0.0
    %817 = vmatpush.msra.mxu0 0.0
    %818 = vmatpush.msra.mxu0 0.0
    %819 = vmatpush.msra.mxu0 0.0
    %820 = vmatpush.msra.mxu0 0.0
    %821 = vmatpush.msra.mxu0 0.0
    %822 = vmatpush.msra.mxu0 0.0
    %823 = vmatpush.msra.mxu0 0.0
    %824 = vmatpush.msra.mxu0 0.0
    %825 = vmatpush.msra.mxu0 0.0
    %826 = vmatpush.msra.mxu0 0.0
    %827 = vmatpush.msra.mxu0 0.0
    %828 = vmatpush.msra.mxu0 0.0
    %829 = vmatpush.msra.mxu0 0.0
    %v830 = vand.u32 %v784, 4294901760
    %v831 = vsub.f32 %v784, %v830
    %v832 = vand.u32 %v831, 4294901760
    %v833 = vsub.f32 %v831, %v832
    %v834 = vand.u32 %v833, 4294901760
    %835 = vmatpush.msra.mxu0 %v834
    %v836 = vand.u32 %v787, 4294901760
    %837 = vmatmul.f32.gmra.mxu0 %v836
    %v838 = vpop.f32.mrf.mxu0
    %v839 = vadd.f32 %v813, %v838
    %840 = vdwg.mxu0
    %841 = vmatpush.msra.mxu0 0.0
    %842 = vmatpush.msra.mxu0 0.0
    %843 = vmatpush.msra.mxu0 0.0
    %844 = vmatpush.msra.mxu0 0.0
    %845 = vmatpush.msra.mxu0 0.0
    %846 = vmatpush.msra.mxu0 0.0
    %847 = vmatpush.msra.mxu0 0.0
    %848 = vmatpush.msra.mxu0 0.0
    %849 = vmatpush.msra.mxu0 0.0
    %850 = vmatpush.msra.mxu0 0.0
    %851 = vmatpush.msra.mxu0 0.0
    %852 = vmatpush.msra.mxu0 0.0
    %853 = vmatpush.msra.mxu0 0.0
    %854 = vmatpush.msra.mxu0 0.0
    %855 = vmatpush.msra.mxu0 0.0
    %v856 = vand.u32 %v784, 4294901760
    %v857 = vsub.f32 %v784, %v856
    %858 = vmatpush.msra.mxu0 %v857
    %v859 = vand.u32 %v787, 4294901760
    %v860 = vsub.f32 %v787, %v859
    %861 = vmatmul.f32.gmra.mxu0 %v860
    %v862 = vpop.f32.mrf.mxu0
    %v863 = vadd.f32 %v839, %v862
    %864 = vdwg.mxu0
    %865 = vmatpush.msra.mxu0 0.0
    %866 = vmatpush.msra.mxu0 0.0
    %867 = vmatpush.msra.mxu0 0.0
    %868 = vmatpush.msra.mxu0 0.0
    %869 = vmatpush.msra.mxu0 0.0
    %870 = vmatpush.msra.mxu0 0.0
    %871 = vmatpush.msra.mxu0 0.0
    %872 = vmatpush.msra.mxu0 0.0
    %873 = vmatpush.msra.mxu0 0.0
    %874 = vmatpush.msra.mxu0 0.0
    %875 = vmatpush.msra.mxu0 0.0
    %876 = vmatpush.msra.mxu0 0.0
    %877 = vmatpush.msra.mxu0 0.0
    %878 = vmatpush.msra.mxu0 0.0
    %879 = vmatpush.msra.mxu0 0.0
    %v880 = vand.u32 %v784, 4294901760
    %881 = vmatpush.msra.mxu0 %v880
    %v882 = vand.u32 %v787, 4294901760
    %v883 = vsub.f32 %v787, %v882
    %v884 = vand.u32 %v883, 4294901760
    %885 = vmatmul.f32.gmra.mxu0 %v884
    %v886 = vpop.f32.mrf.mxu0
    %v887 = vadd.f32 %v863, %v886
    %888 = vdwg.mxu0
    %889 = vmatpush.msra.mxu0 0.0
    %890 = vmatpush.msra.mxu0 0.0
    %891 = vmatpush.msra.mxu0 0.0
    %892 = vmatpush.msra.mxu0 0.0
    %893 = vmatpush.msra.mxu0 0.0
    %894 = vmatpush.msra.mxu0 0.0
    %895 = vmatpush.msra.mxu0 0.0
    %896 = vmatpush.msra.mxu0 0.0
    %897 = vmatpush.msra.mxu0 0.0
    %898 = vmatpush.msra.mxu0 0.0
    %899 = vmatpush.msra.mxu0 0.0
    %900 = vmatpush.msra.mxu0 0.0
    %901 = vmatpush.msra.mxu0 0.0
    %902 = vmatpush.msra.mxu0 0.0
    %903 = vmatpush.msra.mxu0 0.0
    %v904 = vand.u32 %v784, 4294901760
    %v905 = vsub.f32 %v784, %v904
    %v906 = vand.u32 %v905, 4294901760
    %907 = vmatpush.msra.mxu0 %v906
    %v908 = vand.u32 %v787, 4294901760
    %909 = vmatmul.f32.gmra.mxu0 %v908
    %v910 = vpop.f32.mrf.mxu0
    %v911 = vadd.f32 %v887, %v910
    %912 = vdwg.mxu0
    %913 = vmatpush.msra.mxu0 0.0
    %914 = vmatpush.msra.mxu0 0.0
    %915 = vmatpush.msra.mxu0 0.0
    %916 = vmatpush.msra.mxu0 0.0
    %917 = vmatpush.msra.mxu0 0.0
    %918 = vmatpush.msra.mxu0 0.0
    %919 = vmatpush.msra.mxu0 0.0
    %920 = vmatpush.msra.mxu0 0.0
    %921 = vmatpush.msra.mxu0 0.0
    %922 = vmatpush.msra.mxu0 0.0
    %923 = vmatpush.msra.mxu0 0.0
    %924 = vmatpush.msra.mxu0 0.0
    %925 = vmatpush.msra.mxu0 0.0
    %926 = vmatpush.msra.mxu0 0.0
    %927 = vmatpush.msra.mxu0 0.0
    %v928 = vand.u32 %v784, 4294901760
    %929 = vmatpush.msra.mxu0 %v928
    %v930 = vand.u32 %v787, 4294901760
    %931 = vmatmul.f32.gmra.mxu0 %v930
    %v932 = vpop.f32.mrf.mxu0
    %v933 = vadd.f32 %v911, %v932
    %934 = vdwg.mxu0
    %935 = vrot.lane.b32.xlu0 %v273, 112
    %v936 = vpop.permute.xlu0 %935
    %937 = vrot.lane.b32.xlu0 %v273, 80
    %v938 = vpop.permute.xlu0 %937
    %v939 = vsel %vm278, %v936, 0
    %v941 = vsel %vm278, %v938, 0
    %943 = vmatpush.xpose.msra.mxu0 0.0
    %944 = vmatpush.xpose.msra.mxu0 0.0
    %945 = vmatpush.xpose.msra.mxu0 0.0
    %946 = vmatpush.xpose.msra.mxu0 0.0
    %947 = vmatpush.xpose.msra.mxu0 0.0
    %948 = vmatpush.xpose.msra.mxu0 0.0
    %949 = vmatpush.xpose.msra.mxu0 0.0
    %950 = vmatpush.xpose.msra.mxu0 0.0
    %951 = vmatpush.xpose.msra.mxu0 0.0
    %952 = vmatpush.xpose.msra.mxu0 0.0
    %953 = vmatpush.xpose.msra.mxu0 0.0
    %954 = vmatpush.xpose.msra.mxu0 0.0
    %955 = vmatpush.xpose.msra.mxu0 0.0
    %956 = vmatpush.xpose.msra.mxu0 0.0
    %957 = vmatpush.xpose.msra.mxu0 0.0
    %v958 = vand.u32 %v941, 4294901760
    %959 = vmatpush.xpose.msra.mxu0 %v958
    %v960 = vand.u32 %v939, 4294901760
    %v961 = vsub.f32 %v939, %v960
    %v962 = vand.u32 %v961, 4294901760
    %v963 = vsub.f32 %v961, %v962
    %v964 = vand.u32 %v963, 4294901760
    %965 = vmatmul.f32.gmra.mxu0 %v964
    %v966 = vpop.f32.mrf.mxu0
    %v967 = vadd.f32 0.0, %v966
    %968 = vdwg.mxu0
    %969 = vmatpush.xpose.msra.mxu0 0.0
    %970 = vmatpush.xpose.msra.mxu0 0.0
    %971 = vmatpush.xpose.msra.mxu0 0.0
    %972 = vmatpush.xpose.msra.mxu0 0.0
    %973 = vmatpush.xpose.msra.mxu0 0.0
    %974 = vmatpush.xpose.msra.mxu0 0.0
    %975 = vmatpush.xpose.msra.mxu0 0.0
    %976 = vmatpush.xpose.msra.mxu0 0.0
    %977 = vmatpush.xpose.msra.mxu0 0.0
    %978 = vmatpush.xpose.msra.mxu0 0.0
    %979 = vmatpush.xpose.msra.mxu0 0.0
    %980 = vmatpush.xpose.msra.mxu0 0.0
    %981 = vmatpush.xpose.msra.mxu0 0.0
    %982 = vmatpush.xpose.msra.mxu0 0.0
    %983 = vmatpush.xpose.msra.mxu0 0.0
    %v984 = vand.u32 %v941, 4294901760
    %v985 = vsub.f32 %v941, %v984
    %v986 = vand.u32 %v985, 4294901760
    %v987 = vsub.f32 %v985, %v986
    %v988 = vand.u32 %v987, 4294901760
    %989 = vmatpush.xpose.msra.mxu0 %v988
    %v990 = vand.u32 %v939, 4294901760
    %991 = vmatmul.f32.gmra.mxu0 %v990
    %v992 = vpop.f32.mrf.mxu0
    %v993 = vadd.f32 %v967, %v992
    %994 = vdwg.mxu0
    %995 = vmatpush.xpose.msra.mxu0 0.0
    %996 = vmatpush.xpose.msra.mxu0 0.0
    %997 = vmatpush.xpose.msra.mxu0 0.0
    %998 = vmatpush.xpose.msra.mxu0 0.0
    %999 = vmatpush.xpose.msra.mxu0 0.0
    %1000 = vmatpush.xpose.msra.mxu0 0.0
    %1001 = vmatpush.xpose.msra.mxu0 0.0
    %1002 = vmatpush.xpose.msra.mxu0 0.0
    %1003 = vmatpush.xpose.msra.mxu0 0.0
    %1004 = vmatpush.xpose.msra.mxu0 0.0
    %1005 = vmatpush.xpose.msra.mxu0 0.0
    %1006 = vmatpush.xpose.msra.mxu0 0.0
    %1007 = vmatpush.xpose.msra.mxu0 0.0
    %1008 = vmatpush.xpose.msra.mxu0 0.0
    %1009 = vmatpush.xpose.msra.mxu0 0.0
    %v1010 = vand.u32 %v941, 4294901760
    %v1011 = vsub.f32 %v941, %v1010
    %1012 = vmatpush.xpose.msra.mxu0 %v1011
    %v1013 = vand.u32 %v939, 4294901760
    %v1014 = vsub.f32 %v939, %v1013
    %1015 = vmatmul.f32.gmra.mxu0 %v1014
    %v1016 = vpop.f32.mrf.mxu0
    %v1017 = vadd.f32 %v993, %v1016
    %1018 = vdwg.mxu0
    %1019 = vmatpush.xpose.msra.mxu0 0.0
    %1020 = vmatpush.xpose.msra.mxu0 0.0
    %1021 = vmatpush.xpose.msra.mxu0 0.0
    %1022 = vmatpush.xpose.msra.mxu0 0.0
    %1023 = vmatpush.xpose.msra.mxu0 0.0
    %1024 = vmatpush.xpose.msra.mxu0 0.0
    %1025 = vmatpush.xpose.msra.mxu0 0.0
    %1026 = vmatpush.xpose.msra.mxu0 0.0
    %1027 = vmatpush.xpose.msra.mxu0 0.0
    %1028 = vmatpush.xpose.msra.mxu0 0.0
    %1029 = vmatpush.xpose.msra.mxu0 0.0
    %1030 = vmatpush.xpose.msra.mxu0 0.0
    %1031 = vmatpush.xpose.msra.mxu0 0.0
    %1032 = vmatpush.xpose.msra.mxu0 0.0
    %1033 = vmatpush.xpose.msra.mxu0 0.0
    %v1034 = vand.u32 %v941, 4294901760
    %1035 = vmatpush.xpose.msra.mxu0 %v1034
    %v1036 = vand.u32 %v939, 4294901760
    %v1037 = vsub.f32 %v939, %v1036
    %v1038 = vand.u32 %v1037, 4294901760
    %1039 = vmatmul.f32.gmra.mxu0 %v1038
    %v1040 = vpop.f32.mrf.mxu0
    %v1041 = vadd.f32 %v1017, %v1040
    %1042 = vdwg.mxu0
    %1043 = vmatpush.xpose.msra.mxu0 0.0
    %1044 = vmatpush.xpose.msra.mxu0 0.0
    %1045 = vmatpush.xpose.msra.mxu0 0.0
    %1046 = vmatpush.xpose.msra.mxu0 0.0
    %1047 = vmatpush.xpose.msra.mxu0 0.0
    %1048 = vmatpush.xpose.msra.mxu0 0.0
    %1049 = vmatpush.xpose.msra.mxu0 0.0
    %1050 = vmatpush.xpose.msra.mxu0 0.0
    %1051 = vmatpush.xpose.msra.mxu0 0.0
    %1052 = vmatpush.xpose.msra.mxu0 0.0
    %1053 = vmatpush.xpose.msra.mxu0 0.0
    %1054 = vmatpush.xpose.msra.mxu0 0.0
    %1055 = vmatpush.xpose.msra.mxu0 0.0
    %1056 = vmatpush.xpose.msra.mxu0 0.0
    %1057 = vmatpush.xpose.msra.mxu0 0.0
    %v1058 = vand.u32 %v941, 4294901760
    %v1059 = vsub.f32 %v941, %v1058
    %v1060 = vand.u32 %v1059, 4294901760
    %1061 = vmatpush.xpose.msra.mxu0 %v1060
    %v1062 = vand.u32 %v939, 4294901760
    %1063 = vmatmul.f32.gmra.mxu0 %v1062
    %v1064 = vpop.f32.mrf.mxu0
    %v1065 = vadd.f32 %v1041, %v1064
    %1066 = vdwg.mxu0
    %1067 = vmatpush.xpose.msra.mxu0 0.0
    %1068 = vmatpush.xpose.msra.mxu0 0.0
    %1069 = vmatpush.xpose.msra.mxu0 0.0
    %1070 = vmatpush.xpose.msra.mxu0 0.0
    %1071 = vmatpush.xpose.msra.mxu0 0.0
    %1072 = vmatpush.xpose.msra.mxu0 0.0
    %1073 = vmatpush.xpose.msra.mxu0 0.0
    %1074 = vmatpush.xpose.msra.mxu0 0.0
    %1075 = vmatpush.xpose.msra.mxu0 0.0
    %1076 = vmatpush.xpose.msra.mxu0 0.0
    %1077 = vmatpush.xpose.msra.mxu0 0.0
    %1078 = vmatpush.xpose.msra.mxu0 0.0
    %1079 = vmatpush.xpose.msra.mxu0 0.0
    %1080 = vmatpush.xpose.msra.mxu0 0.0
    %1081 = vmatpush.xpose.msra.mxu0 0.0
    %v1082 = vand.u32 %v941, 4294901760
    %1083 = vmatpush.xpose.msra.mxu0 %v1082
    %v1084 = vand.u32 %v939, 4294901760
    %1085 = vmatmul.f32.gmra.mxu0 %v1084
    %v1086 = vpop.f32.mrf.mxu0
    %v1087 = vadd.f32 %v1065, %v1086
    %1088 = vdwg.mxu0
    %v1089 = vsel %vm278, %v1087, -inf
    %1090 = vmax.xlane.f32.xlu0 %v1089
    %v1091 = vpop.xlane.xlu0 %1090
    %v1092 = vsub.f32 %v1087, %v1091
    %v1093 = vmul.f32 %v1092, 1.442695
    %v1094 = vpow.pop %v1093
    %v1095 = vsel %vm278, %v1094, 0.0
    %1096 = vadd.xlane.f32.xlu0 %v1095
    %v1097 = vpop.xlane.xlu0 %1096
    %v1098 = vrcp.pop %v1097
    %v1099 = vmul.f32 %v1097, %v1098
    %v1100 = vsub.f32 1.0, %v1099
    %v1101 = vmul.f32 %v1098, %v1100
    %v1102 = vadd.f32 %v1098, %v1101
    %vm1103 = vweird.f32 %v1097
    %vm1104 = vweird.f32 %v1098
    %vm1105 = vmor %vm1103, %vm1104
    %v1106 = vsel %vm1105, %v1098, %v1102
    %v1107 = vand.u32 2147483647, %v1097
    %vm1108 = vcmp.eq.f32.partialorder %v1107, 8.507059e+37
    %v1109 = vand.u32 %v1097, 2147483648
    %v1110 = vor.u32 1.1754944e-38, %v1109
    %v1111 = vsel %vm1108, %v1110, %v1106
    %v1112 = vmul.f32 %v1094, %v1111
    %1113 = vrot.lane.b32.xlu0 %v273, 48
    %v1114 = vpop.permute.xlu0 %1113
    %v1117 = vsel %vm278, %v1112, 0
    %1119 = vmatpush.msra.mxu0 0.0
    %1120 = vmatpush.msra.mxu0 0.0
    %1121 = vmatpush.msra.mxu0 0.0
    %1122 = vmatpush.msra.mxu0 0.0
    %1123 = vmatpush.msra.mxu0 0.0
    %1124 = vmatpush.msra.mxu0 0.0
    %1125 = vmatpush.msra.mxu0 0.0
    %1126 = vmatpush.msra.mxu0 0.0
    %1127 = vmatpush.msra.mxu0 0.0
    %1128 = vmatpush.msra.mxu0 0.0
    %1129 = vmatpush.msra.mxu0 0.0
    %1130 = vmatpush.msra.mxu0 0.0
    %1131 = vmatpush.msra.mxu0 0.0
    %1132 = vmatpush.msra.mxu0 0.0
    %1133 = vmatpush.msra.mxu0 0.0
    %v1134 = vand.u32 %v1114, 4294901760
    %1135 = vmatpush.msra.mxu0 %v1134
    %v1136 = vand.u32 %v1117, 4294901760
    %v1137 = vsub.f32 %v1117, %v1136
    %v1138 = vand.u32 %v1137, 4294901760
    %v1139 = vsub.f32 %v1137, %v1138
    %v1140 = vand.u32 %v1139, 4294901760
    %1141 = vmatmul.f32.gmra.mxu0 %v1140
    %v1142 = vpop.f32.mrf.mxu0
    %v1143 = vadd.f32 0.0, %v1142
    %1144 = vdwg.mxu0
    %1145 = vmatpush.msra.mxu0 0.0
    %1146 = vmatpush.msra.mxu0 0.0
    %1147 = vmatpush.msra.mxu0 0.0
    %1148 = vmatpush.msra.mxu0 0.0
    %1149 = vmatpush.msra.mxu0 0.0
    %1150 = vmatpush.msra.mxu0 0.0
    %1151 = vmatpush.msra.mxu0 0.0
    %1152 = vmatpush.msra.mxu0 0.0
    %1153 = vmatpush.msra.mxu0 0.0
    %1154 = vmatpush.msra.mxu0 0.0
    %1155 = vmatpush.msra.mxu0 0.0
    %1156 = vmatpush.msra.mxu0 0.0
    %1157 = vmatpush.msra.mxu0 0.0
    %1158 = vmatpush.msra.mxu0 0.0
    %1159 = vmatpush.msra.mxu0 0.0
    %v1160 = vand.u32 %v1114, 4294901760
    %v1161 = vsub.f32 %v1114, %v1160
    %v1162 = vand.u32 %v1161, 4294901760
    %v1163 = vsub.f32 %v1161, %v1162
    %v1164 = vand.u32 %v1163, 4294901760
    %1165 = vmatpush.msra.mxu0 %v1164
    %v1166 = vand.u32 %v1117, 4294901760
    %1167 = vmatmul.f32.gmra.mxu0 %v1166
    %v1168 = vpop.f32.mrf.mxu0
    %v1169 = vadd.f32 %v1143, %v1168
    %1170 = vdwg.mxu0
    %1171 = vmatpush.msra.mxu0 0.0
    %1172 = vmatpush.msra.mxu0 0.0
    %1173 = vmatpush.msra.mxu0 0.0
    %1174 = vmatpush.msra.mxu0 0.0
    %1175 = vmatpush.msra.mxu0 0.0
    %1176 = vmatpush.msra.mxu0 0.0
    %1177 = vmatpush.msra.mxu0 0.0
    %1178 = vmatpush.msra.mxu0 0.0
    %1179 = vmatpush.msra.mxu0 0.0
    %1180 = vmatpush.msra.mxu0 0.0
    %1181 = vmatpush.msra.mxu0 0.0
    %1182 = vmatpush.msra.mxu0 0.0
    %1183 = vmatpush.msra.mxu0 0.0
    %1184 = vmatpush.msra.mxu0 0.0
    %1185 = vmatpush.msra.mxu0 0.0
    %v1186 = vand.u32 %v1114, 4294901760
    %v1187 = vsub.f32 %v1114, %v1186
    %1188 = vmatpush.msra.mxu0 %v1187
    %v1189 = vand.u32 %v1117, 4294901760
    %v1190 = vsub.f32 %v1117, %v1189
    %1191 = vmatmul.f32.gmra.mxu0 %v1190
    %v1192 = vpop.f32.mrf.mxu0
    %v1193 = vadd.f32 %v1169, %v1192
    %1194 = vdwg.mxu0
    %1195 = vmatpush.msra.mxu0 0.0
    %1196 = vmatpush.msra.mxu0 0.0
    %1197 = vmatpush.msra.mxu0 0.0
    %1198 = vmatpush.msra.mxu0 0.0
    %1199 = vmatpush.msra.mxu0 0.0
    %1200 = vmatpush.msra.mxu0 0.0
    %1201 = vmatpush.msra.mxu0 0.0
    %1202 = vmatpush.msra.mxu0 0.0
    %1203 = vmatpush.msra.mxu0 0.0
    %1204 = vmatpush.msra.mxu0 0.0
    %1205 = vmatpush.msra.mxu0 0.0
    %1206 = vmatpush.msra.mxu0 0.0
    %1207 = vmatpush.msra.mxu0 0.0
    %1208 = vmatpush.msra.mxu0 0.0
    %1209 = vmatpush.msra.mxu0 0.0
    %v1210 = vand.u32 %v1114, 4294901760
    %1211 = vmatpush.msra.mxu0 %v1210
    %v1212 = vand.u32 %v1117, 4294901760
    %v1213 = vsub.f32 %v1117, %v1212
    %v1214 = vand.u32 %v1213, 4294901760
    %1215 = vmatmul.f32.gmra.mxu0 %v1214
    %v1216 = vpop.f32.mrf.mxu0
    %v1217 = vadd.f32 %v1193, %v1216
    %1218 = vdwg.mxu0
    %1219 = vmatpush.msra.mxu0 0.0
    %1220 = vmatpush.msra.mxu0 0.0
    %1221 = vmatpush.msra.mxu0 0.0
    %1222 = vmatpush.msra.mxu0 0.0
    %1223 = vmatpush.msra.mxu0 0.0
    %1224 = vmatpush.msra.mxu0 0.0
    %1225 = vmatpush.msra.mxu0 0.0
    %1226 = vmatpush.msra.mxu0 0.0
    %1227 = vmatpush.msra.mxu0 0.0
    %1228 = vmatpush.msra.mxu0 0.0
    %1229 = vmatpush.msra.mxu0 0.0
    %1230 = vmatpush.msra.mxu0 0.0
    %1231 = vmatpush.msra.mxu0 0.0
    %1232 = vmatpush.msra.mxu0 0.0
    %1233 = vmatpush.msra.mxu0 0.0
    %v1234 = vand.u32 %v1114, 4294901760
    %v1235 = vsub.f32 %v1114, %v1234
    %v1236 = vand.u32 %v1235, 4294901760
    %1237 = vmatpush.msra.mxu0 %v1236
    %v1238 = vand.u32 %v1117, 4294901760
    %1239 = vmatmul.f32.gmra.mxu0 %v1238
    %v1240 = vpop.f32.mrf.mxu0
    %v1241 = vadd.f32 %v1217, %v1240
    %1242 = vdwg.mxu0
    %1243 = vmatpush.msra.mxu0 0.0
    %1244 = vmatpush.msra.mxu0 0.0
    %1245 = vmatpush.msra.mxu0 0.0
    %1246 = vmatpush.msra.mxu0 0.0
    %1247 = vmatpush.msra.mxu0 0.0
    %1248 = vmatpush.msra.mxu0 0.0
    %1249 = vmatpush.msra.mxu0 0.0
    %1250 = vmatpush.msra.mxu0 0.0
    %1251 = vmatpush.msra.mxu0 0.0
    %1252 = vmatpush.msra.mxu0 0.0
    %1253 = vmatpush.msra.mxu0 0.0
    %1254 = vmatpush.msra.mxu0 0.0
    %1255 = vmatpush.msra.mxu0 0.0
    %1256 = vmatpush.msra.mxu0 0.0
    %1257 = vmatpush.msra.mxu0 0.0
    %v1258 = vand.u32 %v1114, 4294901760
    %1259 = vmatpush.msra.mxu0 %v1258
    %v1260 = vand.u32 %v1117, 4294901760
    %1261 = vmatmul.f32.gmra.mxu0 %v1260
    %v1262 = vpop.f32.mrf.mxu0
    %v1263 = vadd.f32 %v1241, %v1262
    %1264 = vdwg.mxu0
    %1265 = vrot.lane.b32.xlu0 %v273, 104
    %v1266 = vpop.permute.xlu0 %1265
    %1267 = vrot.lane.b32.xlu0 %v273, 72
    %v1268 = vpop.permute.xlu0 %1267
    %v1269 = vsel %vm278, %v1266, 0
    %v1271 = vsel %vm278, %v1268, 0
    %1273 = vmatpush.xpose.msra.mxu0 0.0
    %1274 = vmatpush.xpose.msra.mxu0 0.0
    %1275 = vmatpush.xpose.msra.mxu0 0.0
    %1276 = vmatpush.xpose.msra.mxu0 0.0
    %1277 = vmatpush.xpose.msra.mxu0 0.0
    %1278 = vmatpush.xpose.msra.mxu0 0.0
    %1279 = vmatpush.xpose.msra.mxu0 0.0
    %1280 = vmatpush.xpose.msra.mxu0 0.0
    %1281 = vmatpush.xpose.msra.mxu0 0.0
    %1282 = vmatpush.xpose.msra.mxu0 0.0
    %1283 = vmatpush.xpose.msra.mxu0 0.0
    %1284 = vmatpush.xpose.msra.mxu0 0.0
    %1285 = vmatpush.xpose.msra.mxu0 0.0
    %1286 = vmatpush.xpose.msra.mxu0 0.0
    %1287 = vmatpush.xpose.msra.mxu0 0.0
    %v1288 = vand.u32 %v1271, 4294901760
    %1289 = vmatpush.xpose.msra.mxu0 %v1288
    %v1290 = vand.u32 %v1269, 4294901760
    %v1291 = vsub.f32 %v1269, %v1290
    %v1292 = vand.u32 %v1291, 4294901760
    %v1293 = vsub.f32 %v1291, %v1292
    %v1294 = vand.u32 %v1293, 4294901760
    %1295 = vmatmul.f32.gmra.mxu0 %v1294
    %v1296 = vpop.f32.mrf.mxu0
    %v1297 = vadd.f32 0.0, %v1296
    %1298 = vdwg.mxu0
    %1299 = vmatpush.xpose.msra.mxu0 0.0
    %1300 = vmatpush.xpose.msra.mxu0 0.0
    %1301 = vmatpush.xpose.msra.mxu0 0.0
    %1302 = vmatpush.xpose.msra.mxu0 0.0
    %1303 = vmatpush.xpose.msra.mxu0 0.0
    %1304 = vmatpush.xpose.msra.mxu0 0.0
    %1305 = vmatpush.xpose.msra.mxu0 0.0
    %1306 = vmatpush.xpose.msra.mxu0 0.0
    %1307 = vmatpush.xpose.msra.mxu0 0.0
    %1308 = vmatpush.xpose.msra.mxu0 0.0
    %1309 = vmatpush.xpose.msra.mxu0 0.0
    %1310 = vmatpush.xpose.msra.mxu0 0.0
    %1311 = vmatpush.xpose.msra.mxu0 0.0
    %1312 = vmatpush.xpose.msra.mxu0 0.0
    %1313 = vmatpush.xpose.msra.mxu0 0.0
    %v1314 = vand.u32 %v1271, 4294901760
    %v1315 = vsub.f32 %v1271, %v1314
    %v1316 = vand.u32 %v1315, 4294901760
    %v1317 = vsub.f32 %v1315, %v1316
    %v1318 = vand.u32 %v1317, 4294901760
    %1319 = vmatpush.xpose.msra.mxu0 %v1318
    %v1320 = vand.u32 %v1269, 4294901760
    %1321 = vmatmul.f32.gmra.mxu0 %v1320
    %v1322 = vpop.f32.mrf.mxu0
    %v1323 = vadd.f32 %v1297, %v1322
    %1324 = vdwg.mxu0
    %1325 = vmatpush.xpose.msra.mxu0 0.0
    %1326 = vmatpush.xpose.msra.mxu0 0.0
    %1327 = vmatpush.xpose.msra.mxu0 0.0
    %1328 = vmatpush.xpose.msra.mxu0 0.0
    %1329 = vmatpush.xpose.msra.mxu0 0.0
    %1330 = vmatpush.xpose.msra.mxu0 0.0
    %1331 = vmatpush.xpose.msra.mxu0 0.0
    %1332 = vmatpush.xpose.msra.mxu0 0.0
    %1333 = vmatpush.xpose.msra.mxu0 0.0
    %1334 = vmatpush.xpose.msra.mxu0 0.0
    %1335 = vmatpush.xpose.msra.mxu0 0.0
    %1336 = vmatpush.xpose.msra.mxu0 0.0
    %1337 = vmatpush.xpose.msra.mxu0 0.0
    %1338 = vmatpush.xpose.msra.mxu0 0.0
    %1339 = vmatpush.xpose.msra.mxu0 0.0
    %v1340 = vand.u32 %v1271, 4294901760
    %v1341 = vsub.f32 %v1271, %v1340
    %1342 = vmatpush.xpose.msra.mxu0 %v1341
    %v1343 = vand.u32 %v1269, 4294901760
    %v1344 = vsub.f32 %v1269, %v1343
    %1345 = vmatmul.f32.gmra.mxu0 %v1344
    %v1346 = vpop.f32.mrf.mxu0
    %v1347 = vadd.f32 %v1323, %v1346
    %1348 = vdwg.mxu0
    %1349 = vmatpush.xpose.msra.mxu0 0.0
    %1350 = vmatpush.xpose.msra.mxu0 0.0
    %1351 = vmatpush.xpose.msra.mxu0 0.0
    %1352 = vmatpush.xpose.msra.mxu0 0.0
    %1353 = vmatpush.xpose.msra.mxu0 0.0
    %1354 = vmatpush.xpose.msra.mxu0 0.0
    %1355 = vmatpush.xpose.msra.mxu0 0.0
    %1356 = vmatpush.xpose.msra.mxu0 0.0
    %1357 = vmatpush.xpose.msra.mxu0 0.0
    %1358 = vmatpush.xpose.msra.mxu0 0.0
    %1359 = vmatpush.xpose.msra.mxu0 0.0
    %1360 = vmatpush.xpose.msra.mxu0 0.0
    %1361 = vmatpush.xpose.msra.mxu0 0.0
    %1362 = vmatpush.xpose.msra.mxu0 0.0
    %1363 = vmatpush.xpose.msra.mxu0 0.0
    %v1364 = vand.u32 %v1271, 4294901760
    %1365 = vmatpush.xpose.msra.mxu0 %v1364
    %v1366 = vand.u32 %v1269, 4294901760
    %v1367 = vsub.f32 %v1269, %v1366
    %v1368 = vand.u32 %v1367, 4294901760
    %1369 = vmatmul.f32.gmra.mxu0 %v1368
    %v1370 = vpop.f32.mrf.mxu0
    %v1371 = vadd.f32 %v1347, %v1370
    %1372 = vdwg.mxu0
    %1373 = vmatpush.xpose.msra.mxu0 0.0
    %1374 = vmatpush.xpose.msra.mxu0 0.0
    %1375 = vmatpush.xpose.msra.mxu0 0.0
    %1376 = vmatpush.xpose.msra.mxu0 0.0
    %1377 = vmatpush.xpose.msra.mxu0 0.0
    %1378 = vmatpush.xpose.msra.mxu0 0.0
    %1379 = vmatpush.xpose.msra.mxu0 0.0
    %1380 = vmatpush.xpose.msra.mxu0 0.0
    %1381 = vmatpush.xpose.msra.mxu0 0.0
    %1382 = vmatpush.xpose.msra.mxu0 0.0
    %1383 = vmatpush.xpose.msra.mxu0 0.0
    %1384 = vmatpush.xpose.msra.mxu0 0.0
    %1385 = vmatpush.xpose.msra.mxu0 0.0
    %1386 = vmatpush.xpose.msra.mxu0 0.0
    %1387 = vmatpush.xpose.msra.mxu0 0.0
    %v1388 = vand.u32 %v1271, 4294901760
    %v1389 = vsub.f32 %v1271, %v1388
    %v1390 = vand.u32 %v1389, 4294901760
    %1391 = vmatpush.xpose.msra.mxu0 %v1390
    %v1392 = vand.u32 %v1269, 4294901760
    %1393 = vmatmul.f32.gmra.mxu0 %v1392
    %v1394 = vpop.f32.mrf.mxu0
    %v1395 = vadd.f32 %v1371, %v1394
    %1396 = vdwg.mxu0
    %1397 = vmatpush.xpose.msra.mxu0 0.0
    %1398 = vmatpush.xpose.msra.mxu0 0.0
    %1399 = vmatpush.xpose.msra.mxu0 0.0
    %1400 = vmatpush.xpose.msra.mxu0 0.0
    %1401 = vmatpush.xpose.msra.mxu0 0.0
    %1402 = vmatpush.xpose.msra.mxu0 0.0
    %1403 = vmatpush.xpose.msra.mxu0 0.0
    %1404 = vmatpush.xpose.msra.mxu0 0.0
    %1405 = vmatpush.xpose.msra.mxu0 0.0
    %1406 = vmatpush.xpose.msra.mxu0 0.0
    %1407 = vmatpush.xpose.msra.mxu0 0.0
    %1408 = vmatpush.xpose.msra.mxu0 0.0
    %1409 = vmatpush.xpose.msra.mxu0 0.0
    %1410 = vmatpush.xpose.msra.mxu0 0.0
    %1411 = vmatpush.xpose.msra.mxu0 0.0
    %v1412 = vand.u32 %v1271, 4294901760
    %1413 = vmatpush.xpose.msra.mxu0 %v1412
    %v1414 = vand.u32 %v1269, 4294901760
    %1415 = vmatmul.f32.gmra.mxu0 %v1414
    %v1416 = vpop.f32.mrf.mxu0
    %v1417 = vadd.f32 %v1395, %v1416
    %1418 = vdwg.mxu0
    %v1419 = vsel %vm278, %v1417, -inf
    %1420 = vmax.xlane.f32.xlu0 %v1419
    %v1421 = vpop.xlane.xlu0 %1420
    %v1422 = vsub.f32 %v1417, %v1421
    %v1423 = vmul.f32 %v1422, 1.442695
    %v1424 = vpow.pop %v1423
    %v1425 = vsel %vm278, %v1424, 0.0
    %1426 = vadd.xlane.f32.xlu0 %v1425
    %v1427 = vpop.xlane.xlu0 %1426
    %v1428 = vrcp.pop %v1427
    %v1429 = vmul.f32 %v1427, %v1428
    %v1430 = vsub.f32 1.0, %v1429
    %v1431 = vmul.f32 %v1428, %v1430
    %v1432 = vadd.f32 %v1428, %v1431
    %vm1433 = vweird.f32 %v1427
    %vm1434 = vweird.f32 %v1428
    %vm1435 = vmor %vm1433, %vm1434
    %v1436 = vsel %vm1435, %v1428, %v1432
    %v1437 = vand.u32 2147483647, %v1427
    %vm1438 = vcmp.eq.f32.partialorder %v1437, 8.507059e+37
    %v1439 = vand.u32 %v1427, 2147483648
    %v1440 = vor.u32 1.1754944e-38, %v1439
    %v1441 = vsel %vm1438, %v1440, %v1436
    %v1442 = vmul.f32 %v1424, %v1441
    %1443 = vrot.lane.b32.xlu0 %v273, 40
    %v1444 = vpop.permute.xlu0 %1443
    %v1447 = vsel %vm278, %v1442, 0
    %1449 = vmatpush.msra.mxu0 0.0
    %1450 = vmatpush.msra.mxu0 0.0
    %1451 = vmatpush.msra.mxu0 0.0
    %1452 = vmatpush.msra.mxu0 0.0
    %1453 = vmatpush.msra.mxu0 0.0
    %1454 = vmatpush.msra.mxu0 0.0
    %1455 = vmatpush.msra.mxu0 0.0
    %1456 = vmatpush.msra.mxu0 0.0
    %1457 = vmatpush.msra.mxu0 0.0
    %1458 = vmatpush.msra.mxu0 0.0
    %1459 = vmatpush.msra.mxu0 0.0
    %1460 = vmatpush.msra.mxu0 0.0
    %1461 = vmatpush.msra.mxu0 0.0
    %1462 = vmatpush.msra.mxu0 0.0
    %1463 = vmatpush.msra.mxu0 0.0
    %v1464 = vand.u32 %v1444, 4294901760
    %1465 = vmatpush.msra.mxu0 %v1464
    %v1466 = vand.u32 %v1447, 4294901760
    %v1467 = vsub.f32 %v1447, %v1466
    %v1468 = vand.u32 %v1467, 4294901760
    %v1469 = vsub.f32 %v1467, %v1468
    %v1470 = vand.u32 %v1469, 4294901760
    %1471 = vmatmul.f32.gmra.mxu0 %v1470
    %v1472 = vpop.f32.mrf.mxu0
    %v1473 = vadd.f32 0.0, %v1472
    %1474 = vdwg.mxu0
    %1475 = vmatpush.msra.mxu0 0.0
    %1476 = vmatpush.msra.mxu0 0.0
    %1477 = vmatpush.msra.mxu0 0.0
    %1478 = vmatpush.msra.mxu0 0.0
    %1479 = vmatpush.msra.mxu0 0.0
    %1480 = vmatpush.msra.mxu0 0.0
    %1481 = vmatpush.msra.mxu0 0.0
    %1482 = vmatpush.msra.mxu0 0.0
    %1483 = vmatpush.msra.mxu0 0.0
    %1484 = vmatpush.msra.mxu0 0.0
    %1485 = vmatpush.msra.mxu0 0.0
    %1486 = vmatpush.msra.mxu0 0.0
    %1487 = vmatpush.msra.mxu0 0.0
    %1488 = vmatpush.msra.mxu0 0.0
    %1489 = vmatpush.msra.mxu0 0.0
    %v1490 = vand.u32 %v1444, 4294901760
    %v1491 = vsub.f32 %v1444, %v1490
    %v1492 = vand.u32 %v1491, 4294901760
    %v1493 = vsub.f32 %v1491, %v1492
    %v1494 = vand.u32 %v1493, 4294901760
    %1495 = vmatpush.msra.mxu0 %v1494
    %v1496 = vand.u32 %v1447, 4294901760
    %1497 = vmatmul.f32.gmra.mxu0 %v1496
    %v1498 = vpop.f32.mrf.mxu0
    %v1499 = vadd.f32 %v1473, %v1498
    %1500 = vdwg.mxu0
    %1501 = vmatpush.msra.mxu0 0.0
    %1502 = vmatpush.msra.mxu0 0.0
    %1503 = vmatpush.msra.mxu0 0.0
    %1504 = vmatpush.msra.mxu0 0.0
    %1505 = vmatpush.msra.mxu0 0.0
    %1506 = vmatpush.msra.mxu0 0.0
    %1507 = vmatpush.msra.mxu0 0.0
    %1508 = vmatpush.msra.mxu0 0.0
    %1509 = vmatpush.msra.mxu0 0.0
    %1510 = vmatpush.msra.mxu0 0.0
    %1511 = vmatpush.msra.mxu0 0.0
    %1512 = vmatpush.msra.mxu0 0.0
    %1513 = vmatpush.msra.mxu0 0.0
    %1514 = vmatpush.msra.mxu0 0.0
    %1515 = vmatpush.msra.mxu0 0.0
    %v1516 = vand.u32 %v1444, 4294901760
    %v1517 = vsub.f32 %v1444, %v1516
    %1518 = vmatpush.msra.mxu0 %v1517
    %v1519 = vand.u32 %v1447, 4294901760
    %v1520 = vsub.f32 %v1447, %v1519
    %1521 = vmatmul.f32.gmra.mxu0 %v1520
    %v1522 = vpop.f32.mrf.mxu0
    %v1523 = vadd.f32 %v1499, %v1522
    %1524 = vdwg.mxu0
    %1525 = vmatpush.msra.mxu0 0.0
    %1526 = vmatpush.msra.mxu0 0.0
    %1527 = vmatpush.msra.mxu0 0.0
    %1528 = vmatpush.msra.mxu0 0.0
    %1529 = vmatpush.msra.mxu0 0.0
    %1530 = vmatpush.msra.mxu0 0.0
    %1531 = vmatpush.msra.mxu0 0.0
    %1532 = vmatpush.msra.mxu0 0.0
    %1533 = vmatpush.msra.mxu0 0.0
    %1534 = vmatpush.msra.mxu0 0.0
    %1535 = vmatpush.msra.mxu0 0.0
    %1536 = vmatpush.msra.mxu0 0.0
    %1537 = vmatpush.msra.mxu0 0.0
    %1538 = vmatpush.msra.mxu0 0.0
    %1539 = vmatpush.msra.mxu0 0.0
    %v1540 = vand.u32 %v1444, 4294901760
    %1541 = vmatpush.msra.mxu0 %v1540
    %v1542 = vand.u32 %v1447, 4294901760
    %v1543 = vsub.f32 %v1447, %v1542
    %v1544 = vand.u32 %v1543, 4294901760
    %1545 = vmatmul.f32.gmra.mxu0 %v1544
    %v1546 = vpop.f32.mrf.mxu0
    %v1547 = vadd.f32 %v1523, %v1546
    %1548 = vdwg.mxu0
    %1549 = vmatpush.msra.mxu0 0.0
    %1550 = vmatpush.msra.mxu0 0.0
    %1551 = vmatpush.msra.mxu0 0.0
    %1552 = vmatpush.msra.mxu0 0.0
    %1553 = vmatpush.msra.mxu0 0.0
    %1554 = vmatpush.msra.mxu0 0.0
    %1555 = vmatpush.msra.mxu0 0.0
    %1556 = vmatpush.msra.mxu0 0.0
    %1557 = vmatpush.msra.mxu0 0.0
    %1558 = vmatpush.msra.mxu0 0.0
    %1559 = vmatpush.msra.mxu0 0.0
    %1560 = vmatpush.msra.mxu0 0.0
    %1561 = vmatpush.msra.mxu0 0.0
    %1562 = vmatpush.msra.mxu0 0.0
    %1563 = vmatpush.msra.mxu0 0.0
    %v1564 = vand.u32 %v1444, 4294901760
    %v1565 = vsub.f32 %v1444, %v1564
    %v1566 = vand.u32 %v1565, 4294901760
    %1567 = vmatpush.msra.mxu0 %v1566
    %v1568 = vand.u32 %v1447, 4294901760
    %1569 = vmatmul.f32.gmra.mxu0 %v1568
    %v1570 = vpop.f32.mrf.mxu0
    %v1571 = vadd.f32 %v1547, %v1570
    %1572 = vdwg.mxu0
    %1573 = vmatpush.msra.mxu0 0.0
    %1574 = vmatpush.msra.mxu0 0.0
    %1575 = vmatpush.msra.mxu0 0.0
    %1576 = vmatpush.msra.mxu0 0.0
    %1577 = vmatpush.msra.mxu0 0.0
    %1578 = vmatpush.msra.mxu0 0.0
    %1579 = vmatpush.msra.mxu0 0.0
    %1580 = vmatpush.msra.mxu0 0.0
    %1581 = vmatpush.msra.mxu0 0.0
    %1582 = vmatpush.msra.mxu0 0.0
    %1583 = vmatpush.msra.mxu0 0.0
    %1584 = vmatpush.msra.mxu0 0.0
    %1585 = vmatpush.msra.mxu0 0.0
    %1586 = vmatpush.msra.mxu0 0.0
    %1587 = vmatpush.msra.mxu0 0.0
    %v1588 = vand.u32 %v1444, 4294901760
    %1589 = vmatpush.msra.mxu0 %v1588
    %v1590 = vand.u32 %v1447, 4294901760
    %1591 = vmatmul.f32.gmra.mxu0 %v1590
    %v1592 = vpop.f32.mrf.mxu0
    %v1593 = vadd.f32 %v1571, %v1592
    %1594 = vdwg.mxu0
    %1596 = vrot.lane.b32.xlu0 %v933, 8
    %v1597 = vpop.permute.xlu0 %1596
    %1600 = vrot.lane.b32.xlu0 %v1263, 16
    %v1601 = vpop.permute.xlu0 %1600
    %1604 = vrot.lane.b32.xlu0 %v1593, 24
    %v1605 = vpop.permute.xlu0 %1604
    %v1607 = vsel %vm278, %v603, %v1597
    %vm1608 = vcmask 130048
    %v1609 = vsel %vm1608, %v1607, %v1601
    %vm1610 = vcmask 195584
    %v1611 = vsel %vm1610, %v1609, %v1605
    %v1612 = vperm.slane %v50, 0
    %1617 = vrot.lane.b32.xlu0 %v45, 32
    %v1618 = vpop.permute.xlu0 %1617
    %1619 = vrot.lane.b32.xlu0 %v46, 32
    %v1620 = vpop.permute.xlu0 %1619
    %1621 = vrot.lane.b32.xlu0 %v47, 32
    %v1622 = vpop.permute.xlu0 %1621
    %1623 = vrot.lane.b32.xlu0 %v48, 32
    %v1624 = vpop.permute.xlu0 %1623
    %v1630 = vsel %vm87, %v1611, 0
    %1632 = vmatpush.msra.mxu0 0.0
    %1633 = vmatpush.msra.mxu0 0.0
    %1634 = vmatpush.msra.mxu0 0.0
    %1635 = vmatpush.msra.mxu0 0.0
    %1636 = vmatpush.msra.mxu0 0.0
    %1637 = vmatpush.msra.mxu0 0.0
    %1638 = vmatpush.msra.mxu0 0.0
    %1639 = vmatpush.msra.mxu0 0.0
    %1640 = vmatpush.msra.mxu0 0.0
    %1641 = vmatpush.msra.mxu0 0.0
    %1642 = vmatpush.msra.mxu0 0.0
    %1643 = vmatpush.msra.mxu0 0.0
    %v1644 = vand.u32 %v1624, 4294901760
    %1645 = vmatpush.msra.mxu0 %v1644
    %v1646 = vand.u32 %v1622, 4294901760
    %1647 = vmatpush.msra.mxu0 %v1646
    %v1648 = vand.u32 %v1620, 4294901760
    %1649 = vmatpush.msra.mxu0 %v1648
    %v1650 = vand.u32 %v1618, 4294901760
    %1651 = vmatpush.msra.mxu0 %v1650
    %v1652 = vand.u32 %v1630, 4294901760
    %v1653 = vsub.f32 %v1630, %v1652
    %v1654 = vand.u32 %v1653, 4294901760
    %v1655 = vsub.f32 %v1653, %v1654
    %v1656 = vand.u32 %v1655, 4294901760
    %1657 = vmatmul.f32.gmra.mxu0 %v1656
    %v1658 = vpop.f32.mrf.mxu0
    %v1659 = vadd.f32 %v1612, %v1658
    %1660 = vdwg.mxu0
    %1661 = vmatpush.msra.mxu0 0.0
    %1662 = vmatpush.msra.mxu0 0.0
    %1663 = vmatpush.msra.mxu0 0.0
    %1664 = vmatpush.msra.mxu0 0.0
    %1665 = vmatpush.msra.mxu0 0.0
    %1666 = vmatpush.msra.mxu0 0.0
    %1667 = vmatpush.msra.mxu0 0.0
    %1668 = vmatpush.msra.mxu0 0.0
    %1669 = vmatpush.msra.mxu0 0.0
    %1670 = vmatpush.msra.mxu0 0.0
    %1671 = vmatpush.msra.mxu0 0.0
    %1672 = vmatpush.msra.mxu0 0.0
    %v1673 = vand.u32 %v1624, 4294901760
    %v1674 = vsub.f32 %v1624, %v1673
    %v1675 = vand.u32 %v1674, 4294901760
    %v1676 = vsub.f32 %v1674, %v1675
    %v1677 = vand.u32 %v1676, 4294901760
    %1678 = vmatpush.msra.mxu0 %v1677
    %v1679 = vand.u32 %v1622, 4294901760
    %v1680 = vsub.f32 %v1622, %v1679
    %v1681 = vand.u32 %v1680, 4294901760
    %v1682 = vsub.f32 %v1680, %v1681
    %v1683 = vand.u32 %v1682, 4294901760
    %1684 = vmatpush.msra.mxu0 %v1683
    %v1685 = vand.u32 %v1620, 4294901760
    %v1686 = vsub.f32 %v1620, %v1685
    %v1687 = vand.u32 %v1686, 4294901760
    %v1688 = vsub.f32 %v1686, %v1687
    %v1689 = vand.u32 %v1688, 4294901760
    %1690 = vmatpush.msra.mxu0 %v1689
    %v1691 = vand.u32 %v1618, 4294901760
    %v1692 = vsub.f32 %v1618, %v1691
    %v1693 = vand.u32 %v1692, 4294901760
    %v1694 = vsub.f32 %v1692, %v1693
    %v1695 = vand.u32 %v1694, 4294901760
    %1696 = vmatpush.msra.mxu0 %v1695
    %v1697 = vand.u32 %v1630, 4294901760
    %1698 = vmatmul.f32.gmra.mxu0 %v1697
    %v1699 = vpop.f32.mrf.mxu0
    %v1700 = vadd.f32 %v1659, %v1699
    %1701 = vdwg.mxu0
    %1702 = vmatpush.msra.mxu0 0.0
    %1703 = vmatpush.msra.mxu0 0.0
    %1704 = vmatpush.msra.mxu0 0.0
    %1705 = vmatpush.msra.mxu0 0.0
    %1706 = vmatpush.msra.mxu0 0.0
    %1707 = vmatpush.msra.mxu0 0.0
    %1708 = vmatpush.msra.mxu0 0.0
    %1709 = vmatpush.msra.mxu0 0.0
    %1710 = vmatpush.msra.mxu0 0.0
    %1711 = vmatpush.msra.mxu0 0.0
    %1712 = vmatpush.msra.mxu0 0.0
    %1713 = vmatpush.msra.mxu0 0.0
    %v1714 = vand.u32 %v1624, 4294901760
    %v1715 = vsub.f32 %v1624, %v1714
    %1716 = vmatpush.msra.mxu0 %v1715
    %v1717 = vand.u32 %v1622, 4294901760
    %v1718 = vsub.f32 %v1622, %v1717
    %1719 = vmatpush.msra.mxu0 %v1718
    %v1720 = vand.u32 %v1620, 4294901760
    %v1721 = vsub.f32 %v1620, %v1720
    %1722 = vmatpush.msra.mxu0 %v1721
    %v1723 = vand.u32 %v1618, 4294901760
    %v1724 = vsub.f32 %v1618, %v1723
    %1725 = vmatpush.msra.mxu0 %v1724
    %v1726 = vand.u32 %v1630, 4294901760
    %v1727 = vsub.f32 %v1630, %v1726
    %1728 = vmatmul.f32.gmra.mxu0 %v1727
    %v1729 = vpop.f32.mrf.mxu0
    %v1730 = vadd.f32 %v1700, %v1729
    %1731 = vdwg.mxu0
    %1732 = vmatpush.msra.mxu0 0.0
    %1733 = vmatpush.msra.mxu0 0.0
    %1734 = vmatpush.msra.mxu0 0.0
    %1735 = vmatpush.msra.mxu0 0.0
    %1736 = vmatpush.msra.mxu0 0.0
    %1737 = vmatpush.msra.mxu0 0.0
    %1738 = vmatpush.msra.mxu0 0.0
    %1739 = vmatpush.msra.mxu0 0.0
    %1740 = vmatpush.msra.mxu0 0.0
    %1741 = vmatpush.msra.mxu0 0.0
    %1742 = vmatpush.msra.mxu0 0.0
    %1743 = vmatpush.msra.mxu0 0.0
    %v1744 = vand.u32 %v1624, 4294901760
    %1745 = vmatpush.msra.mxu0 %v1744
    %v1746 = vand.u32 %v1622, 4294901760
    %1747 = vmatpush.msra.mxu0 %v1746
    %v1748 = vand.u32 %v1620, 4294901760
    %1749 = vmatpush.msra.mxu0 %v1748
    %v1750 = vand.u32 %v1618, 4294901760
    %1751 = vmatpush.msra.mxu0 %v1750
    %v1752 = vand.u32 %v1630, 4294901760
    %v1753 = vsub.f32 %v1630, %v1752
    %v1754 = vand.u32 %v1753, 4294901760
    %1755 = vmatmul.f32.gmra.mxu0 %v1754
    %v1756 = vpop.f32.mrf.mxu0
    %v1757 = vadd.f32 %v1730, %v1756
    %1758 = vdwg.mxu0
    %1759 = vmatpush.msra.mxu0 0.0
    %1760 = vmatpush.msra.mxu0 0.0
    %1761 = vmatpush.msra.mxu0 0.0
    %1762 = vmatpush.msra.mxu0 0.0
    %1763 = vmatpush.msra.mxu0 0.0
    %1764 = vmatpush.msra.mxu0 0.0
    %1765 = vmatpush.msra.mxu0 0.0
    %1766 = vmatpush.msra.mxu0 0.0
    %1767 = vmatpush.msra.mxu0 0.0
    %1768 = vmatpush.msra.mxu0 0.0
    %1769 = vmatpush.msra.mxu0 0.0
    %1770 = vmatpush.msra.mxu0 0.0
    %v1771 = vand.u32 %v1624, 4294901760
    %v1772 = vsub.f32 %v1624, %v1771
    %v1773 = vand.u32 %v1772, 4294901760
    %1774 = vmatpush.msra.mxu0 %v1773
    %v1775 = vand.u32 %v1622, 4294901760
    %v1776 = vsub.f32 %v1622, %v1775
    %v1777 = vand.u32 %v1776, 4294901760
    %1778 = vmatpush.msra.mxu0 %v1777
    %v1779 = vand.u32 %v1620, 4294901760
    %v1780 = vsub.f32 %v1620, %v1779
    %v1781 = vand.u32 %v1780, 4294901760
    %1782 = vmatpush.msra.mxu0 %v1781
    %v1783 = vand.u32 %v1618, 4294901760
    %v1784 = vsub.f32 %v1618, %v1783
    %v1785 = vand.u32 %v1784, 4294901760
    %1786 = vmatpush.msra.mxu0 %v1785
    %v1787 = vand.u32 %v1630, 4294901760
    %1788 = vmatmul.f32.gmra.mxu0 %v1787
    %v1789 = vpop.f32.mrf.mxu0
    %v1790 = vadd.f32 %v1757, %v1789
    %1791 = vdwg.mxu0
    %1792 = vmatpush.msra.mxu0 0.0
    %1793 = vmatpush.msra.mxu0 0.0
    %1794 = vmatpush.msra.mxu0 0.0
    %1795 = vmatpush.msra.mxu0 0.0
    %1796 = vmatpush.msra.mxu0 0.0
    %1797 = vmatpush.msra.mxu0 0.0
    %1798 = vmatpush.msra.mxu0 0.0
    %1799 = vmatpush.msra.mxu0 0.0
    %1800 = vmatpush.msra.mxu0 0.0
    %1801 = vmatpush.msra.mxu0 0.0
    %1802 = vmatpush.msra.mxu0 0.0
    %1803 = vmatpush.msra.mxu0 0.0
    %v1804 = vand.u32 %v1624, 4294901760
    %1805 = vmatpush.msra.mxu0 %v1804
    %v1806 = vand.u32 %v1622, 4294901760
    %1807 = vmatpush.msra.mxu0 %v1806
    %v1808 = vand.u32 %v1620, 4294901760
    %1809 = vmatpush.msra.mxu0 %v1808
    %v1810 = vand.u32 %v1618, 4294901760
    %1811 = vmatpush.msra.mxu0 %v1810
    %v1812 = vand.u32 %v1630, 4294901760
    %1813 = vmatmul.f32.gmra.mxu0 %v1812
    %v1814 = vpop.f32.mrf.mxu0
    %v1815 = vadd.f32 %v1790, %v1814
    %1816 = vdwg.mxu0
    %v1818 = vrot.slane %v1815, 1
    %v1819 = vrot.slane %v1815, 2
    %v1820 = vrot.slane %v1815, 3
    %v1821 = vrot.slane %v1815, 4
    %v1822 = vrot.slane %v1815, 5
    %v1823 = vrot.slane %v1815, 6
    %v1824 = vrot.slane %v1815, 7
    %v1833 = vadd.f32 %v37, %v1815
    %v1834 = vadd.f32 %v38, %v1818
    %v1835 = vadd.f32 %v39, %v1819
    %v1836 = vadd.f32 %v40, %v1820
    %v1837 = vadd.f32 %v41, %v1821
    %v1838 = vadd.f32 %v42, %v1822
    %v1839 = vadd.f32 %v43, %v1823
    %v1840 = vadd.f32 %v44, %v1824
    %v1849 = vrot.slane %v1834, 7
    %v1850 = vsel %vm67, %v1849, %v1833
    %v1851 = vrot.slane %v1835, 6
    %v1852 = vsel %vm70, %v1851, %v1850
    %v1853 = vrot.slane %v1836, 5
    %v1854 = vsel %vm73, %v1853, %v1852
    %v1855 = vrot.slane %v1837, 4
    %v1856 = vsel %vm76, %v1855, %v1854
    %v1857 = vrot.slane %v1838, 3
    %v1858 = vsel %vm79, %v1857, %v1856
    %v1859 = vrot.slane %v1839, 2
    %v1860 = vsel %vm82, %v1859, %v1858
    %v1861 = vrot.slane %v1840, 1
    %v1862 = vsel %vm85, %v1861, %v1860
    %v1864 = vsel %vm87, %v1862, 0.0
    %1865 = vadd.xlane.f32.xlu0 %v1864
    %v1866 = vpop.xlane.xlu0 %1865
    %v1867 = vrcp.pop 32.0
    %v1868 = vmul.f32 32.0, %v1867
    %v1869 = vsub.f32 1.0, %v1868
    %v1870 = vmul.f32 %v1867, %v1869
    %v1871 = vadd.f32 %v1867, %v1870
    %vm1872 = vweird.f32 %v1867
    %v1873 = vsel %vm1872, %v1867, %v1871
    %v1874 = vmul.f32 %v1866, %v1873
    %v1876 = vrot.slane %v1874, 1
    %v1877 = vrot.slane %v1874, 2
    %v1878 = vrot.slane %v1874, 3
    %v1879 = vrot.slane %v1874, 4
    %v1880 = vrot.slane %v1874, 5
    %v1881 = vrot.slane %v1874, 6
    %v1882 = vrot.slane %v1874, 7
    %v1891 = vsub.f32 %v1833, %v1874
    %v1892 = vsub.f32 %v1834, %v1876
    %v1893 = vsub.f32 %v1835, %v1877
    %v1894 = vsub.f32 %v1836, %v1878
    %v1895 = vsub.f32 %v1837, %v1879
    %v1896 = vsub.f32 %v1838, %v1880
    %v1897 = vsub.f32 %v1839, %v1881
    %v1898 = vsub.f32 %v1840, %v1882
    %v1899 = vmul.f32 %v1891, %v1891
    %v1900 = vmul.f32 %v1892, %v1892
    %v1901 = vmul.f32 %v1893, %v1893
    %v1902 = vmul.f32 %v1894, %v1894
    %v1903 = vmul.f32 %v1895, %v1895
    %v1904 = vmul.f32 %v1896, %v1896
    %v1905 = vmul.f32 %v1897, %v1897
    %v1906 = vmul.f32 %v1898, %v1898
    %v1915 = vrot.slane %v1900, 7
    %v1916 = vsel %vm67, %v1915, %v1899
    %v1917 = vrot.slane %v1901, 6
    %v1918 = vsel %vm70, %v1917, %v1916
    %v1919 = vrot.slane %v1902, 5
    %v1920 = vsel %vm73, %v1919, %v1918
    %v1921 = vrot.slane %v1903, 4
    %v1922 = vsel %vm76, %v1921, %v1920
    %v1923 = vrot.slane %v1904, 3
    %v1924 = vsel %vm79, %v1923, %v1922
    %v1925 = vrot.slane %v1905, 2
    %v1926 = vsel %vm82, %v1925, %v1924
    %v1927 = vrot.slane %v1906, 1
    %v1928 = vsel %vm85, %v1927, %v1926
    %v1930 = vsel %vm87, %v1928, 0.0
    %1931 = vadd.xlane.f32.xlu0 %v1930
    %v1932 = vpop.xlane.xlu0 %1931
    %v1933 = vmul.f32 %v1932, %v1873
    %v1934 = vadd.f32 %v1933, 1e-05
    %v1935 = vrsqrt.pop %v1934
    %v1936 = vmul.f32 %v1935, %v1934
    %v1937 = vmul.f32 %v1936, %v1935
    %v1938 = vmul.f32 0.5, %v1937
    %v1939 = vsub.f32 1.5, %v1938
    %v1940 = vmul.f32 %v1935, %v1939
    %vm1941 = vweird.f32 %v1934
    %vm1942 = vweird.f32 %v1935
    %vm1943 = vmor %vm1941, %vm1942
    %v1944 = vsel %vm1943, %v1935, %v1940
    %v1946 = vrot.slane %v1944, 1
    %v1947 = vrot.slane %v1944, 2
    %v1948 = vrot.slane %v1944, 3
    %v1949 = vrot.slane %v1944, 4
    %v1950 = vrot.slane %v1944, 5
    %v1951 = vrot.slane %v1944, 6
    %v1952 = vrot.slane %v1944, 7
    %v1961 = vmul.f32 %v1891, %v1944
    %v1962 = vmul.f32 %v1892, %v1946
    %v1963 = vmul.f32 %v1893, %v1947
    %v1964 = vmul.f32 %v1894, %v1948
    %v1965 = vmul.f32 %v1895, %v1949
    %v1966 = vmul.f32 %v1896, %v1950
    %v1967 = vmul.f32 %v1897, %v1951
    %v1968 = vmul.f32 %v1898, %v1952
    %v1969 = vperm.slane %v53, 0
    %v1970 = vmul.f32 %v1961, %v1969
    %v1971 = vmul.f32 %v1962, %v1969
    %v1972 = vmul.f32 %v1963, %v1969
    %v1973 = vmul.f32 %v1964, %v1969
    %v1974 = vmul.f32 %v1965, %v1969
    %v1975 = vmul.f32 %v1966, %v1969
    %v1976 = vmul.f32 %v1967, %v1969
    %v1977 = vmul.f32 %v1968, %v1969
    %v1978 = vperm.slane %v54, 0
    %v1979 = vadd.f32 %v1970, %v1978
    %v1980 = vadd.f32 %v1971, %v1978
    %v1981 = vadd.f32 %v1972, %v1978
    %v1982 = vadd.f32 %v1973, %v1978
    %v1983 = vadd.f32 %v1974, %v1978
    %v1984 = vadd.f32 %v1975, %v1978
    %v1985 = vadd.f32 %v1976, %v1978
    %v1986 = vadd.f32 %v1977, %v1978
    %v1987 = vld [vmem:[%s2] sm:$0xff]
    %v1988 = vld [vmem:[%s2 + $0x8] sm:$0xff]
    %v1989 = vld [vmem:[%s2 + $0x10] sm:$0xff]
    %v1990 = vld [vmem:[%s2 + $0x18] sm:$0xff]
    %v1991 = vperm.slane %v51, 0
    %v2000 = vrot.slane %v1980, 7
    %v2001 = vsel %vm67, %v2000, %v1979
    %v2002 = vrot.slane %v1981, 6
    %v2003 = vsel %vm70, %v2002, %v2001
    %v2004 = vrot.slane %v1982, 5
    %v2005 = vsel %vm73, %v2004, %v2003
    %v2006 = vrot.slane %v1983, 4
    %v2007 = vsel %vm76, %v2006, %v2005
    %v2008 = vrot.slane %v1984, 3
    %v2009 = vsel %vm79, %v2008, %v2007
    %v2010 = vrot.slane %v1985, 2
    %v2011 = vsel %vm82, %v2010, %v2009
    %v2012 = vrot.slane %v1986, 1
    %v2013 = vsel %vm85, %v2012, %v2011
    %v2014 = vsel %vm87, %v2013, 0
    %2016 = vmatpush.msra.mxu0 0.0
    %2017 = vmatpush.msra.mxu0 0.0
    %2018 = vmatpush.msra.mxu0 0.0
    %2019 = vmatpush.msra.mxu0 0.0
    %2020 = vmatpush.msra.mxu0 0.0
    %2021 = vmatpush.msra.mxu0 0.0
    %2022 = vmatpush.msra.mxu0 0.0
    %2023 = vmatpush.msra.mxu0 0.0
    %2024 = vmatpush.msra.mxu0 0.0
    %2025 = vmatpush.msra.mxu0 0.0
    %2026 = vmatpush.msra.mxu0 0.0
    %2027 = vmatpush.msra.mxu0 0.0
    %v2028 = vand.u32 %v1990, 4294901760
    %2029 = vmatpush.msra.mxu0 %v2028
    %v2030 = vand.u32 %v1989, 4294901760
    %2031 = vmatpush.msra.mxu0 %v2030
    %v2032 = vand.u32 %v1988, 4294901760
    %2033 = vmatpush.msra.mxu0 %v2032
    %v2034 = vand.u32 %v1987, 4294901760
    %2035 = vmatpush.msra.mxu0 %v2034
    %v2036 = vand.u32 %v2014, 4294901760
    %v2037 = vsub.f32 %v2014, %v2036
    %v2038 = vand.u32 %v2037, 4294901760
    %v2039 = vsub.f32 %v2037, %v2038
    %v2040 = vand.u32 %v2039, 4294901760
    %2041 = vmatmul.f32.gmra.mxu0 %v2040
    %v2042 = vpop.f32.mrf.mxu0
    %v2043 = vadd.f32 %v1991, %v2042
    %2044 = vdwg.mxu0
    %2045 = vmatpush.msra.mxu0 0.0
    %2046 = vmatpush.msra.mxu0 0.0
    %2047 = vmatpush.msra.mxu0 0.0
    %2048 = vmatpush.msra.mxu0 0.0
    %2049 = vmatpush.msra.mxu0 0.0
    %2050 = vmatpush.msra.mxu0 0.0
    %2051 = vmatpush.msra.mxu0 0.0
    %2052 = vmatpush.msra.mxu0 0.0
    %2053 = vmatpush.msra.mxu0 0.0
    %2054 = vmatpush.msra.mxu0 0.0
    %2055 = vmatpush.msra.mxu0 0.0
    %2056 = vmatpush.msra.mxu0 0.0
    %v2057 = vand.u32 %v1990, 4294901760
    %v2058 = vsub.f32 %v1990, %v2057
    %v2059 = vand.u32 %v2058, 4294901760
    %v2060 = vsub.f32 %v2058, %v2059
    %v2061 = vand.u32 %v2060, 4294901760
    %2062 = vmatpush.msra.mxu0 %v2061
    %v2063 = vand.u32 %v1989, 4294901760
    %v2064 = vsub.f32 %v1989, %v2063
    %v2065 = vand.u32 %v2064, 4294901760
    %v2066 = vsub.f32 %v2064, %v2065
    %v2067 = vand.u32 %v2066, 4294901760
    %2068 = vmatpush.msra.mxu0 %v2067
    %v2069 = vand.u32 %v1988, 4294901760
    %v2070 = vsub.f32 %v1988, %v2069
    %v2071 = vand.u32 %v2070, 4294901760
    %v2072 = vsub.f32 %v2070, %v2071
    %v2073 = vand.u32 %v2072, 4294901760
    %2074 = vmatpush.msra.mxu0 %v2073
    %v2075 = vand.u32 %v1987, 4294901760
    %v2076 = vsub.f32 %v1987, %v2075
    %v2077 = vand.u32 %v2076, 4294901760
    %v2078 = vsub.f32 %v2076, %v2077
    %v2079 = vand.u32 %v2078, 4294901760
    %2080 = vmatpush.msra.mxu0 %v2079
    %v2081 = vand.u32 %v2014, 4294901760
    %2082 = vmatmul.f32.gmra.mxu0 %v2081
    %v2083 = vpop.f32.mrf.mxu0
    %v2084 = vadd.f32 %v2043, %v2083
    %2085 = vdwg.mxu0
    %2086 = vmatpush.msra.mxu0 0.0
    %2087 = vmatpush.msra.mxu0 0.0
    %2088 = vmatpush.msra.mxu0 0.0
    %2089 = vmatpush.msra.mxu0 0.0
    %2090 = vmatpush.msra.mxu0 0.0
    %2091 = vmatpush.msra.mxu0 0.0
    %2092 = vmatpush.msra.mxu0 0.0
    %2093 = vmatpush.msra.mxu0 0.0
    %2094 = vmatpush.msra.mxu0 0.0
    %2095 = vmatpush.msra.mxu0 0.0
    %2096 = vmatpush.msra.mxu0 0.0
    %2097 = vmatpush.msra.mxu0 0.0
    %v2098 = vand.u32 %v1990, 4294901760
    %v2099 = vsub.f32 %v1990, %v2098
    %2100 = vmatpush.msra.mxu0 %v2099
    %v2101 = vand.u32 %v1989, 4294901760
    %v2102 = vsub.f32 %v1989, %v2101
    %2103 = vmatpush.msra.mxu0 %v2102
    %v2104 = vand.u32 %v1988, 4294901760
    %v2105 = vsub.f32 %v1988, %v2104
    %2106 = vmatpush.msra.mxu0 %v2105
    %v2107 = vand.u32 %v1987, 4294901760
    %v2108 = vsub.f32 %v1987, %v2107
    %2109 = vmatpush.msra.mxu0 %v2108
    %v2110 = vand.u32 %v2014, 4294901760
    %v2111 = vsub.f32 %v2014, %v2110
    %2112 = vmatmul.f32.gmra.mxu0 %v2111
    %v2113 = vpop.f32.mrf.mxu0
    %v2114 = vadd.f32 %v2084, %v2113
    %2115 = vdwg.mxu0
    %2116 = vmatpush.msra.mxu0 0.0
    %2117 = vmatpush.msra.mxu0 0.0
    %2118 = vmatpush.msra.mxu0 0.0
    %2119 = vmatpush.msra.mxu0 0.0
    %2120 = vmatpush.msra.mxu0 0.0
    %2121 = vmatpush.msra.mxu0 0.0
    %2122 = vmatpush.msra.mxu0 0.0
    %2123 = vmatpush.msra.mxu0 0.0
    %2124 = vmatpush.msra.mxu0 0.0
    %2125 = vmatpush.msra.mxu0 0.0
    %2126 = vmatpush.msra.mxu0 0.0
    %2127 = vmatpush.msra.mxu0 0.0
    %v2128 = vand.u32 %v1990, 4294901760
    %2129 = vmatpush.msra.mxu0 %v2128
    %v2130 = vand.u32 %v1989, 4294901760
    %2131 = vmatpush.msra.mxu0 %v2130
    %v2132 = vand.u32 %v1988, 4294901760
    %2133 = vmatpush.msra.mxu0 %v2132
    %v2134 = vand.u32 %v1987, 4294901760
    %2135 = vmatpush.msra.mxu0 %v2134
    %v2136 = vand.u32 %v2014, 4294901760
    %v2137 = vsub.f32 %v2014, %v2136
    %v2138 = vand.u32 %v2137, 4294901760
    %2139 = vmatmul.f32.gmra.mxu0 %v2138
    %v2140 = vpop.f32.mrf.mxu0
    %v2141 = vadd.f32 %v2114, %v2140
    %2142 = vdwg.mxu0
    %2143 = vmatpush.msra.mxu0 0.0
    %2144 = vmatpush.msra.mxu0 0.0
    %2145 = vmatpush.msra.mxu0 0.0
    %2146 = vmatpush.msra.mxu0 0.0
    %2147 = vmatpush.msra.mxu0 0.0
    %2148 = vmatpush.msra.mxu0 0.0
    %2149 = vmatpush.msra.mxu0 0.0
    %2150 = vmatpush.msra.mxu0 0.0
    %2151 = vmatpush.msra.mxu0 0.0
    %2152 = vmatpush.msra.mxu0 0.0
    %2153 = vmatpush.msra.mxu0 0.0
    %2154 = vmatpush.msra.mxu0 0.0
    %v2155 = vand.u32 %v1990, 4294901760
    %v2156 = vsub.f32 %v1990, %v2155
    %v2157 = vand.u32 %v2156, 4294901760
    %2158 = vmatpush.msra.mxu0 %v2157
    %v2159 = vand.u32 %v1989, 4294901760
    %v2160 = vsub.f32 %v1989, %v2159
    %v2161 = vand.u32 %v2160, 4294901760
    %2162 = vmatpush.msra.mxu0 %v2161
    %v2163 = vand.u32 %v1988, 4294901760
    %v2164 = vsub.f32 %v1988, %v2163
    %v2165 = vand.u32 %v2164, 4294901760
    %2166 = vmatpush.msra.mxu0 %v2165
    %v2167 = vand.u32 %v1987, 4294901760
    %v2168 = vsub.f32 %v1987, %v2167
    %v2169 = vand.u32 %v2168, 4294901760
    %2170 = vmatpush.msra.mxu0 %v2169
    %v2171 = vand.u32 %v2014, 4294901760
    %2172 = vmatmul.f32.gmra.mxu0 %v2171
    %v2173 = vpop.f32.mrf.mxu0
    %v2174 = vadd.f32 %v2141, %v2173
    %2175 = vdwg.mxu0
    %2176 = vmatpush.msra.mxu0 0.0
    %2177 = vmatpush.msra.mxu0 0.0
    %2178 = vmatpush.msra.mxu0 0.0
    %2179 = vmatpush.msra.mxu0 0.0
    %2180 = vmatpush.msra.mxu0 0.0
    %2181 = vmatpush.msra.mxu0 0.0
    %2182 = vmatpush.msra.mxu0 0.0
    %2183 = vmatpush.msra.mxu0 0.0
    %2184 = vmatpush.msra.mxu0 0.0
    %2185 = vmatpush.msra.mxu0 0.0
    %2186 = vmatpush.msra.mxu0 0.0
    %2187 = vmatpush.msra.mxu0 0.0
    %v2188 = vand.u32 %v1990, 4294901760
    %2189 = vmatpush.msra.mxu0 %v2188
    %v2190 = vand.u32 %v1989, 4294901760
    %2191 = vmatpush.msra.mxu0 %v2190
    %v2192 = vand.u32 %v1988, 4294901760
    %2193 = vmatpush.msra.mxu0 %v2192
    %v2194 = vand.u32 %v1987, 4294901760
    %2195 = vmatpush.msra.mxu0 %v2194
    %v2196 = vand.u32 %v2014, 4294901760
    %2197 = vmatmul.f32.gmra.mxu0 %v2196
    %v2198 = vpop.f32.mrf.mxu0
    %v2199 = vadd.f32 %v2174, %v2198
    %2200 = vdwg.mxu0
    %v2201 = vmax.f32 %v2199, 0.0
    %v2202 = vld [vmem:[%s3] sm:$0xff]
    %v2203 = vld [vmem:[%s3 + $0x8] sm:$0xff]
    %v2204 = vld [vmem:[%s3 + $0x10] sm:$0xff]
    %v2205 = vld [vmem:[%s3 + $0x18] sm:$0xff]
    %v2206 = vld [vmem:[%s3 + $0x20] sm:$0xff]
    %v2207 = vld [vmem:[%s3 + $0x28] sm:$0xff]
    %v2208 = vld [vmem:[%s3 + $0x30] sm:$0xff]
    %v2209 = vld [vmem:[%s3 + $0x38] sm:$0xff]
    %v2210 = vperm.slane %v52, 0
    %vm2211 = vcmask 523264
    %v2213 = vsel %vm2211, %v2201, 0
    %2215 = vmatpush.msra.mxu0 0.0
    %2216 = vmatpush.msra.mxu0 0.0
    %2217 = vmatpush.msra.mxu0 0.0
    %2218 = vmatpush.msra.mxu0 0.0
    %2219 = vmatpush.msra.mxu0 0.0
    %2220 = vmatpush.msra.mxu0 0.0
    %2221 = vmatpush.msra.mxu0 0.0
    %2222 = vmatpush.msra.mxu0 0.0
    %v2223 = vand.u32 %v2209, 4294901760
    %2224 = vmatpush.msra.mxu0 %v2223
    %v2225 = vand.u32 %v2208, 4294901760
    %2226 = vmatpush.msra.mxu0 %v2225
    %v2227 = vand.u32 %v2207, 4294901760
    %2228 = vmatpush.msra.mxu0 %v2227
    %v2229 = vand.u32 %v2206, 4294901760
    %2230 = vmatpush.msra.mxu0 %v2229
    %v2231 = vand.u32 %v2205, 4294901760
    %2232 = vmatpush.msra.mxu0 %v2231
    %v2233 = vand.u32 %v2204, 4294901760
    %2234 = vmatpush.msra.mxu0 %v2233
    %v2235 = vand.u32 %v2203, 4294901760
    %2236 = vmatpush.msra.mxu0 %v2235
    %v2237 = vand.u32 %v2202, 4294901760
    %2238 = vmatpush.msra.mxu0 %v2237
    %v2239 = vand.u32 %v2213, 4294901760
    %v2240 = vsub.f32 %v2213, %v2239
    %v2241 = vand.u32 %v2240, 4294901760
    %v2242 = vsub.f32 %v2240, %v2241
    %v2243 = vand.u32 %v2242, 4294901760
    %2244 = vmatmul.f32.gmra.mxu0 %v2243
    %v2245 = vpop.f32.mrf.mxu0
    %v2246 = vadd.f32 %v2210, %v2245
    %2247 = vdwg.mxu0
    %2248 = vmatpush.msra.mxu0 0.0
    %2249 = vmatpush.msra.mxu0 0.0
    %2250 = vmatpush.msra.mxu0 0.0
    %2251 = vmatpush.msra.mxu0 0.0
    %2252 = vmatpush.msra.mxu0 0.0
    %2253 = vmatpush.msra.mxu0 0.0
    %2254 = vmatpush.msra.mxu0 0.0
    %2255 = vmatpush.msra.mxu0 0.0
    %v2256 = vand.u32 %v2209, 4294901760
    %v2257 = vsub.f32 %v2209, %v2256
    %v2258 = vand.u32 %v2257, 4294901760
    %v2259 = vsub.f32 %v2257, %v2258
    %v2260 = vand.u32 %v2259, 4294901760
    %2261 = vmatpush.msra.mxu0 %v2260
    %v2262 = vand.u32 %v2208, 4294901760
    %v2263 = vsub.f32 %v2208, %v2262
    %v2264 = vand.u32 %v2263, 4294901760
    %v2265 = vsub.f32 %v2263, %v2264
    %v2266 = vand.u32 %v2265, 4294901760
    %2267 = vmatpush.msra.mxu0 %v2266
    %v2268 = vand.u32 %v2207, 4294901760
    %v2269 = vsub.f32 %v2207, %v2268
    %v2270 = vand.u32 %v2269, 4294901760
    %v2271 = vsub.f32 %v2269, %v2270
    %v2272 = vand.u32 %v2271, 4294901760
    %2273 = vmatpush.msra.mxu0 %v2272
    %v2274 = vand.u32 %v2206, 4294901760
    %v2275 = vsub.f32 %v2206, %v2274
    %v2276 = vand.u32 %v2275, 4294901760
    %v2277 = vsub.f32 %v2275, %v2276
    %v2278 = vand.u32 %v2277, 4294901760
    %2279 = vmatpush.msra.mxu0 %v2278
    %v2280 = vand.u32 %v2205, 4294901760
    %v2281 = vsub.f32 %v2205, %v2280
    %v2282 = vand.u32 %v2281, 4294901760
    %v2283 = vsub.f32 %v2281, %v2282
    %v2284 = vand.u32 %v2283, 4294901760
    %2285 = vmatpush.msra.mxu0 %v2284
    %v2286 = vand.u32 %v2204, 4294901760
    %v2287 = vsub.f32 %v2204, %v2286
    %v2288 = vand.u32 %v2287, 4294901760
    %v2289 = vsub.f32 %v2287, %v2288
    %v2290 = vand.u32 %v2289, 4294901760
    %2291 = vmatpush.msra.mxu0 %v2290
    %v2292 = vand.u32 %v2203, 4294901760
    %v2293 = vsub.f32 %v2203, %v2292
    %v2294 = vand.u32 %v2293, 4294901760
    %v2295 = vsub.f32 %v2293, %v2294
    %v2296 = vand.u32 %v2295, 4294901760
    %2297 = vmatpush.msra.mxu0 %v2296
    %v2298 = vand.u32 %v2202, 4294901760
    %v2299 = vsub.f32 %v2202, %v2298
    %v2300 = vand.u32 %v2299, 4294901760
    %v2301 = vsub.f32 %v2299, %v2300
    %v2302 = vand.u32 %v2301, 4294901760
    %2303 = vmatpush.msra.mxu0 %v2302
    %v2304 = vand.u32 %v2213, 4294901760
    %2305 = vmatmul.f32.gmra.mxu0 %v2304
    %v2306 = vpop.f32.mrf.mxu0
    %v2307 = vadd.f32 %v2246, %v2306
    %2308 = vdwg.mxu0
    %2309 = vmatpush.msra.mxu0 0.0
    %2310 = vmatpush.msra.mxu0 0.0
    %2311 = vmatpush.msra.mxu0 0.0
    %2312 = vmatpush.msra.mxu0 0.0
    %2313 = vmatpush.msra.mxu0 0.0
    %2314 = vmatpush.msra.mxu0 0.0
    %2315 = vmatpush.msra.mxu0 0.0
    %2316 = vmatpush.msra.mxu0 0.0
    %v2317 = vand.u32 %v2209, 4294901760
    %v2318 = vsub.f32 %v2209, %v2317
    %2319 = vmatpush.msra.mxu0 %v2318
    %v2320 = vand.u32 %v2208, 4294901760
    %v2321 = vsub.f32 %v2208, %v2320
    %2322 = vmatpush.msra.mxu0 %v2321
    %v2323 = vand.u32 %v2207, 4294901760
    %v2324 = vsub.f32 %v2207, %v2323
    %2325 = vmatpush.msra.mxu0 %v2324
    %v2326 = vand.u32 %v2206, 4294901760
    %v2327 = vsub.f32 %v2206, %v2326
    %2328 = vmatpush.msra.mxu0 %v2327
    %v2329 = vand.u32 %v2205, 4294901760
    %v2330 = vsub.f32 %v2205, %v2329
    %2331 = vmatpush.msra.mxu0 %v2330
    %v2332 = vand.u32 %v2204, 4294901760
    %v2333 = vsub.f32 %v2204, %v2332
    %2334 = vmatpush.msra.mxu0 %v2333
    %v2335 = vand.u32 %v2203, 4294901760
    %v2336 = vsub.f32 %v2203, %v2335
    %2337 = vmatpush.msra.mxu0 %v2336
    %v2338 = vand.u32 %v2202, 4294901760
    %v2339 = vsub.f32 %v2202, %v2338
    %2340 = vmatpush.msra.mxu0 %v2339
    %v2341 = vand.u32 %v2213, 4294901760
    %v2342 = vsub.f32 %v2213, %v2341
    %2343 = vmatmul.f32.gmra.mxu0 %v2342
    %v2344 = vpop.f32.mrf.mxu0
    %v2345 = vadd.f32 %v2307, %v2344
    %2346 = vdwg.mxu0
    %2347 = vmatpush.msra.mxu0 0.0
    %2348 = vmatpush.msra.mxu0 0.0
    %2349 = vmatpush.msra.mxu0 0.0
    %2350 = vmatpush.msra.mxu0 0.0
    %2351 = vmatpush.msra.mxu0 0.0
    %2352 = vmatpush.msra.mxu0 0.0
    %2353 = vmatpush.msra.mxu0 0.0
    %2354 = vmatpush.msra.mxu0 0.0
    %v2355 = vand.u32 %v2209, 4294901760
    %2356 = vmatpush.msra.mxu0 %v2355
    %v2357 = vand.u32 %v2208, 4294901760
    %2358 = vmatpush.msra.mxu0 %v2357
    %v2359 = vand.u32 %v2207, 4294901760
    %2360 = vmatpush.msra.mxu0 %v2359
    %v2361 = vand.u32 %v2206, 4294901760
    %2362 = vmatpush.msra.mxu0 %v2361
    %v2363 = vand.u32 %v2205, 4294901760
    %2364 = vmatpush.msra.mxu0 %v2363
    %v2365 = vand.u32 %v2204, 4294901760
    %2366 = vmatpush.msra.mxu0 %v2365
    %v2367 = vand.u32 %v2203, 4294901760
    %2368 = vmatpush.msra.mxu0 %v2367
    %v2369 = vand.u32 %v2202, 4294901760
    %2370 = vmatpush.msra.mxu0 %v2369
    %v2371 = vand.u32 %v2213, 4294901760
    %v2372 = vsub.f32 %v2213, %v2371
    %v2373 = vand.u32 %v2372, 4294901760
    %2374 = vmatmul.f32.gmra.mxu0 %v2373
    %v2375 = vpop.f32.mrf.mxu0
    %v2376 = vadd.f32 %v2345, %v2375
    %2377 = vdwg.mxu0
    %2378 = vmatpush.msra.mxu0 0.0
    %2379 = vmatpush.msra.mxu0 0.0
    %2380 = vmatpush.msra.mxu0 0.0
    %2381 = vmatpush.msra.mxu0 0.0
    %2382 = vmatpush.msra.mxu0 0.0
    %2383 = vmatpush.msra.mxu0 0.0
    %2384 = vmatpush.msra.mxu0 0.0
    %2385 = vmatpush.msra.mxu0 0.0
    %v2386 = vand.u32 %v2209, 4294901760
    %v2387 = vsub.f32 %v2209, %v2386
    %v2388 = vand.u32 %v2387, 4294901760
    %2389 = vmatpush.msra.mxu0 %v2388
    %v2390 = vand.u32 %v2208, 4294901760
    %v2391 = vsub.f32 %v2208, %v2390
    %v2392 = vand.u32 %v2391, 4294901760
    %2393 = vmatpush.msra.mxu0 %v2392
    %v2394 = vand.u32 %v2207, 4294901760
    %v2395 = vsub.f32 %v2207, %v2394
    %v2396 = vand.u32 %v2395, 4294901760
    %2397 = vmatpush.msra.mxu0 %v2396
    %v2398 = vand.u32 %v2206, 4294901760
    %v2399 = vsub.f32 %v2206, %v2398
    %v2400 = vand.u32 %v2399, 4294901760
    %2401 = vmatpush.msra.mxu0 %v2400
    %v2402 = vand.u32 %v2205, 4294901760
    %v2403 = vsub.f32 %v2205, %v2402
    %v2404 = vand.u32 %v2403, 4294901760
    %2405 = vmatpush.msra.mxu0 %v2404
    %v2406 = vand.u32 %v2204, 4294901760
    %v2407 = vsub.f32 %v2204, %v2406
    %v2408 = vand.u32 %v2407, 4294901760
    %2409 = vmatpush.msra.mxu0 %v2408
    %v2410 = vand.u32 %v2203, 4294901760
    %v2411 = vsub.f32 %v2203, %v2410
    %v2412 = vand.u32 %v2411, 4294901760
    %2413 = vmatpush.msra.mxu0 %v2412
    %v2414 = vand.u32 %v2202, 4294901760
    %v2415 = vsub.f32 %v2202, %v2414
    %v2416 = vand.u32 %v2415, 4294901760
    %2417 = vmatpush.msra.mxu0 %v2416
    %v2418 = vand.u32 %v2213, 4294901760
    %2419 = vmatmul.f32.gmra.mxu0 %v2418
    %v2420 = vpop.f32.mrf.mxu0
    %v2421 = vadd.f32 %v2376, %v2420
    %2422 = vdwg.mxu0
    %2423 = vmatpush.msra.mxu0 0.0
    %2424 = vmatpush.msra.mxu0 0.0
    %2425 = vmatpush.msra.mxu0 0.0
    %2426 = vmatpush.msra.mxu0 0.0
    %2427 = vmatpush.msra.mxu0 0.0
    %2428 = vmatpush.msra.mxu0 0.0
    %2429 = vmatpush.msra.mxu0 0.0
    %2430 = vmatpush.msra.mxu0 0.0
    %v2431 = vand.u32 %v2209, 4294901760
    %2432 = vmatpush.msra.mxu0 %v2431
    %v2433 = vand.u32 %v2208, 4294901760
    %2434 = vmatpush.msra.mxu0 %v2433
    %v2435 = vand.u32 %v2207, 4294901760
    %2436 = vmatpush.msra.mxu0 %v2435
    %v2437 = vand.u32 %v2206, 4294901760
    %2438 = vmatpush.msra.mxu0 %v2437
    %v2439 = vand.u32 %v2205, 4294901760
    %2440 = vmatpush.msra.mxu0 %v2439
    %v2441 = vand.u32 %v2204, 4294901760
    %2442 = vmatpush.msra.mxu0 %v2441
    %v2443 = vand.u32 %v2203, 4294901760
    %2444 = vmatpush.msra.mxu0 %v2443
    %v2445 = vand.u32 %v2202, 4294901760
    %2446 = vmatpush.msra.mxu0 %v2445
    %v2447 = vand.u32 %v2213, 4294901760
    %2448 = vmatmul.f32.gmra.mxu0 %v2447
    %v2449 = vpop.f32.mrf.mxu0
    %v2450 = vadd.f32 %v2421, %v2449
    %2451 = vdwg.mxu0
    %v2453 = vrot.slane %v2450, 1
    %v2454 = vrot.slane %v2450, 2
    %v2455 = vrot.slane %v2450, 3
    %v2456 = vrot.slane %v2450, 4
    %v2457 = vrot.slane %v2450, 5
    %v2458 = vrot.slane %v2450, 6
    %v2459 = vrot.slane %v2450, 7
    %v2468 = vadd.f32 %v1979, %v2450
    %v2469 = vadd.f32 %v1980, %v2453
    %v2470 = vadd.f32 %v1981, %v2454
    %v2471 = vadd.f32 %v1982, %v2455
    %v2472 = vadd.f32 %v1983, %v2456
    %v2473 = vadd.f32 %v1984, %v2457
    %v2474 = vadd.f32 %v1985, %v2458
    %v2475 = vadd.f32 %v1986, %v2459
    %v2484 = vrot.slane %v2469, 7
    %v2485 = vsel %vm67, %v2484, %v2468
    %v2486 = vrot.slane %v2470, 6
    %v2487 = vsel %vm70, %v2486, %v2485
    %v2488 = vrot.slane %v2471, 5
    %v2489 = vsel %vm73, %v2488, %v2487
    %v2490 = vrot.slane %v2472, 4
    %v2491 = vsel %vm76, %v2490, %v2489
    %v2492 = vrot.slane %v2473, 3
    %v2493 = vsel %vm79, %v2492, %v2491
    %v2494 = vrot.slane %v2474, 2
    %v2495 = vsel %vm82, %v2494, %v2493
    %v2496 = vrot.slane %v2475, 1
    %v2497 = vsel %vm85, %v2496, %v2495
    %v2499 = vsel %vm87, %v2497, 0.0
    %2500 = vadd.xlane.f32.xlu0 %v2499
    %v2501 = vpop.xlane.xlu0 %2500
    %v2502 = vmul.f32 %v2501, %v1873
    %v2504 = vrot.slane %v2502, 1
    %v2505 = vrot.slane %v2502, 2
    %v2506 = vrot.slane %v2502, 3
    %v2507 = vrot.slane %v2502, 4
    %v2508 = vrot.slane %v2502, 5
    %v2509 = vrot.slane %v2502, 6
    %v2510 = vrot.slane %v2502, 7
    %v2519 = vsub.f32 %v2468, %v2502
    %v2520 = vsub.f32 %v2469, %v2504
    %v2521 = vsub.f32 %v2470, %v2505
    %v2522 = vsub.f32 %v2471, %v2506
    %v2523 = vsub.f32 %v2472, %v2507
    %v2524 = vsub.f32 %v2473, %v2508
    %v2525 = vsub.f32 %v2474, %v2509
    %v2526 = vsub.f32 %v2475, %v2510
    %v2527 = vmul.f32 %v2519, %v2519
    %v2528 = vmul.f32 %v2520, %v2520
    %v2529 = vmul.f32 %v2521, %v2521
    %v2530 = vmul.f32 %v2522, %v2522
    %v2531 = vmul.f32 %v2523, %v2523
    %v2532 = vmul.f32 %v2524, %v2524
    %v2533 = vmul.f32 %v2525, %v2525
    %v2534 = vmul.f32 %v2526, %v2526
    %v2543 = vrot.slane %v2528, 7
    %v2544 = vsel %vm67, %v2543, %v2527
    %v2545 = vrot.slane %v2529, 6
    %v2546 = vsel %vm70, %v2545, %v2544
    %v2547 = vrot.slane %v2530, 5
    %v2548 = vsel %vm73, %v2547, %v2546
    %v2549 = vrot.slane %v2531, 4
    %v2550 = vsel %vm76, %v2549, %v2548
    %v2551 = vrot.slane %v2532, 3
    %v2552 = vsel %vm79, %v2551, %v2550
    %v2553 = vrot.slane %v2533, 2
    %v2554 = vsel %vm82, %v2553, %v2552
    %v2555 = vrot.slane %v2534, 1
    %v2556 = vsel %vm85, %v2555, %v2554
    %v2558 = vsel %vm87, %v2556, 0.0
    %2559 = vadd.xlane.f32.xlu0 %v2558
    %v2560 = vpop.xlane.xlu0 %2559
    %v2561 = vmul.f32 %v2560, %v1873
    %v2562 = vadd.f32 %v2561, 1e-05
    %v2563 = vrsqrt.pop %v2562
    %v2564 = vmul.f32 %v2563, %v2562
    %v2565 = vmul.f32 %v2564, %v2563
    %v2566 = vmul.f32 0.5, %v2565
    %v2567 = vsub.f32 1.5, %v2566
    %v2568 = vmul.f32 %v2563, %v2567
    %vm2569 = vweird.f32 %v2562
    %vm2570 = vweird.f32 %v2563
    %vm2571 = vmor %vm2569, %vm2570
    %v2572 = vsel %vm2571, %v2563, %v2568
    %v2574 = vrot.slane %v2572, 1
    %v2575 = vrot.slane %v2572, 2
    %v2576 = vrot.slane %v2572, 3
    %v2577 = vrot.slane %v2572, 4
    %v2578 = vrot.slane %v2572, 5
    %v2579 = vrot.slane %v2572, 6
    %v2580 = vrot.slane %v2572, 7
    %v2589 = vmul.f32 %v2519, %v2572
    %v2590 = vmul.f32 %v2520, %v2574
    %v2591 = vmul.f32 %v2521, %v2575
    %v2592 = vmul.f32 %v2522, %v2576
    %v2593 = vmul.f32 %v2523, %v2577
    %v2594 = vmul.f32 %v2524, %v2578
    %v2595 = vmul.f32 %v2525, %v2579
    %v2596 = vmul.f32 %v2526, %v2580
    %v2597 = vperm.slane %v55, 0
    %v2598 = vmul.f32 %v2589, %v2597
    %v2599 = vmul.f32 %v2590, %v2597
    %v2600 = vmul.f32 %v2591, %v2597
    %v2601 = vmul.f32 %v2592, %v2597
    %v2602 = vmul.f32 %v2593, %v2597
    %v2603 = vmul.f32 %v2594, %v2597
    %v2604 = vmul.f32 %v2595, %v2597
    %v2605 = vmul.f32 %v2596, %v2597
    %v2606 = vperm.slane %v56, 0
    %v2607 = vadd.f32 %v2598, %v2606
    %v2608 = vadd.f32 %v2599, %v2606
    %v2609 = vadd.f32 %v2600, %v2606
    %v2610 = vadd.f32 %v2601, %v2606
    %v2611 = vadd.f32 %v2602, %v2606
    %v2612 = vadd.f32 %v2603, %v2606
    %v2613 = vadd.f32 %v2604, %v2606
    %v2614 = vadd.f32 %v2605, %v2606
    %s2615 = scalar_lea.vmem %s1, 32
    %v2616 = vld [vmem:[%s2615] sm:$0xff]
    %v2617 = vld [vmem:[%s2615 + $0x8] sm:$0xff]
    %v2618 = vld [vmem:[%s2615 + $0x10] sm:$0xff]
    %v2619 = vld [vmem:[%s2615 + $0x18] sm:$0xff]
    %s2620 = scalar_lea.vmem %s4, 8
    %v2621 = vld [vmem:[%s2620] sm:$0x1]
    %v2622 = vld [vmem:[%s2620 + $0x1] sm:$0x1]
    %v2623 = vld [vmem:[%s2620 + $0x2] sm:$0x1]
    %v2624 = vld [vmem:[%s2620 + $0x3] sm:$0x1]
    %v2625 = vld [vmem:[%s2620 + $0x4] sm:$0x1]
    %v2626 = vld [vmem:[%s2620 + $0x5] sm:$0x1]
    %v2627 = vld [vmem:[%s2620 + $0x6] sm:$0x1]
    %v2628 = vld [vmem:[%s2620 + $0x7] sm:$0x1]
    %v2629 = vperm.slane %v2621, 0
    %v2638 = vrot.slane %v2608, 7
    %v2639 = vsel %vm67, %v2638, %v2607
    %v2640 = vrot.slane %v2609, 6
    %v2641 = vsel %vm70, %v2640, %v2639
    %v2642 = vrot.slane %v2610, 5
    %v2643 = vsel %vm73, %v2642, %v2641
    %v2644 = vrot.slane %v2611, 4
    %v2645 = vsel %vm76, %v2644, %v2643
    %v2646 = vrot.slane %v2612, 3
    %v2647 = vsel %vm79, %v2646, %v2645
    %v2648 = vrot.slane %v2613, 2
    %v2649 = vsel %vm82, %v2648, %v2647
    %v2650 = vrot.slane %v2614, 1
    %v2651 = vsel %vm85, %v2650, %v2649
    %v2652 = vsel %vm87, %v2651, 0
    %2654 = vmatpush.msra.mxu0 0.0
    %2655 = vmatpush.msra.mxu0 0.0
    %2656 = vmatpush.msra.mxu0 0.0
    %2657 = vmatpush.msra.mxu0 0.0
    %2658 = vmatpush.msra.mxu0 0.0
    %2659 = vmatpush.msra.mxu0 0.0
    %2660 = vmatpush.msra.mxu0 0.0
    %2661 = vmatpush.msra.mxu0 0.0
    %2662 = vmatpush.msra.mxu0 0.0
    %2663 = vmatpush.msra.mxu0 0.0
    %2664 = vmatpush.msra.mxu0 0.0
    %2665 = vmatpush.msra.mxu0 0.0
    %v2666 = vand.u32 %v2619, 4294901760
    %2667 = vmatpush.msra.mxu0 %v2666
    %v2668 = vand.u32 %v2618, 4294901760
    %2669 = vmatpush.msra.mxu0 %v2668
    %v2670 = vand.u32 %v2617, 4294901760
    %2671 = vmatpush.msra.mxu0 %v2670
    %v2672 = vand.u32 %v2616, 4294901760
    %2673 = vmatpush.msra.mxu0 %v2672
    %v2674 = vand.u32 %v2652, 4294901760
    %v2675 = vsub.f32 %v2652, %v2674
    %v2676 = vand.u32 %v2675, 4294901760
    %v2677 = vsub.f32 %v2675, %v2676
    %v2678 = vand.u32 %v2677, 4294901760
    %2679 = vmatmul.f32.gmra.mxu0 %v2678
    %v2680 = vpop.f32.mrf.mxu0
    %v2681 = vadd.f32 %v2629, %v2680
    %2682 = vdwg.mxu0
    %2683 = vmatpush.msra.mxu0 0.0
    %2684 = vmatpush.msra.mxu0 0.0
    %2685 = vmatpush.msra.mxu0 0.0
    %2686 = vmatpush.msra.mxu0 0.0
    %2687 = vmatpush.msra.mxu0 0.0
    %2688 = vmatpush.msra.mxu0 0.0
    %2689 = vmatpush.msra.mxu0 0.0
    %2690 = vmatpush.msra.mxu0 0.0
    %2691 = vmatpush.msra.mxu0 0.0
    %2692 = vmatpush.msra.mxu0 0.0
    %2693 = vmatpush.msra.mxu0 0.0
    %2694 = vmatpush.msra.mxu0 0.0
    %v2695 = vand.u32 %v2619, 4294901760
    %v2696 = vsub.f32 %v2619, %v2695
    %v2697 = vand.u32 %v2696, 4294901760
    %v2698 = vsub.f32 %v2696, %v2697
    %v2699 = vand.u32 %v2698, 4294901760
    %2700 = vmatpush.msra.mxu0 %v2699
    %v2701 = vand.u32 %v2618, 4294901760
    %v2702 = vsub.f32 %v2618, %v2701
    %v2703 = vand.u32 %v2702, 4294901760
    %v2704 = vsub.f32 %v2702, %v2703
    %v2705 = vand.u32 %v2704, 4294901760
    %2706 = vmatpush.msra.mxu0 %v2705
    %v2707 = vand.u32 %v2617, 4294901760
    %v2708 = vsub.f32 %v2617, %v2707
    %v2709 = vand.u32 %v2708, 4294901760
    %v2710 = vsub.f32 %v2708, %v2709
    %v2711 = vand.u32 %v2710, 4294901760
    %2712 = vmatpush.msra.mxu0 %v2711
    %v2713 = vand.u32 %v2616, 4294901760
    %v2714 = vsub.f32 %v2616, %v2713
    %v2715 = vand.u32 %v2714, 4294901760
    %v2716 = vsub.f32 %v2714, %v2715
    %v2717 = vand.u32 %v2716, 4294901760
    %2718 = vmatpush.msra.mxu0 %v2717
    %v2719 = vand.u32 %v2652, 4294901760
    %2720 = vmatmul.f32.gmra.mxu0 %v2719
    %v2721 = vpop.f32.mrf.mxu0
    %v2722 = vadd.f32 %v2681, %v2721
    %2723 = vdwg.mxu0
    %2724 = vmatpush.msra.mxu0 0.0
    %2725 = vmatpush.msra.mxu0 0.0
    %2726 = vmatpush.msra.mxu0 0.0
    %2727 = vmatpush.msra.mxu0 0.0
    %2728 = vmatpush.msra.mxu0 0.0
    %2729 = vmatpush.msra.mxu0 0.0
    %2730 = vmatpush.msra.mxu0 0.0
    %2731 = vmatpush.msra.mxu0 0.0
    %2732 = vmatpush.msra.mxu0 0.0
    %2733 = vmatpush.msra.mxu0 0.0
    %2734 = vmatpush.msra.mxu0 0.0
    %2735 = vmatpush.msra.mxu0 0.0
    %v2736 = vand.u32 %v2619, 4294901760
    %v2737 = vsub.f32 %v2619, %v2736
    %2738 = vmatpush.msra.mxu0 %v2737
    %v2739 = vand.u32 %v2618, 4294901760
    %v2740 = vsub.f32 %v2618, %v2739
    %2741 = vmatpush.msra.mxu0 %v2740
    %v2742 = vand.u32 %v2617, 4294901760
    %v2743 = vsub.f32 %v2617, %v2742
    %2744 = vmatpush.msra.mxu0 %v2743
    %v2745 = vand.u32 %v2616, 4294901760
    %v2746 = vsub.f32 %v2616, %v2745
    %2747 = vmatpush.msra.mxu0 %v2746
    %v2748 = vand.u32 %v2652, 4294901760
    %v2749 = vsub.f32 %v2652, %v2748
    %2750 = vmatmul.f32.gmra.mxu0 %v2749
    %v2751 = vpop.f32.mrf.mxu0
    %v2752 = vadd.f32 %v2722, %v2751
    %2753 = vdwg.mxu0
    %2754 = vmatpush.msra.mxu0 0.0
    %2755 = vmatpush.msra.mxu0 0.0
    %2756 = vmatpush.msra.mxu0 0.0
    %2757 = vmatpush.msra.mxu0 0.0
    %2758 = vmatpush.msra.mxu0 0.0
    %2759 = vmatpush.msra.mxu0 0.0
    %2760 = vmatpush.msra.mxu0 0.0
    %2761 = vmatpush.msra.mxu0 0.0
    %2762 = vmatpush.msra.mxu0 0.0
    %2763 = vmatpush.msra.mxu0 0.0
    %2764 = vmatpush.msra.mxu0 0.0
    %2765 = vmatpush.msra.mxu0 0.0
    %v2766 = vand.u32 %v2619, 4294901760
    %2767 = vmatpush.msra.mxu0 %v2766
    %v2768 = vand.u32 %v2618, 4294901760
    %2769 = vmatpush.msra.mxu0 %v2768
    %v2770 = vand.u32 %v2617, 4294901760
    %2771 = vmatpush.msra.mxu0 %v2770
    %v2772 = vand.u32 %v2616, 4294901760
    %2773 = vmatpush.msra.mxu0 %v2772
    %v2774 = vand.u32 %v2652, 4294901760
    %v2775 = vsub.f32 %v2652, %v2774
    %v2776 = vand.u32 %v2775, 4294901760
    %2777 = vmatmul.f32.gmra.mxu0 %v2776
    %v2778 = vpop.f32.mrf.mxu0
    %v2779 = vadd.f32 %v2752, %v2778
    %2780 = vdwg.mxu0
    %2781 = vmatpush.msra.mxu0 0.0
    %2782 = vmatpush.msra.mxu0 0.0
    %2783 = vmatpush.msra.mxu0 0.0
    %2784 = vmatpush.msra.mxu0 0.0
    %2785 = vmatpush.msra.mxu0 0.0
    %2786 = vmatpush.msra.mxu0 0.0
    %2787 = vmatpush.msra.mxu0 0.0
    %2788 = vmatpush.msra.mxu0 0.0
    %2789 = vmatpush.msra.mxu0 0.0
    %2790 = vmatpush.msra.mxu0 0.0
    %2791 = vmatpush.msra.mxu0 0.0
    %2792 = vmatpush.msra.mxu0 0.0
    %v2793 = vand.u32 %v2619, 4294901760
    %v2794 = vsub.f32 %v2619, %v2793
    %v2795 = vand.u32 %v2794, 4294901760
    %2796 = vmatpush.msra.mxu0 %v2795
    %v2797 = vand.u32 %v2618, 4294901760
    %v2798 = vsub.f32 %v2618, %v2797
    %v2799 = vand.u32 %v2798, 4294901760
    %2800 = vmatpush.msra.mxu0 %v2799
    %v2801 = vand.u32 %v2617, 4294901760
    %v2802 = vsub.f32 %v2617, %v2801
    %v2803 = vand.u32 %v2802, 4294901760
    %2804 = vmatpush.msra.mxu0 %v2803
    %v2805 = vand.u32 %v2616, 4294901760
    %v2806 = vsub.f32 %v2616, %v2805
    %v2807 = vand.u32 %v2806, 4294901760
    %2808 = vmatpush.msra.mxu0 %v2807
    %v2809 = vand.u32 %v2652, 4294901760
    %2810 = vmatmul.f32.gmra.mxu0 %v2809
    %v2811 = vpop.f32.mrf.mxu0
    %v2812 = vadd.f32 %v2779, %v2811
    %2813 = vdwg.mxu0
    %2814 = vmatpush.msra.mxu0 0.0
    %2815 = vmatpush.msra.mxu0 0.0
    %2816 = vmatpush.msra.mxu0 0.0
    %2817 = vmatpush.msra.mxu0 0.0
    %2818 = vmatpush.msra.mxu0 0.0
    %2819 = vmatpush.msra.mxu0 0.0
    %2820 = vmatpush.msra.mxu0 0.0
    %2821 = vmatpush.msra.mxu0 0.0
    %2822 = vmatpush.msra.mxu0 0.0
    %2823 = vmatpush.msra.mxu0 0.0
    %2824 = vmatpush.msra.mxu0 0.0
    %2825 = vmatpush.msra.mxu0 0.0
    %v2826 = vand.u32 %v2619, 4294901760
    %2827 = vmatpush.msra.mxu0 %v2826
    %v2828 = vand.u32 %v2618, 4294901760
    %2829 = vmatpush.msra.mxu0 %v2828
    %v2830 = vand.u32 %v2617, 4294901760
    %2831 = vmatpush.msra.mxu0 %v2830
    %v2832 = vand.u32 %v2616, 4294901760
    %2833 = vmatpush.msra.mxu0 %v2832
    %v2834 = vand.u32 %v2652, 4294901760
    %2835 = vmatmul.f32.gmra.mxu0 %v2834
    %v2836 = vpop.f32.mrf.mxu0
    %v2837 = vadd.f32 %v2812, %v2836
    %2838 = vdwg.mxu0
    %2840 = vrot.lane.b32.xlu0 %v2837, 96
    %v2841 = vpop.permute.xlu0 %2840
    %v2842 = vsel %vm278, %v2837, 0
    %v2844 = vsel %vm278, %v2841, 0
    %2846 = vmatpush.xpose.msra.mxu0 0.0
    %2847 = vmatpush.xpose.msra.mxu0 0.0
    %2848 = vmatpush.xpose.msra.mxu0 0.0
    %2849 = vmatpush.xpose.msra.mxu0 0.0
    %2850 = vmatpush.xpose.msra.mxu0 0.0
    %2851 = vmatpush.xpose.msra.mxu0 0.0
    %2852 = vmatpush.xpose.msra.mxu0 0.0
    %2853 = vmatpush.xpose.msra.mxu0 0.0
    %2854 = vmatpush.xpose.msra.mxu0 0.0
    %2855 = vmatpush.xpose.msra.mxu0 0.0
    %2856 = vmatpush.xpose.msra.mxu0 0.0
    %2857 = vmatpush.xpose.msra.mxu0 0.0
    %2858 = vmatpush.xpose.msra.mxu0 0.0
    %2859 = vmatpush.xpose.msra.mxu0 0.0
    %2860 = vmatpush.xpose.msra.mxu0 0.0
    %v2861 = vand.u32 %v2844, 4294901760
    %2862 = vmatpush.xpose.msra.mxu0 %v2861
    %v2863 = vand.u32 %v2842, 4294901760
    %v2864 = vsub.f32 %v2842, %v2863
    %v2865 = vand.u32 %v2864, 4294901760
    %v2866 = vsub.f32 %v2864, %v2865
    %v2867 = vand.u32 %v2866, 4294901760
    %2868 = vmatmul.f32.gmra.mxu0 %v2867
    %v2869 = vpop.f32.mrf.mxu0
    %v2870 = vadd.f32 0.0, %v2869
    %2871 = vdwg.mxu0
    %2872 = vmatpush.xpose.msra.mxu0 0.0
    %2873 = vmatpush.xpose.msra.mxu0 0.0
    %2874 = vmatpush.xpose.msra.mxu0 0.0
    %2875 = vmatpush.xpose.msra.mxu0 0.0
    %2876 = vmatpush.xpose.msra.mxu0 0.0
    %2877 = vmatpush.xpose.msra.mxu0 0.0
    %2878 = vmatpush.xpose.msra.mxu0 0.0
    %2879 = vmatpush.xpose.msra.mxu0 0.0
    %2880 = vmatpush.xpose.msra.mxu0 0.0
    %2881 = vmatpush.xpose.msra.mxu0 0.0
    %2882 = vmatpush.xpose.msra.mxu0 0.0
    %2883 = vmatpush.xpose.msra.mxu0 0.0
    %2884 = vmatpush.xpose.msra.mxu0 0.0
    %2885 = vmatpush.xpose.msra.mxu0 0.0
    %2886 = vmatpush.xpose.msra.mxu0 0.0
    %v2887 = vand.u32 %v2844, 4294901760
    %v2888 = vsub.f32 %v2844, %v2887
    %v2889 = vand.u32 %v2888, 4294901760
    %v2890 = vsub.f32 %v2888, %v2889
    %v2891 = vand.u32 %v2890, 4294901760
    %2892 = vmatpush.xpose.msra.mxu0 %v2891
    %v2893 = vand.u32 %v2842, 4294901760
    %2894 = vmatmul.f32.gmra.mxu0 %v2893
    %v2895 = vpop.f32.mrf.mxu0
    %v2896 = vadd.f32 %v2870, %v2895
    %2897 = vdwg.mxu0
    %2898 = vmatpush.xpose.msra.mxu0 0.0
    %2899 = vmatpush.xpose.msra.mxu0 0.0
    %2900 = vmatpush.xpose.msra.mxu0 0.0
    %2901 = vmatpush.xpose.msra.mxu0 0.0
    %2902 = vmatpush.xpose.msra.mxu0 0.0
    %2903 = vmatpush.xpose.msra.mxu0 0.0
    %2904 = vmatpush.xpose.msra.mxu0 0.0
    %2905 = vmatpush.xpose.msra.mxu0 0.0
    %2906 = vmatpush.xpose.msra.mxu0 0.0
    %2907 = vmatpush.xpose.msra.mxu0 0.0
    %2908 = vmatpush.xpose.msra.mxu0 0.0
    %2909 = vmatpush.xpose.msra.mxu0 0.0
    %2910 = vmatpush.xpose.msra.mxu0 0.0
    %2911 = vmatpush.xpose.msra.mxu0 0.0
    %2912 = vmatpush.xpose.msra.mxu0 0.0
    %v2913 = vand.u32 %v2844, 4294901760
    %v2914 = vsub.f32 %v2844, %v2913
    %2915 = vmatpush.xpose.msra.mxu0 %v2914
    %v2916 = vand.u32 %v2842, 4294901760
    %v2917 = vsub.f32 %v2842, %v2916
    %2918 = vmatmul.f32.gmra.mxu0 %v2917
    %v2919 = vpop.f32.mrf.mxu0
    %v2920 = vadd.f32 %v2896, %v2919
    %2921 = vdwg.mxu0
    %2922 = vmatpush.xpose.msra.mxu0 0.0
    %2923 = vmatpush.xpose.msra.mxu0 0.0
    %2924 = vmatpush.xpose.msra.mxu0 0.0
    %2925 = vmatpush.xpose.msra.mxu0 0.0
    %2926 = vmatpush.xpose.msra.mxu0 0.0
    %2927 = vmatpush.xpose.msra.mxu0 0.0
    %2928 = vmatpush.xpose.msra.mxu0 0.0
    %2929 = vmatpush.xpose.msra.mxu0 0.0
    %2930 = vmatpush.xpose.msra.mxu0 0.0
    %2931 = vmatpush.xpose.msra.mxu0 0.0
    %2932 = vmatpush.xpose.msra.mxu0 0.0
    %2933 = vmatpush.xpose.msra.mxu0 0.0
    %2934 = vmatpush.xpose.msra.mxu0 0.0
    %2935 = vmatpush.xpose.msra.mxu0 0.0
    %2936 = vmatpush.xpose.msra.mxu0 0.0
    %v2937 = vand.u32 %v2844, 4294901760
    %2938 = vmatpush.xpose.msra.mxu0 %v2937
    %v2939 = vand.u32 %v2842, 4294901760
    %v2940 = vsub.f32 %v2842, %v2939
    %v2941 = vand.u32 %v2940, 4294901760
    %2942 = vmatmul.f32.gmra.mxu0 %v2941
    %v2943 = vpop.f32.mrf.mxu0
    %v2944 = vadd.f32 %v2920, %v2943
    %2945 = vdwg.mxu0
    %2946 = vmatpush.xpose.msra.mxu0 0.0
    %2947 = vmatpush.xpose.msra.mxu0 0.0
    %2948 = vmatpush.xpose.msra.mxu0 0.0
    %2949 = vmatpush.xpose.msra.mxu0 0.0
    %2950 = vmatpush.xpose.msra.mxu0 0.0
    %2951 = vmatpush.xpose.msra.mxu0 0.0
    %2952 = vmatpush.xpose.msra.mxu0 0.0
    %2953 = vmatpush.xpose.msra.mxu0 0.0
    %2954 = vmatpush.xpose.msra.mxu0 0.0
    %2955 = vmatpush.xpose.msra.mxu0 0.0
    %2956 = vmatpush.xpose.msra.mxu0 0.0
    %2957 = vmatpush.xpose.msra.mxu0 0.0
    %2958 = vmatpush.xpose.msra.mxu0 0.0
    %2959 = vmatpush.xpose.msra.mxu0 0.0
    %2960 = vmatpush.xpose.msra.mxu0 0.0
    %v2961 = vand.u32 %v2844, 4294901760
    %v2962 = vsub.f32 %v2844, %v2961
    %v2963 = vand.u32 %v2962, 4294901760
    %2964 = vmatpush.xpose.msra.mxu0 %v2963
    %v2965 = vand.u32 %v2842, 4294901760
    %2966 = vmatmul.f32.gmra.mxu0 %v2965
    %v2967 = vpop.f32.mrf.mxu0
    %v2968 = vadd.f32 %v2944, %v2967
    %2969 = vdwg.mxu0
    %2970 = vmatpush.xpose.msra.mxu0 0.0
    %2971 = vmatpush.xpose.msra.mxu0 0.0
    %2972 = vmatpush.xpose.msra.mxu0 0.0
    %2973 = vmatpush.xpose.msra.mxu0 0.0
    %2974 = vmatpush.xpose.msra.mxu0 0.0
    %2975 = vmatpush.xpose.msra.mxu0 0.0
    %2976 = vmatpush.xpose.msra.mxu0 0.0
    %2977 = vmatpush.xpose.msra.mxu0 0.0
    %2978 = vmatpush.xpose.msra.mxu0 0.0
    %2979 = vmatpush.xpose.msra.mxu0 0.0
    %2980 = vmatpush.xpose.msra.mxu0 0.0
    %2981 = vmatpush.xpose.msra.mxu0 0.0
    %2982 = vmatpush.xpose.msra.mxu0 0.0
    %2983 = vmatpush.xpose.msra.mxu0 0.0
    %2984 = vmatpush.xpose.msra.mxu0 0.0
    %v2985 = vand.u32 %v2844, 4294901760
    %2986 = vmatpush.xpose.msra.mxu0 %v2985
    %v2987 = vand.u32 %v2842, 4294901760
    %2988 = vmatmul.f32.gmra.mxu0 %v2987
    %v2989 = vpop.f32.mrf.mxu0
    %v2990 = vadd.f32 %v2968, %v2989
    %2991 = vdwg.mxu0
    %v2992 = vsel %vm278, %v2990, -inf
    %2993 = vmax.xlane.f32.xlu0 %v2992
    %v2994 = vpop.xlane.xlu0 %2993
    %v2995 = vsub.f32 %v2990, %v2994
    %v2996 = vmul.f32 %v2995, 1.442695
    %v2997 = vpow.pop %v2996
    %v2998 = vsel %vm278, %v2997, 0.0
    %2999 = vadd.xlane.f32.xlu0 %v2998
    %v3000 = vpop.xlane.xlu0 %2999
    %v3001 = vrcp.pop %v3000
    %v3002 = vmul.f32 %v3000, %v3001
    %v3003 = vsub.f32 1.0, %v3002
    %v3004 = vmul.f32 %v3001, %v3003
    %v3005 = vadd.f32 %v3001, %v3004
    %vm3006 = vweird.f32 %v3000
    %vm3007 = vweird.f32 %v3001
    %vm3008 = vmor %vm3006, %vm3007
    %v3009 = vsel %vm3008, %v3001, %v3005
    %v3010 = vand.u32 2147483647, %v3000
    %vm3011 = vcmp.eq.f32.partialorder %v3010, 8.507059e+37
    %v3012 = vand.u32 %v3000, 2147483648
    %v3013 = vor.u32 1.1754944e-38, %v3012
    %v3014 = vsel %vm3011, %v3013, %v3009
    %v3015 = vmul.f32 %v2997, %v3014
    %3016 = vrot.lane.b32.xlu0 %v2837, 64
    %v3017 = vpop.permute.xlu0 %3016
    %v3020 = vsel %vm278, %v3015, 0
    %3022 = vmatpush.msra.mxu0 0.0
    %3023 = vmatpush.msra.mxu0 0.0
    %3024 = vmatpush.msra.mxu0 0.0
    %3025 = vmatpush.msra.mxu0 0.0
    %3026 = vmatpush.msra.mxu0 0.0
    %3027 = vmatpush.msra.mxu0 0.0
    %3028 = vmatpush.msra.mxu0 0.0
    %3029 = vmatpush.msra.mxu0 0.0
    %3030 = vmatpush.msra.mxu0 0.0
    %3031 = vmatpush.msra.mxu0 0.0
    %3032 = vmatpush.msra.mxu0 0.0
    %3033 = vmatpush.msra.mxu0 0.0
    %3034 = vmatpush.msra.mxu0 0.0
    %3035 = vmatpush.msra.mxu0 0.0
    %3036 = vmatpush.msra.mxu0 0.0
    %v3037 = vand.u32 %v3017, 4294901760
    %3038 = vmatpush.msra.mxu0 %v3037
    %v3039 = vand.u32 %v3020, 4294901760
    %v3040 = vsub.f32 %v3020, %v3039
    %v3041 = vand.u32 %v3040, 4294901760
    %v3042 = vsub.f32 %v3040, %v3041
    %v3043 = vand.u32 %v3042, 4294901760
    %3044 = vmatmul.f32.gmra.mxu0 %v3043
    %v3045 = vpop.f32.mrf.mxu0
    %v3046 = vadd.f32 0.0, %v3045
    %3047 = vdwg.mxu0
    %3048 = vmatpush.msra.mxu0 0.0
    %3049 = vmatpush.msra.mxu0 0.0
    %3050 = vmatpush.msra.mxu0 0.0
    %3051 = vmatpush.msra.mxu0 0.0
    %3052 = vmatpush.msra.mxu0 0.0
    %3053 = vmatpush.msra.mxu0 0.0
    %3054 = vmatpush.msra.mxu0 0.0
    %3055 = vmatpush.msra.mxu0 0.0
    %3056 = vmatpush.msra.mxu0 0.0
    %3057 = vmatpush.msra.mxu0 0.0
    %3058 = vmatpush.msra.mxu0 0.0
    %3059 = vmatpush.msra.mxu0 0.0
    %3060 = vmatpush.msra.mxu0 0.0
    %3061 = vmatpush.msra.mxu0 0.0
    %3062 = vmatpush.msra.mxu0 0.0
    %v3063 = vand.u32 %v3017, 4294901760
    %v3064 = vsub.f32 %v3017, %v3063
    %v3065 = vand.u32 %v3064, 4294901760
    %v3066 = vsub.f32 %v3064, %v3065
    %v3067 = vand.u32 %v3066, 4294901760
    %3068 = vmatpush.msra.mxu0 %v3067
    %v3069 = vand.u32 %v3020, 4294901760
    %3070 = vmatmul.f32.gmra.mxu0 %v3069
    %v3071 = vpop.f32.mrf.mxu0
    %v3072 = vadd.f32 %v3046, %v3071
    %3073 = vdwg.mxu0
    %3074 = vmatpush.msra.mxu0 0.0
    %3075 = vmatpush.msra.mxu0 0.0
    %3076 = vmatpush.msra.mxu0 0.0
    %3077 = vmatpush.msra.mxu0 0.0
    %3078 = vmatpush.msra.mxu0 0.0
    %3079 = vmatpush.msra.mxu0 0.0
    %3080 = vmatpush.msra.mxu0 0.0
    %3081 = vmatpush.msra.mxu0 0.0
    %3082 = vmatpush.msra.mxu0 0.0
    %3083 = vmatpush.msra.mxu0 0.0
    %3084 = vmatpush.msra.mxu0 0.0
    %3085 = vmatpush.msra.mxu0 0.0
    %3086 = vmatpush.msra.mxu0 0.0
    %3087 = vmatpush.msra.mxu0 0.0
    %3088 = vmatpush.msra.mxu0 0.0
    %v3089 = vand.u32 %v3017, 4294901760
    %v3090 = vsub.f32 %v3017, %v3089
    %3091 = vmatpush.msra.mxu0 %v3090
    %v3092 = vand.u32 %v3020, 4294901760
    %v3093 = vsub.f32 %v3020, %v3092
    %3094 = vmatmul.f32.gmra.mxu0 %v3093
    %v3095 = vpop.f32.mrf.mxu0
    %v3096 = vadd.f32 %v3072, %v3095
    %3097 = vdwg.mxu0
    %3098 = vmatpush.msra.mxu0 0.0
    %3099 = vmatpush.msra.mxu0 0.0
    %3100 = vmatpush.msra.mxu0 0.0
    %3101 = vmatpush.msra.mxu0 0.0
    %3102 = vmatpush.msra.mxu0 0.0
    %3103 = vmatpush.msra.mxu0 0.0
    %3104 = vmatpush.msra.mxu0 0.0
    %3105 = vmatpush.msra.mxu0 0.0
    %3106 = vmatpush.msra.mxu0 0.0
    %3107 = vmatpush.msra.mxu0 0.0
    %3108 = vmatpush.msra.mxu0 0.0
    %3109 = vmatpush.msra.mxu0 0.0
    %3110 = vmatpush.msra.mxu0 0.0
    %3111 = vmatpush.msra.mxu0 0.0
    %3112 = vmatpush.msra.mxu0 0.0
    %v3113 = vand.u32 %v3017, 4294901760
    %3114 = vmatpush.msra.mxu0 %v3113
    %v3115 = vand.u32 %v3020, 4294901760
    %v3116 = vsub.f32 %v3020, %v3115
    %v3117 = vand.u32 %v3116, 4294901760
    %3118 = vmatmul.f32.gmra.mxu0 %v3117
    %v3119 = vpop.f32.mrf.mxu0
    %v3120 = vadd.f32 %v3096, %v3119
    %3121 = vdwg.mxu0
    %3122 = vmatpush.msra.mxu0 0.0
    %3123 = vmatpush.msra.mxu0 0.0
    %3124 = vmatpush.msra.mxu0 0.0
    %3125 = vmatpush.msra.mxu0 0.0
    %3126 = vmatpush.msra.mxu0 0.0
    %3127 = vmatpush.msra.mxu0 0.0
    %3128 = vmatpush.msra.mxu0 0.0
    %3129 = vmatpush.msra.mxu0 0.0
    %3130 = vmatpush.msra.mxu0 0.0
    %3131 = vmatpush.msra.mxu0 0.0
    %3132 = vmatpush.msra.mxu0 0.0
    %3133 = vmatpush.msra.mxu0 0.0
    %3134 = vmatpush.msra.mxu0 0.0
    %3135 = vmatpush.msra.mxu0 0.0
    %3136 = vmatpush.msra.mxu0 0.0
    %v3137 = vand.u32 %v3017, 4294901760
    %v3138 = vsub.f32 %v3017, %v3137
    %v3139 = vand.u32 %v3138, 4294901760
    %3140 = vmatpush.msra.mxu0 %v3139
    %v3141 = vand.u32 %v3020, 4294901760
    %3142 = vmatmul.f32.gmra.mxu0 %v3141
    %v3143 = vpop.f32.mrf.mxu0
    %v3144 = vadd.f32 %v3120, %v3143
    %3145 = vdwg.mxu0
    %3146 = vmatpush.msra.mxu0 0.0
    %3147 = vmatpush.msra.mxu0 0.0
    %3148 = vmatpush.msra.mxu0 0.0
    %3149 = vmatpush.msra.mxu0 0.0
    %3150 = vmatpush.msra.mxu0 0.0
    %3151 = vmatpush.msra.mxu0 0.0
    %3152 = vmatpush.msra.mxu0 0.0
    %3153 = vmatpush.msra.mxu0 0.0
    %3154 = vmatpush.msra.mxu0 0.0
    %3155 = vmatpush.msra.mxu0 0.0
    %3156 = vmatpush.msra.mxu0 0.0
    %3157 = vmatpush.msra.mxu0 0.0
    %3158 = vmatpush.msra.mxu0 0.0
    %3159 = vmatpush.msra.mxu0 0.0
    %3160 = vmatpush.msra.mxu0 0.0
    %v3161 = vand.u32 %v3017, 4294901760
    %3162 = vmatpush.msra.mxu0 %v3161
    %v3163 = vand.u32 %v3020, 4294901760
    %3164 = vmatmul.f32.gmra.mxu0 %v3163
    %v3165 = vpop.f32.mrf.mxu0
    %v3166 = vadd.f32 %v3144, %v3165
    %3167 = vdwg.mxu0
    %3168 = vrot.lane.b32.xlu0 %v2837, 120
    %v3169 = vpop.permute.xlu0 %3168
    %3170 = vrot.lane.b32.xlu0 %v2837, 88
    %v3171 = vpop.permute.xlu0 %3170
    %v3172 = vsel %vm278, %v3169, 0
    %v3174 = vsel %vm278, %v3171, 0
    %3176 = vmatpush.xpose.msra.mxu0 0.0
    %3177 = vmatpush.xpose.msra.mxu0 0.0
    %3178 = vmatpush.xpose.msra.mxu0 0.0
    %3179 = vmatpush.xpose.msra.mxu0 0.0
    %3180 = vmatpush.xpose.msra.mxu0 0.0
    %3181 = vmatpush.xpose.msra.mxu0 0.0
    %3182 = vmatpush.xpose.msra.mxu0 0.0
    %3183 = vmatpush.xpose.msra.mxu0 0.0
    %3184 = vmatpush.xpose.msra.mxu0 0.0
    %3185 = vmatpush.xpose.msra.mxu0 0.0
    %3186 = vmatpush.xpose.msra.mxu0 0.0
    %3187 = vmatpush.xpose.msra.mxu0 0.0
    %3188 = vmatpush.xpose.msra.mxu0 0.0
    %3189 = vmatpush.xpose.msra.mxu0 0.0
    %3190 = vmatpush.xpose.msra.mxu0 0.0
    %v3191 = vand.u32 %v3174, 4294901760
    %3192 = vmatpush.xpose.msra.mxu0 %v3191
    %v3193 = vand.u32 %v3172, 4294901760
    %v3194 = vsub.f32 %v3172, %v3193
    %v3195 = vand.u32 %v3194, 4294901760
    %v3196 = vsub.f32 %v3194, %v3195
    %v3197 = vand.u32 %v3196, 4294901760
    %3198 = vmatmul.f32.gmra.mxu0 %v3197
    %v3199 = vpop.f32.mrf.mxu0
    %v3200 = vadd.f32 0.0, %v3199
    %3201 = vdwg.mxu0
    %3202 = vmatpush.xpose.msra.mxu0 0.0
    %3203 = vmatpush.xpose.msra.mxu0 0.0
    %3204 = vmatpush.xpose.msra.mxu0 0.0
    %3205 = vmatpush.xpose.msra.mxu0 0.0
    %3206 = vmatpush.xpose.msra.mxu0 0.0
    %3207 = vmatpush.xpose.msra.mxu0 0.0
    %3208 = vmatpush.xpose.msra.mxu0 0.0
    %3209 = vmatpush.xpose.msra.mxu0 0.0
    %3210 = vmatpush.xpose.msra.mxu0 0.0
    %3211 = vmatpush.xpose.msra.mxu0 0.0
    %3212 = vmatpush.xpose.msra.mxu0 0.0
    %3213 = vmatpush.xpose.msra.mxu0 0.0
    %3214 = vmatpush.xpose.msra.mxu0 0.0
    %3215 = vmatpush.xpose.msra.mxu0 0.0
    %3216 = vmatpush.xpose.msra.mxu0 0.0
    %v3217 = vand.u32 %v3174, 4294901760
    %v3218 = vsub.f32 %v3174, %v3217
    %v3219 = vand.u32 %v3218, 4294901760
    %v3220 = vsub.f32 %v3218, %v3219
    %v3221 = vand.u32 %v3220, 4294901760
    %3222 = vmatpush.xpose.msra.mxu0 %v3221
    %v3223 = vand.u32 %v3172, 4294901760
    %3224 = vmatmul.f32.gmra.mxu0 %v3223
    %v3225 = vpop.f32.mrf.mxu0
    %v3226 = vadd.f32 %v3200, %v3225
    %3227 = vdwg.mxu0
    %3228 = vmatpush.xpose.msra.mxu0 0.0
    %3229 = vmatpush.xpose.msra.mxu0 0.0
    %3230 = vmatpush.xpose.msra.mxu0 0.0
    %3231 = vmatpush.xpose.msra.mxu0 0.0
    %3232 = vmatpush.xpose.msra.mxu0 0.0
    %3233 = vmatpush.xpose.msra.mxu0 0.0
    %3234 = vmatpush.xpose.msra.mxu0 0.0
    %3235 = vmatpush.xpose.msra.mxu0 0.0
    %3236 = vmatpush.xpose.msra.mxu0 0.0
    %3237 = vmatpush.xpose.msra.mxu0 0.0
    %3238 = vmatpush.xpose.msra.mxu0 0.0
    %3239 = vmatpush.xpose.msra.mxu0 0.0
    %3240 = vmatpush.xpose.msra.mxu0 0.0
    %3241 = vmatpush.xpose.msra.mxu0 0.0
    %3242 = vmatpush.xpose.msra.mxu0 0.0
    %v3243 = vand.u32 %v3174, 4294901760
    %v3244 = vsub.f32 %v3174, %v3243
    %3245 = vmatpush.xpose.msra.mxu0 %v3244
    %v3246 = vand.u32 %v3172, 4294901760
    %v3247 = vsub.f32 %v3172, %v3246
    %3248 = vmatmul.f32.gmra.mxu0 %v3247
    %v3249 = vpop.f32.mrf.mxu0
    %v3250 = vadd.f32 %v3226, %v3249
    %3251 = vdwg.mxu0
    %3252 = vmatpush.xpose.msra.mxu0 0.0
    %3253 = vmatpush.xpose.msra.mxu0 0.0
    %3254 = vmatpush.xpose.msra.mxu0 0.0
    %3255 = vmatpush.xpose.msra.mxu0 0.0
    %3256 = vmatpush.xpose.msra.mxu0 0.0
    %3257 = vmatpush.xpose.msra.mxu0 0.0
    %3258 = vmatpush.xpose.msra.mxu0 0.0
    %3259 = vmatpush.xpose.msra.mxu0 0.0
    %3260 = vmatpush.xpose.msra.mxu0 0.0
    %3261 = vmatpush.xpose.msra.mxu0 0.0
    %3262 = vmatpush.xpose.msra.mxu0 0.0
    %3263 = vmatpush.xpose.msra.mxu0 0.0
    %3264 = vmatpush.xpose.msra.mxu0 0.0
    %3265 = vmatpush.xpose.msra.mxu0 0.0
    %3266 = vmatpush.xpose.msra.mxu0 0.0
    %v3267 = vand.u32 %v3174, 4294901760
    %3268 = vmatpush.xpose.msra.mxu0 %v3267
    %v3269 = vand.u32 %v3172, 4294901760
    %v3270 = vsub.f32 %v3172, %v3269
    %v3271 = vand.u32 %v3270, 4294901760
    %3272 = vmatmul.f32.gmra.mxu0 %v3271
    %v3273 = vpop.f32.mrf.mxu0
    %v3274 = vadd.f32 %v3250, %v3273
    %3275 = vdwg.mxu0
    %3276 = vmatpush.xpose.msra.mxu0 0.0
    %3277 = vmatpush.xpose.msra.mxu0 0.0
    %3278 = vmatpush.xpose.msra.mxu0 0.0
    %3279 = vmatpush.xpose.msra.mxu0 0.0
    %3280 = vmatpush.xpose.msra.mxu0 0.0
    %3281 = vmatpush.xpose.msra.mxu0 0.0
    %3282 = vmatpush.xpose.msra.mxu0 0.0
    %3283 = vmatpush.xpose.msra.mxu0 0.0
    %3284 = vmatpush.xpose.msra.mxu0 0.0
    %3285 = vmatpush.xpose.msra.mxu0 0.0
    %3286 = vmatpush.xpose.msra.mxu0 0.0
    %3287 = vmatpush.xpose.msra.mxu0 0.0
    %3288 = vmatpush.xpose.msra.mxu0 0.0
    %3289 = vmatpush.xpose.msra.mxu0 0.0
    %3290 = vmatpush.xpose.msra.mxu0 0.0
    %v3291 = vand.u32 %v3174, 4294901760
    %v3292 = vsub.f32 %v3174, %v3291
    %v3293 = vand.u32 %v3292, 4294901760
    %3294 = vmatpush.xpose.msra.mxu0 %v3293
    %v3295 = vand.u32 %v3172, 4294901760
    %3296 = vmatmul.f32.gmra.mxu0 %v3295
    %v3297 = vpop.f32.mrf.mxu0
    %v3298 = vadd.f32 %v3274, %v3297
    %3299 = vdwg.mxu0
    %3300 = vmatpush.xpose.msra.mxu0 0.0
    %3301 = vmatpush.xpose.msra.mxu0 0.0
    %3302 = vmatpush.xpose.msra.mxu0 0.0
    %3303 = vmatpush.xpose.msra.mxu0 0.0
    %3304 = vmatpush.xpose.msra.mxu0 0.0
    %3305 = vmatpush.xpose.msra.mxu0 0.0
    %3306 = vmatpush.xpose.msra.mxu0 0.0
    %3307 = vmatpush.xpose.msra.mxu0 0.0
    %3308 = vmatpush.xpose.msra.mxu0 0.0
    %3309 = vmatpush.xpose.msra.mxu0 0.0
    %3310 = vmatpush.xpose.msra.mxu0 0.0
    %3311 = vmatpush.xpose.msra.mxu0 0.0
    %3312 = vmatpush.xpose.msra.mxu0 0.0
    %3313 = vmatpush.xpose.msra.mxu0 0.0
    %3314 = vmatpush.xpose.msra.mxu0 0.0
    %v3315 = vand.u32 %v3174, 4294901760
    %3316 = vmatpush.xpose.msra.mxu0 %v3315
    %v3317 = vand.u32 %v3172, 4294901760
    %3318 = vmatmul.f32.gmra.mxu0 %v3317
    %v3319 = vpop.f32.mrf.mxu0
    %v3320 = vadd.f32 %v3298, %v3319
    %3321 = vdwg.mxu0
    %v3322 = vsel %vm278, %v3320, -inf
    %3323 = vmax.xlane.f32.xlu0 %v3322
    %v3324 = vpop.xlane.xlu0 %3323
    %v3325 = vsub.f32 %v3320, %v3324
    %v3326 = vmul.f32 %v3325, 1.442695
    %v3327 = vpow.pop %v3326
    %v3328 = vsel %vm278, %v3327, 0.0
    %3329 = vadd.xlane.f32.xlu0 %v3328
    %v3330 = vpop.xlane.xlu0 %3329
    %v3331 = vrcp.pop %v3330
    %v3332 = vmul.f32 %v3330, %v3331
    %v3333 = vsub.f32 1.0, %v3332
    %v3334 = vmul.f32 %v3331, %v3333
    %v3335 = vadd.f32 %v3331, %v3334
    %vm3336 = vweird.f32 %v3330
    %vm3337 = vweird.f32 %v3331
    %vm3338 = vmor %vm3336, %vm3337
    %v3339 = vsel %vm3338, %v3331, %v3335
    %v3340 = vand.u32 2147483647, %v3330
    %vm3341 = vcmp.eq.f32.partialorder %v3340, 8.507059e+37
    %v3342 = vand.u32 %v3330, 2147483648
    %v3343 = vor.u32 1.1754944e-38, %v3342
    %v3344 = vsel %vm3341, %v3343, %v3339
    %v3345 = vmul.f32 %v3327, %v3344
    %3346 = vrot.lane.b32.xlu0 %v2837, 56
    %v3347 = vpop.permute.xlu0 %3346
    %v3350 = vsel %vm278, %v3345, 0
    %3352 = vmatpush.msra.mxu0 0.0
    %3353 = vmatpush.msra.mxu0 0.0
    %3354 = vmatpush.msra.mxu0 0.0
    %3355 = vmatpush.msra.mxu0 0.0
    %3356 = vmatpush.msra.mxu0 0.0
    %3357 = vmatpush.msra.mxu0 0.0
    %3358 = vmatpush.msra.mxu0 0.0
    %3359 = vmatpush.msra.mxu0 0.0
    %3360 = vmatpush.msra.mxu0 0.0
    %3361 = vmatpush.msra.mxu0 0.0
    %3362 = vmatpush.msra.mxu0 0.0
    %3363 = vmatpush.msra.mxu0 0.0
    %3364 = vmatpush.msra.mxu0 0.0
    %3365 = vmatpush.msra.mxu0 0.0
    %3366 = vmatpush.msra.mxu0 0.0
    %v3367 = vand.u32 %v3347, 4294901760
    %3368 = vmatpush.msra.mxu0 %v3367
    %v3369 = vand.u32 %v3350, 4294901760
    %v3370 = vsub.f32 %v3350, %v3369
    %v3371 = vand.u32 %v3370, 4294901760
    %v3372 = vsub.f32 %v3370, %v3371
    %v3373 = vand.u32 %v3372, 4294901760
    %3374 = vmatmul.f32.gmra.mxu0 %v3373
    %v3375 = vpop.f32.mrf.mxu0
    %v3376 = vadd.f32 0.0, %v3375
    %3377 = vdwg.mxu0
    %3378 = vmatpush.msra.mxu0 0.0
    %3379 = vmatpush.msra.mxu0 0.0
    %3380 = vmatpush.msra.mxu0 0.0
    %3381 = vmatpush.msra.mxu0 0.0
    %3382 = vmatpush.msra.mxu0 0.0
    %3383 = vmatpush.msra.mxu0 0.0
    %3384 = vmatpush.msra.mxu0 0.0
    %3385 = vmatpush.msra.mxu0 0.0
    %3386 = vmatpush.msra.mxu0 0.0
    %3387 = vmatpush.msra.mxu0 0.0
    %3388 = vmatpush.msra.mxu0 0.0
    %3389 = vmatpush.msra.mxu0 0.0
    %3390 = vmatpush.msra.mxu0 0.0
    %3391 = vmatpush.msra.mxu0 0.0
    %3392 = vmatpush.msra.mxu0 0.0
    %v3393 = vand.u32 %v3347, 4294901760
    %v3394 = vsub.f32 %v3347, %v3393
    %v3395 = vand.u32 %v3394, 4294901760
    %v3396 = vsub.f32 %v3394, %v3395
    %v3397 = vand.u32 %v3396, 4294901760
    %3398 = vmatpush.msra.mxu0 %v3397
    %v3399 = vand.u32 %v3350, 4294901760
    %3400 = vmatmul.f32.gmra.mxu0 %v3399
    %v3401 = vpop.f32.mrf.mxu0
    %v3402 = vadd.f32 %v3376, %v3401
    %3403 = vdwg.mxu0
    %3404 = vmatpush.msra.mxu0 0.0
    %3405 = vmatpush.msra.mxu0 0.0
    %3406 = vmatpush.msra.mxu0 0.0
    %3407 = vmatpush.msra.mxu0 0.0
    %3408 = vmatpush.msra.mxu0 0.0
    %3409 = vmatpush.msra.mxu0 0.0
    %3410 = vmatpush.msra.mxu0 0.0
    %3411 = vmatpush.msra.mxu0 0.0
    %3412 = vmatpush.msra.mxu0 0.0
    %3413 = vmatpush.msra.mxu0 0.0
    %3414 = vmatpush.msra.mxu0 0.0
    %3415 = vmatpush.msra.mxu0 0.0
    %3416 = vmatpush.msra.mxu0 0.0
    %3417 = vmatpush.msra.mxu0 0.0
    %3418 = vmatpush.msra.mxu0 0.0
    %v3419 = vand.u32 %v3347, 4294901760
    %v3420 = vsub.f32 %v3347, %v3419
    %3421 = vmatpush.msra.mxu0 %v3420
    %v3422 = vand.u32 %v3350, 4294901760
    %v3423 = vsub.f32 %v3350, %v3422
    %3424 = vmatmul.f32.gmra.mxu0 %v3423
    %v3425 = vpop.f32.mrf.mxu0
    %v3426 = vadd.f32 %v3402, %v3425
    %3427 = vdwg.mxu0
    %3428 = vmatpush.msra.mxu0 0.0
    %3429 = vmatpush.msra.mxu0 0.0
    %3430 = vmatpush.msra.mxu0 0.0
    %3431 = vmatpush.msra.mxu0 0.0
    %3432 = vmatpush.msra.mxu0 0.0
    %3433 = vmatpush.msra.mxu0 0.0
    %3434 = vmatpush.msra.mxu0 0.0
    %3435 = vmatpush.msra.mxu0 0.0
    %3436 = vmatpush.msra.mxu0 0.0
    %3437 = vmatpush.msra.mxu0 0.0
    %3438 = vmatpush.msra.mxu0 0.0
    %3439 = vmatpush.msra.mxu0 0.0
    %3440 = vmatpush.msra.mxu0 0.0
    %3441 = vmatpush.msra.mxu0 0.0
    %3442 = vmatpush.msra.mxu0 0.0
    %v3443 = vand.u32 %v3347, 4294901760
    %3444 = vmatpush.msra.mxu0 %v3443
    %v3445 = vand.u32 %v3350, 4294901760
    %v3446 = vsub.f32 %v3350, %v3445
    %v3447 = vand.u32 %v3446, 4294901760
    %3448 = vmatmul.f32.gmra.mxu0 %v3447
    %v3449 = vpop.f32.mrf.mxu0
    %v3450 = vadd.f32 %v3426, %v3449
    %3451 = vdwg.mxu0
    %3452 = vmatpush.msra.mxu0 0.0
    %3453 = vmatpush.msra.mxu0 0.0
    %3454 = vmatpush.msra.mxu0 0.0
    %3455 = vmatpush.msra.mxu0 0.0
    %3456 = vmatpush.msra.mxu0 0.0
    %3457 = vmatpush.msra.mxu0 0.0
    %3458 = vmatpush.msra.mxu0 0.0
    %3459 = vmatpush.msra.mxu0 0.0
    %3460 = vmatpush.msra.mxu0 0.0
    %3461 = vmatpush.msra.mxu0 0.0
    %3462 = vmatpush.msra.mxu0 0.0
    %3463 = vmatpush.msra.mxu0 0.0
    %3464 = vmatpush.msra.mxu0 0.0
    %3465 = vmatpush.msra.mxu0 0.0
    %3466 = vmatpush.msra.mxu0 0.0
    %v3467 = vand.u32 %v3347, 4294901760
    %v3468 = vsub.f32 %v3347, %v3467
    %v3469 = vand.u32 %v3468, 4294901760
    %3470 = vmatpush.msra.mxu0 %v3469
    %v3471 = vand.u32 %v3350, 4294901760
    %3472 = vmatmul.f32.gmra.mxu0 %v3471
    %v3473 = vpop.f32.mrf.mxu0
    %v3474 = vadd.f32 %v3450, %v3473
    %3475 = vdwg.mxu0
    %3476 = vmatpush.msra.mxu0 0.0
    %3477 = vmatpush.msra.mxu0 0.0
    %3478 = vmatpush.msra.mxu0 0.0
    %3479 = vmatpush.msra.mxu0 0.0
    %3480 = vmatpush.msra.mxu0 0.0
    %3481 = vmatpush.msra.mxu0 0.0
    %3482 = vmatpush.msra.mxu0 0.0
    %3483 = vmatpush.msra.mxu0 0.0
    %3484 = vmatpush.msra.mxu0 0.0
    %3485 = vmatpush.msra.mxu0 0.0
    %3486 = vmatpush.msra.mxu0 0.0
    %3487 = vmatpush.msra.mxu0 0.0
    %3488 = vmatpush.msra.mxu0 0.0
    %3489 = vmatpush.msra.mxu0 0.0
    %3490 = vmatpush.msra.mxu0 0.0
    %v3491 = vand.u32 %v3347, 4294901760
    %3492 = vmatpush.msra.mxu0 %v3491
    %v3493 = vand.u32 %v3350, 4294901760
    %3494 = vmatmul.f32.gmra.mxu0 %v3493
    %v3495 = vpop.f32.mrf.mxu0
    %v3496 = vadd.f32 %v3474, %v3495
    %3497 = vdwg.mxu0
    %3498 = vrot.lane.b32.xlu0 %v2837, 112
    %v3499 = vpop.permute.xlu0 %3498
    %3500 = vrot.lane.b32.xlu0 %v2837, 80
    %v3501 = vpop.permute.xlu0 %3500
    %v3502 = vsel %vm278, %v3499, 0
    %v3504 = vsel %vm278, %v3501, 0
    %3506 = vmatpush.xpose.msra.mxu0 0.0
    %3507 = vmatpush.xpose.msra.mxu0 0.0
    %3508 = vmatpush.xpose.msra.mxu0 0.0
    %3509 = vmatpush.xpose.msra.mxu0 0.0
    %3510 = vmatpush.xpose.msra.mxu0 0.0
    %3511 = vmatpush.xpose.msra.mxu0 0.0
    %3512 = vmatpush.xpose.msra.mxu0 0.0
    %3513 = vmatpush.xpose.msra.mxu0 0.0
    %3514 = vmatpush.xpose.msra.mxu0 0.0
    %3515 = vmatpush.xpose.msra.mxu0 0.0
    %3516 = vmatpush.xpose.msra.mxu0 0.0
    %3517 = vmatpush.xpose.msra.mxu0 0.0
    %3518 = vmatpush.xpose.msra.mxu0 0.0
    %3519 = vmatpush.xpose.msra.mxu0 0.0
    %3520 = vmatpush.xpose.msra.mxu0 0.0
    %v3521 = vand.u32 %v3504, 4294901760
    %3522 = vmatpush.xpose.msra.mxu0 %v3521
    %v3523 = vand.u32 %v3502, 4294901760
    %v3524 = vsub.f32 %v3502, %v3523
    %v3525 = vand.u32 %v3524, 4294901760
    %v3526 = vsub.f32 %v3524, %v3525
    %v3527 = vand.u32 %v3526, 4294901760
    %3528 = vmatmul.f32.gmra.mxu0 %v3527
    %v3529 = vpop.f32.mrf.mxu0
    %v3530 = vadd.f32 0.0, %v3529
    %3531 = vdwg.mxu0
    %3532 = vmatpush.xpose.msra.mxu0 0.0
    %3533 = vmatpush.xpose.msra.mxu0 0.0
    %3534 = vmatpush.xpose.msra.mxu0 0.0
    %3535 = vmatpush.xpose.msra.mxu0 0.0
    %3536 = vmatpush.xpose.msra.mxu0 0.0
    %3537 = vmatpush.xpose.msra.mxu0 0.0
    %3538 = vmatpush.xpose.msra.mxu0 0.0
    %3539 = vmatpush.xpose.msra.mxu0 0.0
    %3540 = vmatpush.xpose.msra.mxu0 0.0
    %3541 = vmatpush.xpose.msra.mxu0 0.0
    %3542 = vmatpush.xpose.msra.mxu0 0.0
    %3543 = vmatpush.xpose.msra.mxu0 0.0
    %3544 = vmatpush.xpose.msra.mxu0 0.0
    %3545 = vmatpush.xpose.msra.mxu0 0.0
    %3546 = vmatpush.xpose.msra.mxu0 0.0
    %v3547 = vand.u32 %v3504, 4294901760
    %v3548 = vsub.f32 %v3504, %v3547
    %v3549 = vand.u32 %v3548, 4294901760
    %v3550 = vsub.f32 %v3548, %v3549
    %v3551 = vand.u32 %v3550, 4294901760
    %3552 = vmatpush.xpose.msra.mxu0 %v3551
    %v3553 = vand.u32 %v3502, 4294901760
    %3554 = vmatmul.f32.gmra.mxu0 %v3553
    %v3555 = vpop.f32.mrf.mxu0
    %v3556 = vadd.f32 %v3530, %v3555
    %3557 = vdwg.mxu0
    %3558 = vmatpush.xpose.msra.mxu0 0.0
    %3559 = vmatpush.xpose.msra.mxu0 0.0
    %3560 = vmatpush.xpose.msra.mxu0 0.0
    %3561 = vmatpush.xpose.msra.mxu0 0.0
    %3562 = vmatpush.xpose.msra.mxu0 0.0
    %3563 = vmatpush.xpose.msra.mxu0 0.0
    %3564 = vmatpush.xpose.msra.mxu0 0.0
    %3565 = vmatpush.xpose.msra.mxu0 0.0
    %3566 = vmatpush.xpose.msra.mxu0 0.0
    %3567 = vmatpush.xpose.msra.mxu0 0.0
    %3568 = vmatpush.xpose.msra.mxu0 0.0
    %3569 = vmatpush.xpose.msra.mxu0 0.0
    %3570 = vmatpush.xpose.msra.mxu0 0.0
    %3571 = vmatpush.xpose.msra.mxu0 0.0
    %3572 = vmatpush.xpose.msra.mxu0 0.0
    %v3573 = vand.u32 %v3504, 4294901760
    %v3574 = vsub.f32 %v3504, %v3573
    %3575 = vmatpush.xpose.msra.mxu0 %v3574
    %v3576 = vand.u32 %v3502, 4294901760
    %v3577 = vsub.f32 %v3502, %v3576
    %3578 = vmatmul.f32.gmra.mxu0 %v3577
    %v3579 = vpop.f32.mrf.mxu0
    %v3580 = vadd.f32 %v3556, %v3579
    %3581 = vdwg.mxu0
    %3582 = vmatpush.xpose.msra.mxu0 0.0
    %3583 = vmatpush.xpose.msra.mxu0 0.0
    %3584 = vmatpush.xpose.msra.mxu0 0.0
    %3585 = vmatpush.xpose.msra.mxu0 0.0
    %3586 = vmatpush.xpose.msra.mxu0 0.0
    %3587 = vmatpush.xpose.msra.mxu0 0.0
    %3588 = vmatpush.xpose.msra.mxu0 0.0
    %3589 = vmatpush.xpose.msra.mxu0 0.0
    %3590 = vmatpush.xpose.msra.mxu0 0.0
    %3591 = vmatpush.xpose.msra.mxu0 0.0
    %3592 = vmatpush.xpose.msra.mxu0 0.0
    %3593 = vmatpush.xpose.msra.mxu0 0.0
    %3594 = vmatpush.xpose.msra.mxu0 0.0
    %3595 = vmatpush.xpose.msra.mxu0 0.0
    %3596 = vmatpush.xpose.msra.mxu0 0.0
    %v3597 = vand.u32 %v3504, 4294901760
    %3598 = vmatpush.xpose.msra.mxu0 %v3597
    %v3599 = vand.u32 %v3502, 4294901760
    %v3600 = vsub.f32 %v3502, %v3599
    %v3601 = vand.u32 %v3600, 4294901760
    %3602 = vmatmul.f32.gmra.mxu0 %v3601
    %v3603 = vpop.f32.mrf.mxu0
    %v3604 = vadd.f32 %v3580, %v3603
    %3605 = vdwg.mxu0
    %3606 = vmatpush.xpose.msra.mxu0 0.0
    %3607 = vmatpush.xpose.msra.mxu0 0.0
    %3608 = vmatpush.xpose.msra.mxu0 0.0
    %3609 = vmatpush.xpose.msra.mxu0 0.0
    %3610 = vmatpush.xpose.msra.mxu0 0.0
    %3611 = vmatpush.xpose.msra.mxu0 0.0
    %3612 = vmatpush.xpose.msra.mxu0 0.0
    %3613 = vmatpush.xpose.msra.mxu0 0.0
    %3614 = vmatpush.xpose.msra.mxu0 0.0
    %3615 = vmatpush.xpose.msra.mxu0 0.0
    %3616 = vmatpush.xpose.msra.mxu0 0.0
    %3617 = vmatpush.xpose.msra.mxu0 0.0
    %3618 = vmatpush.xpose.msra.mxu0 0.0
    %3619 = vmatpush.xpose.msra.mxu0 0.0
    %3620 = vmatpush.xpose.msra.mxu0 0.0
    %v3621 = vand.u32 %v3504, 4294901760
    %v3622 = vsub.f32 %v3504, %v3621
    %v3623 = vand.u32 %v3622, 4294901760
    %3624 = vmatpush.xpose.msra.mxu0 %v3623
    %v3625 = vand.u32 %v3502, 4294901760
    %3626 = vmatmul.f32.gmra.mxu0 %v3625
    %v3627 = vpop.f32.mrf.mxu0
    %v3628 = vadd.f32 %v3604, %v3627
    %3629 = vdwg.mxu0
    %3630 = vmatpush.xpose.msra.mxu0 0.0
    %3631 = vmatpush.xpose.msra.mxu0 0.0
    %3632 = vmatpush.xpose.msra.mxu0 0.0
    %3633 = vmatpush.xpose.msra.mxu0 0.0
    %3634 = vmatpush.xpose.msra.mxu0 0.0
    %3635 = vmatpush.xpose.msra.mxu0 0.0
    %3636 = vmatpush.xpose.msra.mxu0 0.0
    %3637 = vmatpush.xpose.msra.mxu0 0.0
    %3638 = vmatpush.xpose.msra.mxu0 0.0
    %3639 = vmatpush.xpose.msra.mxu0 0.0
    %3640 = vmatpush.xpose.msra.mxu0 0.0
    %3641 = vmatpush.xpose.msra.mxu0 0.0
    %3642 = vmatpush.xpose.msra.mxu0 0.0
    %3643 = vmatpush.xpose.msra.mxu0 0.0
    %3644 = vmatpush.xpose.msra.mxu0 0.0
    %v3645 = vand.u32 %v3504, 4294901760
    %3646 = vmatpush.xpose.msra.mxu0 %v3645
    %v3647 = vand.u32 %v3502, 4294901760
    %3648 = vmatmul.f32.gmra.mxu0 %v3647
    %v3649 = vpop.f32.mrf.mxu0
    %v3650 = vadd.f32 %v3628, %v3649
    %3651 = vdwg.mxu0
    %v3652 = vsel %vm278, %v3650, -inf
    %3653 = vmax.xlane.f32.xlu0 %v3652
    %v3654 = vpop.xlane.xlu0 %3653
    %v3655 = vsub.f32 %v3650, %v3654
    %v3656 = vmul.f32 %v3655, 1.442695
    %v3657 = vpow.pop %v3656
    %v3658 = vsel %vm278, %v3657, 0.0
    %3659 = vadd.xlane.f32.xlu0 %v3658
    %v3660 = vpop.xlane.xlu0 %3659
    %v3661 = vrcp.pop %v3660
    %v3662 = vmul.f32 %v3660, %v3661
    %v3663 = vsub.f32 1.0, %v3662
    %v3664 = vmul.f32 %v3661, %v3663
    %v3665 = vadd.f32 %v3661, %v3664
    %vm3666 = vweird.f32 %v3660
    %vm3667 = vweird.f32 %v3661
    %vm3668 = vmor %vm3666, %vm3667
    %v3669 = vsel %vm3668, %v3661, %v3665
    %v3670 = vand.u32 2147483647, %v3660
    %vm3671 = vcmp.eq.f32.partialorder %v3670, 8.507059e+37
    %v3672 = vand.u32 %v3660, 2147483648
    %v3673 = vor.u32 1.1754944e-38, %v3672
    %v3674 = vsel %vm3671, %v3673, %v3669
    %v3675 = vmul.f32 %v3657, %v3674
    %3676 = vrot.lane.b32.xlu0 %v2837, 48
    %v3677 = vpop.permute.xlu0 %3676
    %v3680 = vsel %vm278, %v3675, 0
    %3682 = vmatpush.msra.mxu0 0.0
    %3683 = vmatpush.msra.mxu0 0.0
    %3684 = vmatpush.msra.mxu0 0.0
    %3685 = vmatpush.msra.mxu0 0.0
    %3686 = vmatpush.msra.mxu0 0.0
    %3687 = vmatpush.msra.mxu0 0.0
    %3688 = vmatpush.msra.mxu0 0.0
    %3689 = vmatpush.msra.mxu0 0.0
    %3690 = vmatpush.msra.mxu0 0.0
    %3691 = vmatpush.msra.mxu0 0.0
    %3692 = vmatpush.msra.mxu0 0.0
    %3693 = vmatpush.msra.mxu0 0.0
    %3694 = vmatpush.msra.mxu0 0.0
    %3695 = vmatpush.msra.mxu0 0.0
    %3696 = vmatpush.msra.mxu0 0.0
    %v3697 = vand.u32 %v3677, 4294901760
    %3698 = vmatpush.msra.mxu0 %v3697
    %v3699 = vand.u32 %v3680, 4294901760
    %v3700 = vsub.f32 %v3680, %v3699
    %v3701 = vand.u32 %v3700, 4294901760
    %v3702 = vsub.f32 %v3700, %v3701
    %v3703 = vand.u32 %v3702, 4294901760
    %3704 = vmatmul.f32.gmra.mxu0 %v3703
    %v3705 = vpop.f32.mrf.mxu0
    %v3706 = vadd.f32 0.0, %v3705
    %3707 = vdwg.mxu0
    %3708 = vmatpush.msra.mxu0 0.0
    %3709 = vmatpush.msra.mxu0 0.0
    %3710 = vmatpush.msra.mxu0 0.0
    %3711 = vmatpush.msra.mxu0 0.0
    %3712 = vmatpush.msra.mxu0 0.0
    %3713 = vmatpush.msra.mxu0 0.0
    %3714 = vmatpush.msra.mxu0 0.0
    %3715 = vmatpush.msra.mxu0 0.0
    %3716 = vmatpush.msra.mxu0 0.0
    %3717 = vmatpush.msra.mxu0 0.0
    %3718 = vmatpush.msra.mxu0 0.0
    %3719 = vmatpush.msra.mxu0 0.0
    %3720 = vmatpush.msra.mxu0 0.0
    %3721 = vmatpush.msra.mxu0 0.0
    %3722 = vmatpush.msra.mxu0 0.0
    %v3723 = vand.u32 %v3677, 4294901760
    %v3724 = vsub.f32 %v3677, %v3723
    %v3725 = vand.u32 %v3724, 4294901760
    %v3726 = vsub.f32 %v3724, %v3725
    %v3727 = vand.u32 %v3726, 4294901760
    %3728 = vmatpush.msra.mxu0 %v3727
    %v3729 = vand.u32 %v3680, 4294901760
    %3730 = vmatmul.f32.gmra.mxu0 %v3729
    %v3731 = vpop.f32.mrf.mxu0
    %v3732 = vadd.f32 %v3706, %v3731
    %3733 = vdwg.mxu0
    %3734 = vmatpush.msra.mxu0 0.0
    %3735 = vmatpush.msra.mxu0 0.0
    %3736 = vmatpush.msra.mxu0 0.0
    %3737 = vmatpush.msra.mxu0 0.0
    %3738 = vmatpush.msra.mxu0 0.0
    %3739 = vmatpush.msra.mxu0 0.0
    %3740 = vmatpush.msra.mxu0 0.0
    %3741 = vmatpush.msra.mxu0 0.0
    %3742 = vmatpush.msra.mxu0 0.0
    %3743 = vmatpush.msra.mxu0 0.0
    %3744 = vmatpush.msra.mxu0 0.0
    %3745 = vmatpush.msra.mxu0 0.0
    %3746 = vmatpush.msra.mxu0 0.0
    %3747 = vmatpush.msra.mxu0 0.0
    %3748 = vmatpush.msra.mxu0 0.0
    %v3749 = vand.u32 %v3677, 4294901760
    %v3750 = vsub.f32 %v3677, %v3749
    %3751 = vmatpush.msra.mxu0 %v3750
    %v3752 = vand.u32 %v3680, 4294901760
    %v3753 = vsub.f32 %v3680, %v3752
    %3754 = vmatmul.f32.gmra.mxu0 %v3753
    %v3755 = vpop.f32.mrf.mxu0
    %v3756 = vadd.f32 %v3732, %v3755
    %3757 = vdwg.mxu0
    %3758 = vmatpush.msra.mxu0 0.0
    %3759 = vmatpush.msra.mxu0 0.0
    %3760 = vmatpush.msra.mxu0 0.0
    %3761 = vmatpush.msra.mxu0 0.0
    %3762 = vmatpush.msra.mxu0 0.0
    %3763 = vmatpush.msra.mxu0 0.0
    %3764 = vmatpush.msra.mxu0 0.0
    %3765 = vmatpush.msra.mxu0 0.0
    %3766 = vmatpush.msra.mxu0 0.0
    %3767 = vmatpush.msra.mxu0 0.0
    %3768 = vmatpush.msra.mxu0 0.0
    %3769 = vmatpush.msra.mxu0 0.0
    %3770 = vmatpush.msra.mxu0 0.0
    %3771 = vmatpush.msra.mxu0 0.0
    %3772 = vmatpush.msra.mxu0 0.0
    %v3773 = vand.u32 %v3677, 4294901760
    %3774 = vmatpush.msra.mxu0 %v3773
    %v3775 = vand.u32 %v3680, 4294901760
    %v3776 = vsub.f32 %v3680, %v3775
    %v3777 = vand.u32 %v3776, 4294901760
    %3778 = vmatmul.f32.gmra.mxu0 %v3777
    %v3779 = vpop.f32.mrf.mxu0
    %v3780 = vadd.f32 %v3756, %v3779
    %3781 = vdwg.mxu0
    %3782 = vmatpush.msra.mxu0 0.0
    %3783 = vmatpush.msra.mxu0 0.0
    %3784 = vmatpush.msra.mxu0 0.0
    %3785 = vmatpush.msra.mxu0 0.0
    %3786 = vmatpush.msra.mxu0 0.0
    %3787 = vmatpush.msra.mxu0 0.0
    %3788 = vmatpush.msra.mxu0 0.0
    %3789 = vmatpush.msra.mxu0 0.0
    %3790 = vmatpush.msra.mxu0 0.0
    %3791 = vmatpush.msra.mxu0 0.0
    %3792 = vmatpush.msra.mxu0 0.0
    %3793 = vmatpush.msra.mxu0 0.0
    %3794 = vmatpush.msra.mxu0 0.0
    %3795 = vmatpush.msra.mxu0 0.0
    %3796 = vmatpush.msra.mxu0 0.0
    %v3797 = vand.u32 %v3677, 4294901760
    %v3798 = vsub.f32 %v3677, %v3797
    %v3799 = vand.u32 %v3798, 4294901760
    %3800 = vmatpush.msra.mxu0 %v3799
    %v3801 = vand.u32 %v3680, 4294901760
    %3802 = vmatmul.f32.gmra.mxu0 %v3801
    %v3803 = vpop.f32.mrf.mxu0
    %v3804 = vadd.f32 %v3780, %v3803
    %3805 = vdwg.mxu0
    %3806 = vmatpush.msra.mxu0 0.0
    %3807 = vmatpush.msra.mxu0 0.0
    %3808 = vmatpush.msra.mxu0 0.0
    %3809 = vmatpush.msra.mxu0 0.0
    %3810 = vmatpush.msra.mxu0 0.0
    %3811 = vmatpush.msra.mxu0 0.0
    %3812 = vmatpush.msra.mxu0 0.0
    %3813 = vmatpush.msra.mxu0 0.0
    %3814 = vmatpush.msra.mxu0 0.0
    %3815 = vmatpush.msra.mxu0 0.0
    %3816 = vmatpush.msra.mxu0 0.0
    %3817 = vmatpush.msra.mxu0 0.0
    %3818 = vmatpush.msra.mxu0 0.0
    %3819 = vmatpush.msra.mxu0 0.0
    %3820 = vmatpush.msra.mxu0 0.0
    %v3821 = vand.u32 %v3677, 4294901760
    %3822 = vmatpush.msra.mxu0 %v3821
    %v3823 = vand.u32 %v3680, 4294901760
    %3824 = vmatmul.f32.gmra.mxu0 %v3823
    %v3825 = vpop.f32.mrf.mxu0
    %v3826 = vadd.f32 %v3804, %v3825
    %3827 = vdwg.mxu0
    %3828 = vrot.lane.b32.xlu0 %v2837, 104
    %v3829 = vpop.permute.xlu0 %3828
    %3830 = vrot.lane.b32.xlu0 %v2837, 72
    %v3831 = vpop.permute.xlu0 %3830
    %v3832 = vsel %vm278, %v3829, 0
    %v3834 = vsel %vm278, %v3831, 0
    %3836 = vmatpush.xpose.msra.mxu0 0.0
    %3837 = vmatpush.xpose.msra.mxu0 0.0
    %3838 = vmatpush.xpose.msra.mxu0 0.0
    %3839 = vmatpush.xpose.msra.mxu0 0.0
    %3840 = vmatpush.xpose.msra.mxu0 0.0
    %3841 = vmatpush.xpose.msra.mxu0 0.0
    %3842 = vmatpush.xpose.msra.mxu0 0.0
    %3843 = vmatpush.xpose.msra.mxu0 0.0
    %3844 = vmatpush.xpose.msra.mxu0 0.0
    %3845 = vmatpush.xpose.msra.mxu0 0.0
    %3846 = vmatpush.xpose.msra.mxu0 0.0
    %3847 = vmatpush.xpose.msra.mxu0 0.0
    %3848 = vmatpush.xpose.msra.mxu0 0.0
    %3849 = vmatpush.xpose.msra.mxu0 0.0
    %3850 = vmatpush.xpose.msra.mxu0 0.0
    %v3851 = vand.u32 %v3834, 4294901760
    %3852 = vmatpush.xpose.msra.mxu0 %v3851
    %v3853 = vand.u32 %v3832, 4294901760
    %v3854 = vsub.f32 %v3832, %v3853
    %v3855 = vand.u32 %v3854, 4294901760
    %v3856 = vsub.f32 %v3854, %v3855
    %v3857 = vand.u32 %v3856, 4294901760
    %3858 = vmatmul.f32.gmra.mxu0 %v3857
    %v3859 = vpop.f32.mrf.mxu0
    %v3860 = vadd.f32 0.0, %v3859
    %3861 = vdwg.mxu0
    %3862 = vmatpush.xpose.msra.mxu0 0.0
    %3863 = vmatpush.xpose.msra.mxu0 0.0
    %3864 = vmatpush.xpose.msra.mxu0 0.0
    %3865 = vmatpush.xpose.msra.mxu0 0.0
    %3866 = vmatpush.xpose.msra.mxu0 0.0
    %3867 = vmatpush.xpose.msra.mxu0 0.0
    %3868 = vmatpush.xpose.msra.mxu0 0.0
    %3869 = vmatpush.xpose.msra.mxu0 0.0
    %3870 = vmatpush.xpose.msra.mxu0 0.0
    %3871 = vmatpush.xpose.msra.mxu0 0.0
    %3872 = vmatpush.xpose.msra.mxu0 0.0
    %3873 = vmatpush.xpose.msra.mxu0 0.0
    %3874 = vmatpush.xpose.msra.mxu0 0.0
    %3875 = vmatpush.xpose.msra.mxu0 0.0
    %3876 = vmatpush.xpose.msra.mxu0 0.0
    %v3877 = vand.u32 %v3834, 4294901760
    %v3878 = vsub.f32 %v3834, %v3877
    %v3879 = vand.u32 %v3878, 4294901760
    %v3880 = vsub.f32 %v3878, %v3879
    %v3881 = vand.u32 %v3880, 4294901760
    %3882 = vmatpush.xpose.msra.mxu0 %v3881
    %v3883 = vand.u32 %v3832, 4294901760
    %3884 = vmatmul.f32.gmra.mxu0 %v3883
    %v3885 = vpop.f32.mrf.mxu0
    %v3886 = vadd.f32 %v3860, %v3885
    %3887 = vdwg.mxu0
    %3888 = vmatpush.xpose.msra.mxu0 0.0
    %3889 = vmatpush.xpose.msra.mxu0 0.0
    %3890 = vmatpush.xpose.msra.mxu0 0.0
    %3891 = vmatpush.xpose.msra.mxu0 0.0
    %3892 = vmatpush.xpose.msra.mxu0 0.0
    %3893 = vmatpush.xpose.msra.mxu0 0.0
    %3894 = vmatpush.xpose.msra.mxu0 0.0
    %3895 = vmatpush.xpose.msra.mxu0 0.0
    %3896 = vmatpush.xpose.msra.mxu0 0.0
    %3897 = vmatpush.xpose.msra.mxu0 0.0
    %3898 = vmatpush.xpose.msra.mxu0 0.0
    %3899 = vmatpush.xpose.msra.mxu0 0.0
    %3900 = vmatpush.xpose.msra.mxu0 0.0
    %3901 = vmatpush.xpose.msra.mxu0 0.0
    %3902 = vmatpush.xpose.msra.mxu0 0.0
    %v3903 = vand.u32 %v3834, 4294901760
    %v3904 = vsub.f32 %v3834, %v3903
    %3905 = vmatpush.xpose.msra.mxu0 %v3904
    %v3906 = vand.u32 %v3832, 4294901760
    %v3907 = vsub.f32 %v3832, %v3906
    %3908 = vmatmul.f32.gmra.mxu0 %v3907
    %v3909 = vpop.f32.mrf.mxu0
    %v3910 = vadd.f32 %v3886, %v3909
    %3911 = vdwg.mxu0
    %3912 = vmatpush.xpose.msra.mxu0 0.0
    %3913 = vmatpush.xpose.msra.mxu0 0.0
    %3914 = vmatpush.xpose.msra.mxu0 0.0
    %3915 = vmatpush.xpose.msra.mxu0 0.0
    %3916 = vmatpush.xpose.msra.mxu0 0.0
    %3917 = vmatpush.xpose.msra.mxu0 0.0
    %3918 = vmatpush.xpose.msra.mxu0 0.0
    %3919 = vmatpush.xpose.msra.mxu0 0.0
    %3920 = vmatpush.xpose.msra.mxu0 0.0
    %3921 = vmatpush.xpose.msra.mxu0 0.0
    %3922 = vmatpush.xpose.msra.mxu0 0.0
    %3923 = vmatpush.xpose.msra.mxu0 0.0
    %3924 = vmatpush.xpose.msra.mxu0 0.0
    %3925 = vmatpush.xpose.msra.mxu0 0.0
    %3926 = vmatpush.xpose.msra.mxu0 0.0
    %v3927 = vand.u32 %v3834, 4294901760
    %3928 = vmatpush.xpose.msra.mxu0 %v3927
    %v3929 = vand.u32 %v3832, 4294901760
    %v3930 = vsub.f32 %v3832, %v3929
    %v3931 = vand.u32 %v3930, 4294901760
    %3932 = vmatmul.f32.gmra.mxu0 %v3931
    %v3933 = vpop.f32.mrf.mxu0
    %v3934 = vadd.f32 %v3910, %v3933
    %3935 = vdwg.mxu0
    %3936 = vmatpush.xpose.msra.mxu0 0.0
    %3937 = vmatpush.xpose.msra.mxu0 0.0
    %3938 = vmatpush.xpose.msra.mxu0 0.0
    %3939 = vmatpush.xpose.msra.mxu0 0.0
    %3940 = vmatpush.xpose.msra.mxu0 0.0
    %3941 = vmatpush.xpose.msra.mxu0 0.0
    %3942 = vmatpush.xpose.msra.mxu0 0.0
    %3943 = vmatpush.xpose.msra.mxu0 0.0
    %3944 = vmatpush.xpose.msra.mxu0 0.0
    %3945 = vmatpush.xpose.msra.mxu0 0.0
    %3946 = vmatpush.xpose.msra.mxu0 0.0
    %3947 = vmatpush.xpose.msra.mxu0 0.0
    %3948 = vmatpush.xpose.msra.mxu0 0.0
    %3949 = vmatpush.xpose.msra.mxu0 0.0
    %3950 = vmatpush.xpose.msra.mxu0 0.0
    %v3951 = vand.u32 %v3834, 4294901760
    %v3952 = vsub.f32 %v3834, %v3951
    %v3953 = vand.u32 %v3952, 4294901760
    %3954 = vmatpush.xpose.msra.mxu0 %v3953
    %v3955 = vand.u32 %v3832, 4294901760
    %3956 = vmatmul.f32.gmra.mxu0 %v3955
    %v3957 = vpop.f32.mrf.mxu0
    %v3958 = vadd.f32 %v3934, %v3957
    %3959 = vdwg.mxu0
    %3960 = vmatpush.xpose.msra.mxu0 0.0
    %3961 = vmatpush.xpose.msra.mxu0 0.0
    %3962 = vmatpush.xpose.msra.mxu0 0.0
    %3963 = vmatpush.xpose.msra.mxu0 0.0
    %3964 = vmatpush.xpose.msra.mxu0 0.0
    %3965 = vmatpush.xpose.msra.mxu0 0.0
    %3966 = vmatpush.xpose.msra.mxu0 0.0
    %3967 = vmatpush.xpose.msra.mxu0 0.0
    %3968 = vmatpush.xpose.msra.mxu0 0.0
    %3969 = vmatpush.xpose.msra.mxu0 0.0
    %3970 = vmatpush.xpose.msra.mxu0 0.0
    %3971 = vmatpush.xpose.msra.mxu0 0.0
    %3972 = vmatpush.xpose.msra.mxu0 0.0
    %3973 = vmatpush.xpose.msra.mxu0 0.0
    %3974 = vmatpush.xpose.msra.mxu0 0.0
    %v3975 = vand.u32 %v3834, 4294901760
    %3976 = vmatpush.xpose.msra.mxu0 %v3975
    %v3977 = vand.u32 %v3832, 4294901760
    %3978 = vmatmul.f32.gmra.mxu0 %v3977
    %v3979 = vpop.f32.mrf.mxu0
    %v3980 = vadd.f32 %v3958, %v3979
    %3981 = vdwg.mxu0
    %v3982 = vsel %vm278, %v3980, -inf
    %3983 = vmax.xlane.f32.xlu0 %v3982
    %v3984 = vpop.xlane.xlu0 %3983
    %v3985 = vsub.f32 %v3980, %v3984
    %v3986 = vmul.f32 %v3985, 1.442695
    %v3987 = vpow.pop %v3986
    %v3988 = vsel %vm278, %v3987, 0.0
    %3989 = vadd.xlane.f32.xlu0 %v3988
    %v3990 = vpop.xlane.xlu0 %3989
    %v3991 = vrcp.pop %v3990
    %v3992 = vmul.f32 %v3990, %v3991
    %v3993 = vsub.f32 1.0, %v3992
    %v3994 = vmul.f32 %v3991, %v3993
    %v3995 = vadd.f32 %v3991, %v3994
    %vm3996 = vweird.f32 %v3990
    %vm3997 = vweird.f32 %v3991
    %vm3998 = vmor %vm3996, %vm3997
    %v3999 = vsel %vm3998, %v3991, %v3995
    %v4000 = vand.u32 2147483647, %v3990
    %vm4001 = vcmp.eq.f32.partialorder %v4000, 8.507059e+37
    %v4002 = vand.u32 %v3990, 2147483648
    %v4003 = vor.u32 1.1754944e-38, %v4002
    %v4004 = vsel %vm4001, %v4003, %v3999
    %v4005 = vmul.f32 %v3987, %v4004
    %4006 = vrot.lane.b32.xlu0 %v2837, 40
    %v4007 = vpop.permute.xlu0 %4006
    %v4010 = vsel %vm278, %v4005, 0
    %4012 = vmatpush.msra.mxu0 0.0
    %4013 = vmatpush.msra.mxu0 0.0
    %4014 = vmatpush.msra.mxu0 0.0
    %4015 = vmatpush.msra.mxu0 0.0
    %4016 = vmatpush.msra.mxu0 0.0
    %4017 = vmatpush.msra.mxu0 0.0
    %4018 = vmatpush.msra.mxu0 0.0
    %4019 = vmatpush.msra.mxu0 0.0
    %4020 = vmatpush.msra.mxu0 0.0
    %4021 = vmatpush.msra.mxu0 0.0
    %4022 = vmatpush.msra.mxu0 0.0
    %4023 = vmatpush.msra.mxu0 0.0
    %4024 = vmatpush.msra.mxu0 0.0
    %4025 = vmatpush.msra.mxu0 0.0
    %4026 = vmatpush.msra.mxu0 0.0
    %v4027 = vand.u32 %v4007, 4294901760
    %4028 = vmatpush.msra.mxu0 %v4027
    %v4029 = vand.u32 %v4010, 4294901760
    %v4030 = vsub.f32 %v4010, %v4029
    %v4031 = vand.u32 %v4030, 4294901760
    %v4032 = vsub.f32 %v4030, %v4031
    %v4033 = vand.u32 %v4032, 4294901760
    %4034 = vmatmul.f32.gmra.mxu0 %v4033
    %v4035 = vpop.f32.mrf.mxu0
    %v4036 = vadd.f32 0.0, %v4035
    %4037 = vdwg.mxu0
    %4038 = vmatpush.msra.mxu0 0.0
    %4039 = vmatpush.msra.mxu0 0.0
    %4040 = vmatpush.msra.mxu0 0.0
    %4041 = vmatpush.msra.mxu0 0.0
    %4042 = vmatpush.msra.mxu0 0.0
    %4043 = vmatpush.msra.mxu0 0.0
    %4044 = vmatpush.msra.mxu0 0.0
    %4045 = vmatpush.msra.mxu0 0.0
    %4046 = vmatpush.msra.mxu0 0.0
    %4047 = vmatpush.msra.mxu0 0.0
    %4048 = vmatpush.msra.mxu0 0.0
    %4049 = vmatpush.msra.mxu0 0.0
    %4050 = vmatpush.msra.mxu0 0.0
    %4051 = vmatpush.msra.mxu0 0.0
    %4052 = vmatpush.msra.mxu0 0.0
    %v4053 = vand.u32 %v4007, 4294901760
    %v4054 = vsub.f32 %v4007, %v4053
    %v4055 = vand.u32 %v4054, 4294901760
    %v4056 = vsub.f32 %v4054, %v4055
    %v4057 = vand.u32 %v4056, 4294901760
    %4058 = vmatpush.msra.mxu0 %v4057
    %v4059 = vand.u32 %v4010, 4294901760
    %4060 = vmatmul.f32.gmra.mxu0 %v4059
    %v4061 = vpop.f32.mrf.mxu0
    %v4062 = vadd.f32 %v4036, %v4061
    %4063 = vdwg.mxu0
    %4064 = vmatpush.msra.mxu0 0.0
    %4065 = vmatpush.msra.mxu0 0.0
    %4066 = vmatpush.msra.mxu0 0.0
    %4067 = vmatpush.msra.mxu0 0.0
    %4068 = vmatpush.msra.mxu0 0.0
    %4069 = vmatpush.msra.mxu0 0.0
    %4070 = vmatpush.msra.mxu0 0.0
    %4071 = vmatpush.msra.mxu0 0.0
    %4072 = vmatpush.msra.mxu0 0.0
    %4073 = vmatpush.msra.mxu0 0.0
    %4074 = vmatpush.msra.mxu0 0.0
    %4075 = vmatpush.msra.mxu0 0.0
    %4076 = vmatpush.msra.mxu0 0.0
    %4077 = vmatpush.msra.mxu0 0.0
    %4078 = vmatpush.msra.mxu0 0.0
    %v4079 = vand.u32 %v4007, 4294901760
    %v4080 = vsub.f32 %v4007, %v4079
    %4081 = vmatpush.msra.mxu0 %v4080
    %v4082 = vand.u32 %v4010, 4294901760
    %v4083 = vsub.f32 %v4010, %v4082
    %4084 = vmatmul.f32.gmra.mxu0 %v4083
    %v4085 = vpop.f32.mrf.mxu0
    %v4086 = vadd.f32 %v4062, %v4085
    %4087 = vdwg.mxu0
    %4088 = vmatpush.msra.mxu0 0.0
    %4089 = vmatpush.msra.mxu0 0.0
    %4090 = vmatpush.msra.mxu0 0.0
    %4091 = vmatpush.msra.mxu0 0.0
    %4092 = vmatpush.msra.mxu0 0.0
    %4093 = vmatpush.msra.mxu0 0.0
    %4094 = vmatpush.msra.mxu0 0.0
    %4095 = vmatpush.msra.mxu0 0.0
    %4096 = vmatpush.msra.mxu0 0.0
    %4097 = vmatpush.msra.mxu0 0.0
    %4098 = vmatpush.msra.mxu0 0.0
    %4099 = vmatpush.msra.mxu0 0.0
    %4100 = vmatpush.msra.mxu0 0.0
    %4101 = vmatpush.msra.mxu0 0.0
    %4102 = vmatpush.msra.mxu0 0.0
    %v4103 = vand.u32 %v4007, 4294901760
    %4104 = vmatpush.msra.mxu0 %v4103
    %v4105 = vand.u32 %v4010, 4294901760
    %v4106 = vsub.f32 %v4010, %v4105
    %v4107 = vand.u32 %v4106, 4294901760
    %4108 = vmatmul.f32.gmra.mxu0 %v4107
    %v4109 = vpop.f32.mrf.mxu0
    %v4110 = vadd.f32 %v4086, %v4109
    %4111 = vdwg.mxu0
    %4112 = vmatpush.msra.mxu0 0.0
    %4113 = vmatpush.msra.mxu0 0.0
    %4114 = vmatpush.msra.mxu0 0.0
    %4115 = vmatpush.msra.mxu0 0.0
    %4116 = vmatpush.msra.mxu0 0.0
    %4117 = vmatpush.msra.mxu0 0.0
    %4118 = vmatpush.msra.mxu0 0.0
    %4119 = vmatpush.msra.mxu0 0.0
    %4120 = vmatpush.msra.mxu0 0.0
    %4121 = vmatpush.msra.mxu0 0.0
    %4122 = vmatpush.msra.mxu0 0.0
    %4123 = vmatpush.msra.mxu0 0.0
    %4124 = vmatpush.msra.mxu0 0.0
    %4125 = vmatpush.msra.mxu0 0.0
    %4126 = vmatpush.msra.mxu0 0.0
    %v4127 = vand.u32 %v4007, 4294901760
    %v4128 = vsub.f32 %v4007, %v4127
    %v4129 = vand.u32 %v4128, 4294901760
    %4130 = vmatpush.msra.mxu0 %v4129
    %v4131 = vand.u32 %v4010, 4294901760
    %4132 = vmatmul.f32.gmra.mxu0 %v4131
    %v4133 = vpop.f32.mrf.mxu0
    %v4134 = vadd.f32 %v4110, %v4133
    %4135 = vdwg.mxu0
    %4136 = vmatpush.msra.mxu0 0.0
    %4137 = vmatpush.msra.mxu0 0.0
    %4138 = vmatpush.msra.mxu0 0.0
    %4139 = vmatpush.msra.mxu0 0.0
    %4140 = vmatpush.msra.mxu0 0.0
    %4141 = vmatpush.msra.mxu0 0.0
    %4142 = vmatpush.msra.mxu0 0.0
    %4143 = vmatpush.msra.mxu0 0.0
    %4144 = vmatpush.msra.mxu0 0.0
    %4145 = vmatpush.msra.mxu0 0.0
    %4146 = vmatpush.msra.mxu0 0.0
    %4147 = vmatpush.msra.mxu0 0.0
    %4148 = vmatpush.msra.mxu0 0.0
    %4149 = vmatpush.msra.mxu0 0.0
    %4150 = vmatpush.msra.mxu0 0.0
    %v4151 = vand.u32 %v4007, 4294901760
    %4152 = vmatpush.msra.mxu0 %v4151
    %v4153 = vand.u32 %v4010, 4294901760
    %4154 = vmatmul.f32.gmra.mxu0 %v4153
    %v4155 = vpop.f32.mrf.mxu0
    %v4156 = vadd.f32 %v4134, %v4155
    %4157 = vdwg.mxu0
    %4159 = vrot.lane.b32.xlu0 %v3496, 8
    %v4160 = vpop.permute.xlu0 %4159
    %4163 = vrot.lane.b32.xlu0 %v3826, 16
    %v4164 = vpop.permute.xlu0 %4163
    %4167 = vrot.lane.b32.xlu0 %v4156, 24
    %v4168 = vpop.permute.xlu0 %4167
    %v4170 = vsel %vm278, %v3166, %v4160
    %v4171 = vsel %vm1608, %v4170, %v4164
    %v4172 = vsel %vm1610, %v4171, %v4168
    %v4173 = vperm.slane %v2622, 0
    %4178 = vrot.lane.b32.xlu0 %v2616, 32
    %v4179 = vpop.permute.xlu0 %4178
    %4180 = vrot.lane.b32.xlu0 %v2617, 32
    %v4181 = vpop.permute.xlu0 %4180
    %4182 = vrot.lane.b32.xlu0 %v2618, 32
    %v4183 = vpop.permute.xlu0 %4182
    %4184 = vrot.lane.b32.xlu0 %v2619, 32
    %v4185 = vpop.permute.xlu0 %4184
    %v4191 = vsel %vm87, %v4172, 0
    %4193 = vmatpush.msra.mxu0 0.0
    %4194 = vmatpush.msra.mxu0 0.0
    %4195 = vmatpush.msra.mxu0 0.0
    %4196 = vmatpush.msra.mxu0 0.0
    %4197 = vmatpush.msra.mxu0 0.0
    %4198 = vmatpush.msra.mxu0 0.0
    %4199 = vmatpush.msra.mxu0 0.0
    %4200 = vmatpush.msra.mxu0 0.0
    %4201 = vmatpush.msra.mxu0 0.0
    %4202 = vmatpush.msra.mxu0 0.0
    %4203 = vmatpush.msra.mxu0 0.0
    %4204 = vmatpush.msra.mxu0 0.0
    %v4205 = vand.u32 %v4185, 4294901760
    %4206 = vmatpush.msra.mxu0 %v4205
    %v4207 = vand.u32 %v4183, 4294901760
    %4208 = vmatpush.msra.mxu0 %v4207
    %v4209 = vand.u32 %v4181, 4294901760
    %4210 = vmatpush.msra.mxu0 %v4209
    %v4211 = vand.u32 %v4179, 4294901760
    %4212 = vmatpush.msra.mxu0 %v4211
    %v4213 = vand.u32 %v4191, 4294901760
    %v4214 = vsub.f32 %v4191, %v4213
    %v4215 = vand.u32 %v4214, 4294901760
    %v4216 = vsub.f32 %v4214, %v4215
    %v4217 = vand.u32 %v4216, 4294901760
    %4218 = vmatmul.f32.gmra.mxu0 %v4217
    %v4219 = vpop.f32.mrf.mxu0
    %v4220 = vadd.f32 %v4173, %v4219
    %4221 = vdwg.mxu0
    %4222 = vmatpush.msra.mxu0 0.0
    %4223 = vmatpush.msra.mxu0 0.0
    %4224 = vmatpush.msra.mxu0 0.0
    %4225 = vmatpush.msra.mxu0 0.0
    %4226 = vmatpush.msra.mxu0 0.0
    %4227 = vmatpush.msra.mxu0 0.0
    %4228 = vmatpush.msra.mxu0 0.0
    %4229 = vmatpush.msra.mxu0 0.0
    %4230 = vmatpush.msra.mxu0 0.0
    %4231 = vmatpush.msra.mxu0 0.0
    %4232 = vmatpush.msra.mxu0 0.0
    %4233 = vmatpush.msra.mxu0 0.0
    %v4234 = vand.u32 %v4185, 4294901760
    %v4235 = vsub.f32 %v4185, %v4234
    %v4236 = vand.u32 %v4235, 4294901760
    %v4237 = vsub.f32 %v4235, %v4236
    %v4238 = vand.u32 %v4237, 4294901760
    %4239 = vmatpush.msra.mxu0 %v4238
    %v4240 = vand.u32 %v4183, 4294901760
    %v4241 = vsub.f32 %v4183, %v4240
    %v4242 = vand.u32 %v4241, 4294901760
    %v4243 = vsub.f32 %v4241, %v4242
    %v4244 = vand.u32 %v4243, 4294901760
    %4245 = vmatpush.msra.mxu0 %v4244
    %v4246 = vand.u32 %v4181, 4294901760
    %v4247 = vsub.f32 %v4181, %v4246
    %v4248 = vand.u32 %v4247, 4294901760
    %v4249 = vsub.f32 %v4247, %v4248
    %v4250 = vand.u32 %v4249, 4294901760
    %4251 = vmatpush.msra.mxu0 %v4250
    %v4252 = vand.u32 %v4179, 4294901760
    %v4253 = vsub.f32 %v4179, %v4252
    %v4254 = vand.u32 %v4253, 4294901760
    %v4255 = vsub.f32 %v4253, %v4254
    %v4256 = vand.u32 %v4255, 4294901760
    %4257 = vmatpush.msra.mxu0 %v4256
    %v4258 = vand.u32 %v4191, 4294901760
    %4259 = vmatmul.f32.gmra.mxu0 %v4258
    %v4260 = vpop.f32.mrf.mxu0
    %v4261 = vadd.f32 %v4220, %v4260
    %4262 = vdwg.mxu0
    %4263 = vmatpush.msra.mxu0 0.0
    %4264 = vmatpush.msra.mxu0 0.0
    %4265 = vmatpush.msra.mxu0 0.0
    %4266 = vmatpush.msra.mxu0 0.0
    %4267 = vmatpush.msra.mxu0 0.0
    %4268 = vmatpush.msra.mxu0 0.0
    %4269 = vmatpush.msra.mxu0 0.0
    %4270 = vmatpush.msra.mxu0 0.0
    %4271 = vmatpush.msra.mxu0 0.0
    %4272 = vmatpush.msra.mxu0 0.0
    %4273 = vmatpush.msra.mxu0 0.0
    %4274 = vmatpush.msra.mxu0 0.0
    %v4275 = vand.u32 %v4185, 4294901760
    %v4276 = vsub.f32 %v4185, %v4275
    %4277 = vmatpush.msra.mxu0 %v4276
    %v4278 = vand.u32 %v4183, 4294901760
    %v4279 = vsub.f32 %v4183, %v4278
    %4280 = vmatpush.msra.mxu0 %v4279
    %v4281 = vand.u32 %v4181, 4294901760
    %v4282 = vsub.f32 %v4181, %v4281
    %4283 = vmatpush.msra.mxu0 %v4282
    %v4284 = vand.u32 %v4179, 4294901760
    %v4285 = vsub.f32 %v4179, %v4284
    %4286 = vmatpush.msra.mxu0 %v4285
    %v4287 = vand.u32 %v4191, 4294901760
    %v4288 = vsub.f32 %v4191, %v4287
    %4289 = vmatmul.f32.gmra.mxu0 %v4288
    %v4290 = vpop.f32.mrf.mxu0
    %v4291 = vadd.f32 %v4261, %v4290
    %4292 = vdwg.mxu0
    %4293 = vmatpush.msra.mxu0 0.0
    %4294 = vmatpush.msra.mxu0 0.0
    %4295 = vmatpush.msra.mxu0 0.0
    %4296 = vmatpush.msra.mxu0 0.0
    %4297 = vmatpush.msra.mxu0 0.0
    %4298 = vmatpush.msra.mxu0 0.0
    %4299 = vmatpush.msra.mxu0 0.0
    %4300 = vmatpush.msra.mxu0 0.0
    %4301 = vmatpush.msra.mxu0 0.0
    %4302 = vmatpush.msra.mxu0 0.0
    %4303 = vmatpush.msra.mxu0 0.0
    %4304 = vmatpush.msra.mxu0 0.0
    %v4305 = vand.u32 %v4185, 4294901760
    %4306 = vmatpush.msra.mxu0 %v4305
    %v4307 = vand.u32 %v4183, 4294901760
    %4308 = vmatpush.msra.mxu0 %v4307
    %v4309 = vand.u32 %v4181, 4294901760
    %4310 = vmatpush.msra.mxu0 %v4309
    %v4311 = vand.u32 %v4179, 4294901760
    %4312 = vmatpush.msra.mxu0 %v4311
    %v4313 = vand.u32 %v4191, 4294901760
    %v4314 = vsub.f32 %v4191, %v4313
    %v4315 = vand.u32 %v4314, 4294901760
    %4316 = vmatmul.f32.gmra.mxu0 %v4315
    %v4317 = vpop.f32.mrf.mxu0
    %v4318 = vadd.f32 %v4291, %v4317
    %4319 = vdwg.mxu0
    %4320 = vmatpush.msra.mxu0 0.0
    %4321 = vmatpush.msra.mxu0 0.0
    %4322 = vmatpush.msra.mxu0 0.0
    %4323 = vmatpush.msra.mxu0 0.0
    %4324 = vmatpush.msra.mxu0 0.0
    %4325 = vmatpush.msra.mxu0 0.0
    %4326 = vmatpush.msra.mxu0 0.0
    %4327 = vmatpush.msra.mxu0 0.0
    %4328 = vmatpush.msra.mxu0 0.0
    %4329 = vmatpush.msra.mxu0 0.0
    %4330 = vmatpush.msra.mxu0 0.0
    %4331 = vmatpush.msra.mxu0 0.0
    %v4332 = vand.u32 %v4185, 4294901760
    %v4333 = vsub.f32 %v4185, %v4332
    %v4334 = vand.u32 %v4333, 4294901760
    %4335 = vmatpush.msra.mxu0 %v4334
    %v4336 = vand.u32 %v4183, 4294901760
    %v4337 = vsub.f32 %v4183, %v4336
    %v4338 = vand.u32 %v4337, 4294901760
    %4339 = vmatpush.msra.mxu0 %v4338
    %v4340 = vand.u32 %v4181, 4294901760
    %v4341 = vsub.f32 %v4181, %v4340
    %v4342 = vand.u32 %v4341, 4294901760
    %4343 = vmatpush.msra.mxu0 %v4342
    %v4344 = vand.u32 %v4179, 4294901760
    %v4345 = vsub.f32 %v4179, %v4344
    %v4346 = vand.u32 %v4345, 4294901760
    %4347 = vmatpush.msra.mxu0 %v4346
    %v4348 = vand.u32 %v4191, 4294901760
    %4349 = vmatmul.f32.gmra.mxu0 %v4348
    %v4350 = vpop.f32.mrf.mxu0
    %v4351 = vadd.f32 %v4318, %v4350
    %4352 = vdwg.mxu0
    %4353 = vmatpush.msra.mxu0 0.0
    %4354 = vmatpush.msra.mxu0 0.0
    %4355 = vmatpush.msra.mxu0 0.0
    %4356 = vmatpush.msra.mxu0 0.0
    %4357 = vmatpush.msra.mxu0 0.0
    %4358 = vmatpush.msra.mxu0 0.0
    %4359 = vmatpush.msra.mxu0 0.0
    %4360 = vmatpush.msra.mxu0 0.0
    %4361 = vmatpush.msra.mxu0 0.0
    %4362 = vmatpush.msra.mxu0 0.0
    %4363 = vmatpush.msra.mxu0 0.0
    %4364 = vmatpush.msra.mxu0 0.0
    %v4365 = vand.u32 %v4185, 4294901760
    %4366 = vmatpush.msra.mxu0 %v4365
    %v4367 = vand.u32 %v4183, 4294901760
    %4368 = vmatpush.msra.mxu0 %v4367
    %v4369 = vand.u32 %v4181, 4294901760
    %4370 = vmatpush.msra.mxu0 %v4369
    %v4371 = vand.u32 %v4179, 4294901760
    %4372 = vmatpush.msra.mxu0 %v4371
    %v4373 = vand.u32 %v4191, 4294901760
    %4374 = vmatmul.f32.gmra.mxu0 %v4373
    %v4375 = vpop.f32.mrf.mxu0
    %v4376 = vadd.f32 %v4351, %v4375
    %4377 = vdwg.mxu0
    %v4379 = vrot.slane %v4376, 1
    %v4380 = vrot.slane %v4376, 2
    %v4381 = vrot.slane %v4376, 3
    %v4382 = vrot.slane %v4376, 4
    %v4383 = vrot.slane %v4376, 5
    %v4384 = vrot.slane %v4376, 6
    %v4385 = vrot.slane %v4376, 7
    %v4394 = vadd.f32 %v2607, %v4376
    %v4395 = vadd.f32 %v2608, %v4379
    %v4396 = vadd.f32 %v2609, %v4380
    %v4397 = vadd.f32 %v2610, %v4381
    %v4398 = vadd.f32 %v2611, %v4382
    %v4399 = vadd.f32 %v2612, %v4383
    %v4400 = vadd.f32 %v2613, %v4384
    %v4401 = vadd.f32 %v2614, %v4385
    %v4410 = vrot.slane %v4395, 7
    %v4411 = vsel %vm67, %v4410, %v4394
    %v4412 = vrot.slane %v4396, 6
    %v4413 = vsel %vm70, %v4412, %v4411
    %v4414 = vrot.slane %v4397, 5
    %v4415 = vsel %vm73, %v4414, %v4413
    %v4416 = vrot.slane %v4398, 4
    %v4417 = vsel %vm76, %v4416, %v4415
    %v4418 = vrot.slane %v4399, 3
    %v4419 = vsel %vm79, %v4418, %v4417
    %v4420 = vrot.slane %v4400, 2
    %v4421 = vsel %vm82, %v4420, %v4419
    %v4422 = vrot.slane %v4401, 1
    %v4423 = vsel %vm85, %v4422, %v4421
    %v4425 = vsel %vm87, %v4423, 0.0
    %4426 = vadd.xlane.f32.xlu0 %v4425
    %v4427 = vpop.xlane.xlu0 %4426
    %v4428 = vmul.f32 %v4427, %v1873
    %v4430 = vrot.slane %v4428, 1
    %v4431 = vrot.slane %v4428, 2
    %v4432 = vrot.slane %v4428, 3
    %v4433 = vrot.slane %v4428, 4
    %v4434 = vrot.slane %v4428, 5
    %v4435 = vrot.slane %v4428, 6
    %v4436 = vrot.slane %v4428, 7
    %v4445 = vsub.f32 %v4394, %v4428
    %v4446 = vsub.f32 %v4395, %v4430
    %v4447 = vsub.f32 %v4396, %v4431
    %v4448 = vsub.f32 %v4397, %v4432
    %v4449 = vsub.f32 %v4398, %v4433
    %v4450 = vsub.f32 %v4399, %v4434
    %v4451 = vsub.f32 %v4400, %v4435
    %v4452 = vsub.f32 %v4401, %v4436
    %v4453 = vmul.f32 %v4445, %v4445
    %v4454 = vmul.f32 %v4446, %v4446
    %v4455 = vmul.f32 %v4447, %v4447
    %v4456 = vmul.f32 %v4448, %v4448
    %v4457 = vmul.f32 %v4449, %v4449
    %v4458 = vmul.f32 %v4450, %v4450
    %v4459 = vmul.f32 %v4451, %v4451
    %v4460 = vmul.f32 %v4452, %v4452
    %v4469 = vrot.slane %v4454, 7
    %v4470 = vsel %vm67, %v4469, %v4453
    %v4471 = vrot.slane %v4455, 6
    %v4472 = vsel %vm70, %v4471, %v4470
    %v4473 = vrot.slane %v4456, 5
    %v4474 = vsel %vm73, %v4473, %v4472
    %v4475 = vrot.slane %v4457, 4
    %v4476 = vsel %vm76, %v4475, %v4474
    %v4477 = vrot.slane %v4458, 3
    %v4478 = vsel %vm79, %v4477, %v4476
    %v4479 = vrot.slane %v4459, 2
    %v4480 = vsel %vm82, %v4479, %v4478
    %v4481 = vrot.slane %v4460, 1
    %v4482 = vsel %vm85, %v4481, %v4480
    %v4484 = vsel %vm87, %v4482, 0.0
    %4485 = vadd.xlane.f32.xlu0 %v4484
    %v4486 = vpop.xlane.xlu0 %4485
    %v4487 = vmul.f32 %v4486, %v1873
    %v4488 = vadd.f32 %v4487, 1e-05
    %v4489 = vrsqrt.pop %v4488
    %v4490 = vmul.f32 %v4489, %v4488
    %v4491 = vmul.f32 %v4490, %v4489
    %v4492 = vmul.f32 0.5, %v4491
    %v4493 = vsub.f32 1.5, %v4492
    %v4494 = vmul.f32 %v4489, %v4493
    %vm4495 = vweird.f32 %v4488
    %vm4496 = vweird.f32 %v4489
    %vm4497 = vmor %vm4495, %vm4496
    %v4498 = vsel %vm4497, %v4489, %v4494
    %v4500 = vrot.slane %v4498, 1
    %v4501 = vrot.slane %v4498, 2
    %v4502 = vrot.slane %v4498, 3
    %v4503 = vrot.slane %v4498, 4
    %v4504 = vrot.slane %v4498, 5
    %v4505 = vrot.slane %v4498, 6
    %v4506 = vrot.slane %v4498, 7
    %v4515 = vmul.f32 %v4445, %v4498
    %v4516 = vmul.f32 %v4446, %v4500
    %v4517 = vmul.f32 %v4447, %v4501
    %v4518 = vmul.f32 %v4448, %v4502
    %v4519 = vmul.f32 %v4449, %v4503
    %v4520 = vmul.f32 %v4450, %v4504
    %v4521 = vmul.f32 %v4451, %v4505
    %v4522 = vmul.f32 %v4452, %v4506
    %v4523 = vperm.slane %v2625, 0
    %v4524 = vmul.f32 %v4515, %v4523
    %v4525 = vmul.f32 %v4516, %v4523
    %v4526 = vmul.f32 %v4517, %v4523
    %v4527 = vmul.f32 %v4518, %v4523
    %v4528 = vmul.f32 %v4519, %v4523
    %v4529 = vmul.f32 %v4520, %v4523
    %v4530 = vmul.f32 %v4521, %v4523
    %v4531 = vmul.f32 %v4522, %v4523
    %v4532 = vperm.slane %v2626, 0
    %v4533 = vadd.f32 %v4524, %v4532
    %v4534 = vadd.f32 %v4525, %v4532
    %v4535 = vadd.f32 %v4526, %v4532
    %v4536 = vadd.f32 %v4527, %v4532
    %v4537 = vadd.f32 %v4528, %v4532
    %v4538 = vadd.f32 %v4529, %v4532
    %v4539 = vadd.f32 %v4530, %v4532
    %v4540 = vadd.f32 %v4531, %v4532
    %s4541 = scalar_lea.vmem %s2, 32
    %v4542 = vld [vmem:[%s4541] sm:$0xff]
    %v4543 = vld [vmem:[%s4541 + $0x8] sm:$0xff]
    %v4544 = vld [vmem:[%s4541 + $0x10] sm:$0xff]
    %v4545 = vld [vmem:[%s4541 + $0x18] sm:$0xff]
    %v4546 = vperm.slane %v2623, 0
    %v4555 = vrot.slane %v4534, 7
    %v4556 = vsel %vm67, %v4555, %v4533
    %v4557 = vrot.slane %v4535, 6
    %v4558 = vsel %vm70, %v4557, %v4556
    %v4559 = vrot.slane %v4536, 5
    %v4560 = vsel %vm73, %v4559, %v4558
    %v4561 = vrot.slane %v4537, 4
    %v4562 = vsel %vm76, %v4561, %v4560
    %v4563 = vrot.slane %v4538, 3
    %v4564 = vsel %vm79, %v4563, %v4562
    %v4565 = vrot.slane %v4539, 2
    %v4566 = vsel %vm82, %v4565, %v4564
    %v4567 = vrot.slane %v4540, 1
    %v4568 = vsel %vm85, %v4567, %v4566
    %v4569 = vsel %vm87, %v4568, 0
    %4571 = vmatpush.msra.mxu0 0.0
    %4572 = vmatpush.msra.mxu0 0.0
    %4573 = vmatpush.msra.mxu0 0.0
    %4574 = vmatpush.msra.mxu0 0.0
    %4575 = vmatpush.msra.mxu0 0.0
    %4576 = vmatpush.msra.mxu0 0.0
    %4577 = vmatpush.msra.mxu0 0.0
    %4578 = vmatpush.msra.mxu0 0.0
    %4579 = vmatpush.msra.mxu0 0.0
    %4580 = vmatpush.msra.mxu0 0.0
    %4581 = vmatpush.msra.mxu0 0.0
    %4582 = vmatpush.msra.mxu0 0.0
    %v4583 = vand.u32 %v4545, 4294901760
    %4584 = vmatpush.msra.mxu0 %v4583
    %v4585 = vand.u32 %v4544, 4294901760
    %4586 = vmatpush.msra.mxu0 %v4585
    %v4587 = vand.u32 %v4543, 4294901760
    %4588 = vmatpush.msra.mxu0 %v4587
    %v4589 = vand.u32 %v4542, 4294901760
    %4590 = vmatpush.msra.mxu0 %v4589
    %v4591 = vand.u32 %v4569, 4294901760
    %v4592 = vsub.f32 %v4569, %v4591
    %v4593 = vand.u32 %v4592, 4294901760
    %v4594 = vsub.f32 %v4592, %v4593
    %v4595 = vand.u32 %v4594, 4294901760
    %4596 = vmatmul.f32.gmra.mxu0 %v4595
    %v4597 = vpop.f32.mrf.mxu0
    %v4598 = vadd.f32 %v4546, %v4597
    %4599 = vdwg.mxu0
    %4600 = vmatpush.msra.mxu0 0.0
    %4601 = vmatpush.msra.mxu0 0.0
    %4602 = vmatpush.msra.mxu0 0.0
    %4603 = vmatpush.msra.mxu0 0.0
    %4604 = vmatpush.msra.mxu0 0.0
    %4605 = vmatpush.msra.mxu0 0.0
    %4606 = vmatpush.msra.mxu0 0.0
    %4607 = vmatpush.msra.mxu0 0.0
    %4608 = vmatpush.msra.mxu0 0.0
    %4609 = vmatpush.msra.mxu0 0.0
    %4610 = vmatpush.msra.mxu0 0.0
    %4611 = vmatpush.msra.mxu0 0.0
    %v4612 = vand.u32 %v4545, 4294901760
    %v4613 = vsub.f32 %v4545, %v4612
    %v4614 = vand.u32 %v4613, 4294901760
    %v4615 = vsub.f32 %v4613, %v4614
    %v4616 = vand.u32 %v4615, 4294901760
    %4617 = vmatpush.msra.mxu0 %v4616
    %v4618 = vand.u32 %v4544, 4294901760
    %v4619 = vsub.f32 %v4544, %v4618
    %v4620 = vand.u32 %v4619, 4294901760
    %v4621 = vsub.f32 %v4619, %v4620
    %v4622 = vand.u32 %v4621, 4294901760
    %4623 = vmatpush.msra.mxu0 %v4622
    %v4624 = vand.u32 %v4543, 4294901760
    %v4625 = vsub.f32 %v4543, %v4624
    %v4626 = vand.u32 %v4625, 4294901760
    %v4627 = vsub.f32 %v4625, %v4626
    %v4628 = vand.u32 %v4627, 4294901760
    %4629 = vmatpush.msra.mxu0 %v4628
    %v4630 = vand.u32 %v4542, 4294901760
    %v4631 = vsub.f32 %v4542, %v4630
    %v4632 = vand.u32 %v4631, 4294901760
    %v4633 = vsub.f32 %v4631, %v4632
    %v4634 = vand.u32 %v4633, 4294901760
    %4635 = vmatpush.msra.mxu0 %v4634
    %v4636 = vand.u32 %v4569, 4294901760
    %4637 = vmatmul.f32.gmra.mxu0 %v4636
    %v4638 = vpop.f32.mrf.mxu0
    %v4639 = vadd.f32 %v4598, %v4638
    %4640 = vdwg.mxu0
    %4641 = vmatpush.msra.mxu0 0.0
    %4642 = vmatpush.msra.mxu0 0.0
    %4643 = vmatpush.msra.mxu0 0.0
    %4644 = vmatpush.msra.mxu0 0.0
    %4645 = vmatpush.msra.mxu0 0.0
    %4646 = vmatpush.msra.mxu0 0.0
    %4647 = vmatpush.msra.mxu0 0.0
    %4648 = vmatpush.msra.mxu0 0.0
    %4649 = vmatpush.msra.mxu0 0.0
    %4650 = vmatpush.msra.mxu0 0.0
    %4651 = vmatpush.msra.mxu0 0.0
    %4652 = vmatpush.msra.mxu0 0.0
    %v4653 = vand.u32 %v4545, 4294901760
    %v4654 = vsub.f32 %v4545, %v4653
    %4655 = vmatpush.msra.mxu0 %v4654
    %v4656 = vand.u32 %v4544, 4294901760
    %v4657 = vsub.f32 %v4544, %v4656
    %4658 = vmatpush.msra.mxu0 %v4657
    %v4659 = vand.u32 %v4543, 4294901760
    %v4660 = vsub.f32 %v4543, %v4659
    %4661 = vmatpush.msra.mxu0 %v4660
    %v4662 = vand.u32 %v4542, 4294901760
    %v4663 = vsub.f32 %v4542, %v4662
    %4664 = vmatpush.msra.mxu0 %v4663
    %v4665 = vand.u32 %v4569, 4294901760
    %v4666 = vsub.f32 %v4569, %v4665
    %4667 = vmatmul.f32.gmra.mxu0 %v4666
    %v4668 = vpop.f32.mrf.mxu0
    %v4669 = vadd.f32 %v4639, %v4668
    %4670 = vdwg.mxu0
    %4671 = vmatpush.msra.mxu0 0.0
    %4672 = vmatpush.msra.mxu0 0.0
    %4673 = vmatpush.msra.mxu0 0.0
    %4674 = vmatpush.msra.mxu0 0.0
    %4675 = vmatpush.msra.mxu0 0.0
    %4676 = vmatpush.msra.mxu0 0.0
    %4677 = vmatpush.msra.mxu0 0.0
    %4678 = vmatpush.msra.mxu0 0.0
    %4679 = vmatpush.msra.mxu0 0.0
    %4680 = vmatpush.msra.mxu0 0.0
    %4681 = vmatpush.msra.mxu0 0.0
    %4682 = vmatpush.msra.mxu0 0.0
    %v4683 = vand.u32 %v4545, 4294901760
    %4684 = vmatpush.msra.mxu0 %v4683
    %v4685 = vand.u32 %v4544, 4294901760
    %4686 = vmatpush.msra.mxu0 %v4685
    %v4687 = vand.u32 %v4543, 4294901760
    %4688 = vmatpush.msra.mxu0 %v4687
    %v4689 = vand.u32 %v4542, 4294901760
    %4690 = vmatpush.msra.mxu0 %v4689
    %v4691 = vand.u32 %v4569, 4294901760
    %v4692 = vsub.f32 %v4569, %v4691
    %v4693 = vand.u32 %v4692, 4294901760
    %4694 = vmatmul.f32.gmra.mxu0 %v4693
    %v4695 = vpop.f32.mrf.mxu0
    %v4696 = vadd.f32 %v4669, %v4695
    %4697 = vdwg.mxu0
    %4698 = vmatpush.msra.mxu0 0.0
    %4699 = vmatpush.msra.mxu0 0.0
    %4700 = vmatpush.msra.mxu0 0.0
    %4701 = vmatpush.msra.mxu0 0.0
    %4702 = vmatpush.msra.mxu0 0.0
    %4703 = vmatpush.msra.mxu0 0.0
    %4704 = vmatpush.msra.mxu0 0.0
    %4705 = vmatpush.msra.mxu0 0.0
    %4706 = vmatpush.msra.mxu0 0.0
    %4707 = vmatpush.msra.mxu0 0.0
    %4708 = vmatpush.msra.mxu0 0.0
    %4709 = vmatpush.msra.mxu0 0.0
    %v4710 = vand.u32 %v4545, 4294901760
    %v4711 = vsub.f32 %v4545, %v4710
    %v4712 = vand.u32 %v4711, 4294901760
    %4713 = vmatpush.msra.mxu0 %v4712
    %v4714 = vand.u32 %v4544, 4294901760
    %v4715 = vsub.f32 %v4544, %v4714
    %v4716 = vand.u32 %v4715, 4294901760
    %4717 = vmatpush.msra.mxu0 %v4716
    %v4718 = vand.u32 %v4543, 4294901760
    %v4719 = vsub.f32 %v4543, %v4718
    %v4720 = vand.u32 %v4719, 4294901760
    %4721 = vmatpush.msra.mxu0 %v4720
    %v4722 = vand.u32 %v4542, 4294901760
    %v4723 = vsub.f32 %v4542, %v4722
    %v4724 = vand.u32 %v4723, 4294901760
    %4725 = vmatpush.msra.mxu0 %v4724
    %v4726 = vand.u32 %v4569, 4294901760
    %4727 = vmatmul.f32.gmra.mxu0 %v4726
    %v4728 = vpop.f32.mrf.mxu0
    %v4729 = vadd.f32 %v4696, %v4728
    %4730 = vdwg.mxu0
    %4731 = vmatpush.msra.mxu0 0.0
    %4732 = vmatpush.msra.mxu0 0.0
    %4733 = vmatpush.msra.mxu0 0.0
    %4734 = vmatpush.msra.mxu0 0.0
    %4735 = vmatpush.msra.mxu0 0.0
    %4736 = vmatpush.msra.mxu0 0.0
    %4737 = vmatpush.msra.mxu0 0.0
    %4738 = vmatpush.msra.mxu0 0.0
    %4739 = vmatpush.msra.mxu0 0.0
    %4740 = vmatpush.msra.mxu0 0.0
    %4741 = vmatpush.msra.mxu0 0.0
    %4742 = vmatpush.msra.mxu0 0.0
    %v4743 = vand.u32 %v4545, 4294901760
    %4744 = vmatpush.msra.mxu0 %v4743
    %v4745 = vand.u32 %v4544, 4294901760
    %4746 = vmatpush.msra.mxu0 %v4745
    %v4747 = vand.u32 %v4543, 4294901760
    %4748 = vmatpush.msra.mxu0 %v4747
    %v4749 = vand.u32 %v4542, 4294901760
    %4750 = vmatpush.msra.mxu0 %v4749
    %v4751 = vand.u32 %v4569, 4294901760
    %4752 = vmatmul.f32.gmra.mxu0 %v4751
    %v4753 = vpop.f32.mrf.mxu0
    %v4754 = vadd.f32 %v4729, %v4753
    %4755 = vdwg.mxu0
    %v4756 = vmax.f32 %v4754, 0.0
    %s4757 = scalar_lea.vmem %s3, 64
    %v4758 = vld [vmem:[%s4757] sm:$0xff]
    %v4759 = vld [vmem:[%s4757 + $0x8] sm:$0xff]
    %v4760 = vld [vmem:[%s4757 + $0x10] sm:$0xff]
    %v4761 = vld [vmem:[%s4757 + $0x18] sm:$0xff]
    %v4762 = vld [vmem:[%s4757 + $0x20] sm:$0xff]
    %v4763 = vld [vmem:[%s4757 + $0x28] sm:$0xff]
    %v4764 = vld [vmem:[%s4757 + $0x30] sm:$0xff]
    %v4765 = vld [vmem:[%s4757 + $0x38] sm:$0xff]
    %v4766 = vperm.slane %v2624, 0
    %v4768 = vsel %vm2211, %v4756, 0
    %4770 = vmatpush.msra.mxu0 0.0
    %4771 = vmatpush.msra.mxu0 0.0
    %4772 = vmatpush.msra.mxu0 0.0
    %4773 = vmatpush.msra.mxu0 0.0
    %4774 = vmatpush.msra.mxu0 0.0
    %4775 = vmatpush.msra.mxu0 0.0
    %4776 = vmatpush.msra.mxu0 0.0
    %4777 = vmatpush.msra.mxu0 0.0
    %v4778 = vand.u32 %v4765, 4294901760
    %4779 = vmatpush.msra.mxu0 %v4778
    %v4780 = vand.u32 %v4764, 4294901760
    %4781 = vmatpush.msra.mxu0 %v4780
    %v4782 = vand.u32 %v4763, 4294901760
    %4783 = vmatpush.msra.mxu0 %v4782
    %v4784 = vand.u32 %v4762, 4294901760
    %4785 = vmatpush.msra.mxu0 %v4784
    %v4786 = vand.u32 %v4761, 4294901760
    %4787 = vmatpush.msra.mxu0 %v4786
    %v4788 = vand.u32 %v4760, 4294901760
    %4789 = vmatpush.msra.mxu0 %v4788
    %v4790 = vand.u32 %v4759, 4294901760
    %4791 = vmatpush.msra.mxu0 %v4790
    %v4792 = vand.u32 %v4758, 4294901760
    %4793 = vmatpush.msra.mxu0 %v4792
    %v4794 = vand.u32 %v4768, 4294901760
    %v4795 = vsub.f32 %v4768, %v4794
    %v4796 = vand.u32 %v4795, 4294901760
    %v4797 = vsub.f32 %v4795, %v4796
    %v4798 = vand.u32 %v4797, 4294901760
    %4799 = vmatmul.f32.gmra.mxu0 %v4798
    %v4800 = vpop.f32.mrf.mxu0
    %v4801 = vadd.f32 %v4766, %v4800
    %4802 = vdwg.mxu0
    %4803 = vmatpush.msra.mxu0 0.0
    %4804 = vmatpush.msra.mxu0 0.0
    %4805 = vmatpush.msra.mxu0 0.0
    %4806 = vmatpush.msra.mxu0 0.0
    %4807 = vmatpush.msra.mxu0 0.0
    %4808 = vmatpush.msra.mxu0 0.0
    %4809 = vmatpush.msra.mxu0 0.0
    %4810 = vmatpush.msra.mxu0 0.0
    %v4811 = vand.u32 %v4765, 4294901760
    %v4812 = vsub.f32 %v4765, %v4811
    %v4813 = vand.u32 %v4812, 4294901760
    %v4814 = vsub.f32 %v4812, %v4813
    %v4815 = vand.u32 %v4814, 4294901760
    %4816 = vmatpush.msra.mxu0 %v4815
    %v4817 = vand.u32 %v4764, 4294901760
    %v4818 = vsub.f32 %v4764, %v4817
    %v4819 = vand.u32 %v4818, 4294901760
    %v4820 = vsub.f32 %v4818, %v4819
    %v4821 = vand.u32 %v4820, 4294901760
    %4822 = vmatpush.msra.mxu0 %v4821
    %v4823 = vand.u32 %v4763, 4294901760
    %v4824 = vsub.f32 %v4763, %v4823
    %v4825 = vand.u32 %v4824, 4294901760
    %v4826 = vsub.f32 %v4824, %v4825
    %v4827 = vand.u32 %v4826, 4294901760
    %4828 = vmatpush.msra.mxu0 %v4827
    %v4829 = vand.u32 %v4762, 4294901760
    %v4830 = vsub.f32 %v4762, %v4829
    %v4831 = vand.u32 %v4830, 4294901760
    %v4832 = vsub.f32 %v4830, %v4831
    %v4833 = vand.u32 %v4832, 4294901760
    %4834 = vmatpush.msra.mxu0 %v4833
    %v4835 = vand.u32 %v4761, 4294901760
    %v4836 = vsub.f32 %v4761, %v4835
    %v4837 = vand.u32 %v4836, 4294901760
    %v4838 = vsub.f32 %v4836, %v4837
    %v4839 = vand.u32 %v4838, 4294901760
    %4840 = vmatpush.msra.mxu0 %v4839
    %v4841 = vand.u32 %v4760, 4294901760
    %v4842 = vsub.f32 %v4760, %v4841
    %v4843 = vand.u32 %v4842, 4294901760
    %v4844 = vsub.f32 %v4842, %v4843
    %v4845 = vand.u32 %v4844, 4294901760
    %4846 = vmatpush.msra.mxu0 %v4845
    %v4847 = vand.u32 %v4759, 4294901760
    %v4848 = vsub.f32 %v4759, %v4847
    %v4849 = vand.u32 %v4848, 4294901760
    %v4850 = vsub.f32 %v4848, %v4849
    %v4851 = vand.u32 %v4850, 4294901760
    %4852 = vmatpush.msra.mxu0 %v4851
    %v4853 = vand.u32 %v4758, 4294901760
    %v4854 = vsub.f32 %v4758, %v4853
    %v4855 = vand.u32 %v4854, 4294901760
    %v4856 = vsub.f32 %v4854, %v4855
    %v4857 = vand.u32 %v4856, 4294901760
    %4858 = vmatpush.msra.mxu0 %v4857
    %v4859 = vand.u32 %v4768, 4294901760
    %4860 = vmatmul.f32.gmra.mxu0 %v4859
    %v4861 = vpop.f32.mrf.mxu0
    %v4862 = vadd.f32 %v4801, %v4861
    %4863 = vdwg.mxu0
    %4864 = vmatpush.msra.mxu0 0.0
    %4865 = vmatpush.msra.mxu0 0.0
    %4866 = vmatpush.msra.mxu0 0.0
    %4867 = vmatpush.msra.mxu0 0.0
    %4868 = vmatpush.msra.mxu0 0.0
    %4869 = vmatpush.msra.mxu0 0.0
    %4870 = vmatpush.msra.mxu0 0.0
    %4871 = vmatpush.msra.mxu0 0.0
    %v4872 = vand.u32 %v4765, 4294901760
    %v4873 = vsub.f32 %v4765, %v4872
    %4874 = vmatpush.msra.mxu0 %v4873
    %v4875 = vand.u32 %v4764, 4294901760
    %v4876 = vsub.f32 %v4764, %v4875
    %4877 = vmatpush.msra.mxu0 %v4876
    %v4878 = vand.u32 %v4763, 4294901760
    %v4879 = vsub.f32 %v4763, %v4878
    %4880 = vmatpush.msra.mxu0 %v4879
    %v4881 = vand.u32 %v4762, 4294901760
    %v4882 = vsub.f32 %v4762, %v4881
    %4883 = vmatpush.msra.mxu0 %v4882
    %v4884 = vand.u32 %v4761, 4294901760
    %v4885 = vsub.f32 %v4761, %v4884
    %4886 = vmatpush.msra.mxu0 %v4885
    %v4887 = vand.u32 %v4760, 4294901760
    %v4888 = vsub.f32 %v4760, %v4887
    %4889 = vmatpush.msra.mxu0 %v4888
    %v4890 = vand.u32 %v4759, 4294901760
    %v4891 = vsub.f32 %v4759, %v4890
    %4892 = vmatpush.msra.mxu0 %v4891
    %v4893 = vand.u32 %v4758, 4294901760
    %v4894 = vsub.f32 %v4758, %v4893
    %4895 = vmatpush.msra.mxu0 %v4894
    %v4896 = vand.u32 %v4768, 4294901760
    %v4897 = vsub.f32 %v4768, %v4896
    %4898 = vmatmul.f32.gmra.mxu0 %v4897
    %v4899 = vpop.f32.mrf.mxu0
    %v4900 = vadd.f32 %v4862, %v4899
    %4901 = vdwg.mxu0
    %4902 = vmatpush.msra.mxu0 0.0
    %4903 = vmatpush.msra.mxu0 0.0
    %4904 = vmatpush.msra.mxu0 0.0
    %4905 = vmatpush.msra.mxu0 0.0
    %4906 = vmatpush.msra.mxu0 0.0
    %4907 = vmatpush.msra.mxu0 0.0
    %4908 = vmatpush.msra.mxu0 0.0
    %4909 = vmatpush.msra.mxu0 0.0
    %v4910 = vand.u32 %v4765, 4294901760
    %4911 = vmatpush.msra.mxu0 %v4910
    %v4912 = vand.u32 %v4764, 4294901760
    %4913 = vmatpush.msra.mxu0 %v4912
    %v4914 = vand.u32 %v4763, 4294901760
    %4915 = vmatpush.msra.mxu0 %v4914
    %v4916 = vand.u32 %v4762, 4294901760
    %4917 = vmatpush.msra.mxu0 %v4916
    %v4918 = vand.u32 %v4761, 4294901760
    %4919 = vmatpush.msra.mxu0 %v4918
    %v4920 = vand.u32 %v4760, 4294901760
    %4921 = vmatpush.msra.mxu0 %v4920
    %v4922 = vand.u32 %v4759, 4294901760
    %4923 = vmatpush.msra.mxu0 %v4922
    %v4924 = vand.u32 %v4758, 4294901760
    %4925 = vmatpush.msra.mxu0 %v4924
    %v4926 = vand.u32 %v4768, 4294901760
    %v4927 = vsub.f32 %v4768, %v4926
    %v4928 = vand.u32 %v4927, 4294901760
    %4929 = vmatmul.f32.gmra.mxu0 %v4928
    %v4930 = vpop.f32.mrf.mxu0
    %v4931 = vadd.f32 %v4900, %v4930
    %4932 = vdwg.mxu0
    %4933 = vmatpush.msra.mxu0 0.0
    %4934 = vmatpush.msra.mxu0 0.0
    %4935 = vmatpush.msra.mxu0 0.0
    %4936 = vmatpush.msra.mxu0 0.0
    %4937 = vmatpush.msra.mxu0 0.0
    %4938 = vmatpush.msra.mxu0 0.0
    %4939 = vmatpush.msra.mxu0 0.0
    %4940 = vmatpush.msra.mxu0 0.0
    %v4941 = vand.u32 %v4765, 4294901760
    %v4942 = vsub.f32 %v4765, %v4941
    %v4943 = vand.u32 %v4942, 4294901760
    %4944 = vmatpush.msra.mxu0 %v4943
    %v4945 = vand.u32 %v4764, 4294901760
    %v4946 = vsub.f32 %v4764, %v4945
    %v4947 = vand.u32 %v4946, 4294901760
    %4948 = vmatpush.msra.mxu0 %v4947
    %v4949 = vand.u32 %v4763, 4294901760
    %v4950 = vsub.f32 %v4763, %v4949
    %v4951 = vand.u32 %v4950, 4294901760
    %4952 = vmatpush.msra.mxu0 %v4951
    %v4953 = vand.u32 %v4762, 4294901760
    %v4954 = vsub.f32 %v4762, %v4953
    %v4955 = vand.u32 %v4954, 4294901760
    %4956 = vmatpush.msra.mxu0 %v4955
    %v4957 = vand.u32 %v4761, 4294901760
    %v4958 = vsub.f32 %v4761, %v4957
    %v4959 = vand.u32 %v4958, 4294901760
    %4960 = vmatpush.msra.mxu0 %v4959
    %v4961 = vand.u32 %v4760, 4294901760
    %v4962 = vsub.f32 %v4760, %v4961
    %v4963 = vand.u32 %v4962, 4294901760
    %4964 = vmatpush.msra.mxu0 %v4963
    %v4965 = vand.u32 %v4759, 4294901760
    %v4966 = vsub.f32 %v4759, %v4965
    %v4967 = vand.u32 %v4966, 4294901760
    %4968 = vmatpush.msra.mxu0 %v4967
    %v4969 = vand.u32 %v4758, 4294901760
    %v4970 = vsub.f32 %v4758, %v4969
    %v4971 = vand.u32 %v4970, 4294901760
    %4972 = vmatpush.msra.mxu0 %v4971
    %v4973 = vand.u32 %v4768, 4294901760
    %4974 = vmatmul.f32.gmra.mxu0 %v4973
    %v4975 = vpop.f32.mrf.mxu0
    %v4976 = vadd.f32 %v4931, %v4975
    %4977 = vdwg.mxu0
    %4978 = vmatpush.msra.mxu0 0.0
    %4979 = vmatpush.msra.mxu0 0.0
    %4980 = vmatpush.msra.mxu0 0.0
    %4981 = vmatpush.msra.mxu0 0.0
    %4982 = vmatpush.msra.mxu0 0.0
    %4983 = vmatpush.msra.mxu0 0.0
    %4984 = vmatpush.msra.mxu0 0.0
    %4985 = vmatpush.msra.mxu0 0.0
    %v4986 = vand.u32 %v4765, 4294901760
    %4987 = vmatpush.msra.mxu0 %v4986
    %v4988 = vand.u32 %v4764, 4294901760
    %4989 = vmatpush.msra.mxu0 %v4988
    %v4990 = vand.u32 %v4763, 4294901760
    %4991 = vmatpush.msra.mxu0 %v4990
    %v4992 = vand.u32 %v4762, 4294901760
    %4993 = vmatpush.msra.mxu0 %v4992
    %v4994 = vand.u32 %v4761, 4294901760
    %4995 = vmatpush.msra.mxu0 %v4994
    %v4996 = vand.u32 %v4760, 4294901760
    %4997 = vmatpush.msra.mxu0 %v4996
    %v4998 = vand.u32 %v4759, 4294901760
    %4999 = vmatpush.msra.mxu0 %v4998
    %v5000 = vand.u32 %v4758, 4294901760
    %5001 = vmatpush.msra.mxu0 %v5000
    %v5002 = vand.u32 %v4768, 4294901760
    %5003 = vmatmul.f32.gmra.mxu0 %v5002
    %v5004 = vpop.f32.mrf.mxu0
    %v5005 = vadd.f32 %v4976, %v5004
    %5006 = vdwg.mxu0
    %v5008 = vrot.slane %v5005, 1
    %v5009 = vrot.slane %v5005, 2
    %v5010 = vrot.slane %v5005, 3
    %v5011 = vrot.slane %v5005, 4
    %v5012 = vrot.slane %v5005, 5
    %v5013 = vrot.slane %v5005, 6
    %v5014 = vrot.slane %v5005, 7
    %v5023 = vadd.f32 %v4533, %v5005
    %v5024 = vadd.f32 %v4534, %v5008
    %v5025 = vadd.f32 %v4535, %v5009
    %v5026 = vadd.f32 %v4536, %v5010
    %v5027 = vadd.f32 %v4537, %v5011
    %v5028 = vadd.f32 %v4538, %v5012
    %v5029 = vadd.f32 %v4539, %v5013
    %v5030 = vadd.f32 %v4540, %v5014
    %v5039 = vrot.slane %v5024, 7
    %v5040 = vsel %vm67, %v5039, %v5023
    %v5041 = vrot.slane %v5025, 6
    %v5042 = vsel %vm70, %v5041, %v5040
    %v5043 = vrot.slane %v5026, 5
    %v5044 = vsel %vm73, %v5043, %v5042
    %v5045 = vrot.slane %v5027, 4
    %v5046 = vsel %vm76, %v5045, %v5044
    %v5047 = vrot.slane %v5028, 3
    %v5048 = vsel %vm79, %v5047, %v5046
    %v5049 = vrot.slane %v5029, 2
    %v5050 = vsel %vm82, %v5049, %v5048
    %v5051 = vrot.slane %v5030, 1
    %v5052 = vsel %vm85, %v5051, %v5050
    %v5054 = vsel %vm87, %v5052, 0.0
    %5055 = vadd.xlane.f32.xlu0 %v5054
    %v5056 = vpop.xlane.xlu0 %5055
    %v5057 = vmul.f32 %v5056, %v1873
    %v5059 = vrot.slane %v5057, 1
    %v5060 = vrot.slane %v5057, 2
    %v5061 = vrot.slane %v5057, 3
    %v5062 = vrot.slane %v5057, 4
    %v5063 = vrot.slane %v5057, 5
    %v5064 = vrot.slane %v5057, 6
    %v5065 = vrot.slane %v5057, 7
    %v5074 = vsub.f32 %v5023, %v5057
    %v5075 = vsub.f32 %v5024, %v5059
    %v5076 = vsub.f32 %v5025, %v5060
    %v5077 = vsub.f32 %v5026, %v5061
    %v5078 = vsub.f32 %v5027, %v5062
    %v5079 = vsub.f32 %v5028, %v5063
    %v5080 = vsub.f32 %v5029, %v5064
    %v5081 = vsub.f32 %v5030, %v5065
    %v5082 = vmul.f32 %v5074, %v5074
    %v5083 = vmul.f32 %v5075, %v5075
    %v5084 = vmul.f32 %v5076, %v5076
    %v5085 = vmul.f32 %v5077, %v5077
    %v5086 = vmul.f32 %v5078, %v5078
    %v5087 = vmul.f32 %v5079, %v5079
    %v5088 = vmul.f32 %v5080, %v5080
    %v5089 = vmul.f32 %v5081, %v5081
    %v5098 = vrot.slane %v5083, 7
    %v5099 = vsel %vm67, %v5098, %v5082
    %v5100 = vrot.slane %v5084, 6
    %v5101 = vsel %vm70, %v5100, %v5099
    %v5102 = vrot.slane %v5085, 5
    %v5103 = vsel %vm73, %v5102, %v5101
    %v5104 = vrot.slane %v5086, 4
    %v5105 = vsel %vm76, %v5104, %v5103
    %v5106 = vrot.slane %v5087, 3
    %v5107 = vsel %vm79, %v5106, %v5105
    %v5108 = vrot.slane %v5088, 2
    %v5109 = vsel %vm82, %v5108, %v5107
    %v5110 = vrot.slane %v5089, 1
    %v5111 = vsel %vm85, %v5110, %v5109
    %v5113 = vsel %vm87, %v5111, 0.0
    %5114 = vadd.xlane.f32.xlu0 %v5113
    %v5115 = vpop.xlane.xlu0 %5114
    %v5116 = vmul.f32 %v5115, %v1873
    %v5117 = vadd.f32 %v5116, 1e-05
    %v5118 = vrsqrt.pop %v5117
    %v5119 = vmul.f32 %v5118, %v5117
    %v5120 = vmul.f32 %v5119, %v5118
    %v5121 = vmul.f32 0.5, %v5120
    %v5122 = vsub.f32 1.5, %v5121
    %v5123 = vmul.f32 %v5118, %v5122
    %vm5124 = vweird.f32 %v5117
    %vm5125 = vweird.f32 %v5118
    %vm5126 = vmor %vm5124, %vm5125
    %v5127 = vsel %vm5126, %v5118, %v5123
    %v5129 = vrot.slane %v5127, 1
    %v5130 = vrot.slane %v5127, 2
    %v5131 = vrot.slane %v5127, 3
    %v5132 = vrot.slane %v5127, 4
    %v5133 = vrot.slane %v5127, 5
    %v5134 = vrot.slane %v5127, 6
    %v5135 = vrot.slane %v5127, 7
    %v5144 = vmul.f32 %v5074, %v5127
    %v5145 = vmul.f32 %v5075, %v5129
    %v5146 = vmul.f32 %v5076, %v5130
    %v5147 = vmul.f32 %v5077, %v5131
    %v5148 = vmul.f32 %v5078, %v5132
    %v5149 = vmul.f32 %v5079, %v5133
    %v5150 = vmul.f32 %v5080, %v5134
    %v5151 = vmul.f32 %v5081, %v5135
    %v5152 = vperm.slane %v2627, 0
    %v5153 = vmul.f32 %v5144, %v5152
    %v5154 = vmul.f32 %v5145, %v5152
    %v5155 = vmul.f32 %v5146, %v5152
    %v5156 = vmul.f32 %v5147, %v5152
    %v5157 = vmul.f32 %v5148, %v5152
    %v5158 = vmul.f32 %v5149, %v5152
    %v5159 = vmul.f32 %v5150, %v5152
    %v5160 = vmul.f32 %v5151, %v5152
    %v5161 = vperm.slane %v2628, 0
    %v5162 = vadd.f32 %v5153, %v5161
    %v5163 = vadd.f32 %v5154, %v5161
    %v5164 = vadd.f32 %v5155, %v5161
    %v5165 = vadd.f32 %v5156, %v5161
    %v5166 = vadd.f32 %v5157, %v5161
    %v5167 = vadd.f32 %v5158, %v5161
    %v5168 = vadd.f32 %v5159, %v5161
    %v5169 = vadd.f32 %v5160, %v5161
    %s5170 = scalar_lea.vmem %s1, 64
    %v5171 = vld [vmem:[%s5170] sm:$0xff]
    %v5172 = vld [vmem:[%s5170 + $0x8] sm:$0xff]
    %v5173 = vld [vmem:[%s5170 + $0x10] sm:$0xff]
    %v5174 = vld [vmem:[%s5170 + $0x18] sm:$0xff]
    %s5175 = scalar_lea.vmem %s4, 16
    %v5176 = vld [vmem:[%s5175] sm:$0x1]
    %v5177 = vperm.slane %v5176, 0
    %v5186 = vrot.slane %v5163, 7
    %v5187 = vsel %vm67, %v5186, %v5162
    %v5188 = vrot.slane %v5164, 6
    %v5189 = vsel %vm70, %v5188, %v5187
    %v5190 = vrot.slane %v5165, 5
    %v5191 = vsel %vm73, %v5190, %v5189
    %v5192 = vrot.slane %v5166, 4
    %v5193 = vsel %vm76, %v5192, %v5191
    %v5194 = vrot.slane %v5167, 3
    %v5195 = vsel %vm79, %v5194, %v5193
    %v5196 = vrot.slane %v5168, 2
    %v5197 = vsel %vm82, %v5196, %v5195
    %v5198 = vrot.slane %v5169, 1
    %v5199 = vsel %vm85, %v5198, %v5197
    %v5200 = vsel %vm87, %v5199, 0
    %5202 = vmatpush.msra.mxu0 0.0
    %5203 = vmatpush.msra.mxu0 0.0
    %5204 = vmatpush.msra.mxu0 0.0
    %5205 = vmatpush.msra.mxu0 0.0
    %5206 = vmatpush.msra.mxu0 0.0
    %5207 = vmatpush.msra.mxu0 0.0
    %5208 = vmatpush.msra.mxu0 0.0
    %5209 = vmatpush.msra.mxu0 0.0
    %5210 = vmatpush.msra.mxu0 0.0
    %5211 = vmatpush.msra.mxu0 0.0
    %5212 = vmatpush.msra.mxu0 0.0
    %5213 = vmatpush.msra.mxu0 0.0
    %v5214 = vand.u32 %v5174, 4294901760
    %5215 = vmatpush.msra.mxu0 %v5214
    %v5216 = vand.u32 %v5173, 4294901760
    %5217 = vmatpush.msra.mxu0 %v5216
    %v5218 = vand.u32 %v5172, 4294901760
    %5219 = vmatpush.msra.mxu0 %v5218
    %v5220 = vand.u32 %v5171, 4294901760
    %5221 = vmatpush.msra.mxu0 %v5220
    %v5222 = vand.u32 %v5200, 4294901760
    %v5223 = vsub.f32 %v5200, %v5222
    %v5224 = vand.u32 %v5223, 4294901760
    %v5225 = vsub.f32 %v5223, %v5224
    %v5226 = vand.u32 %v5225, 4294901760
    %5227 = vmatmul.f32.gmra.mxu0 %v5226
    %v5228 = vpop.f32.mrf.mxu0
    %v5229 = vadd.f32 %v5177, %v5228
    %5230 = vdwg.mxu0
    %5231 = vmatpush.msra.mxu0 0.0
    %5232 = vmatpush.msra.mxu0 0.0
    %5233 = vmatpush.msra.mxu0 0.0
    %5234 = vmatpush.msra.mxu0 0.0
    %5235 = vmatpush.msra.mxu0 0.0
    %5236 = vmatpush.msra.mxu0 0.0
    %5237 = vmatpush.msra.mxu0 0.0
    %5238 = vmatpush.msra.mxu0 0.0
    %5239 = vmatpush.msra.mxu0 0.0
    %5240 = vmatpush.msra.mxu0 0.0
    %5241 = vmatpush.msra.mxu0 0.0
    %5242 = vmatpush.msra.mxu0 0.0
    %v5243 = vand.u32 %v5174, 4294901760
    %v5244 = vsub.f32 %v5174, %v5243
    %v5245 = vand.u32 %v5244, 4294901760
    %v5246 = vsub.f32 %v5244, %v5245
    %v5247 = vand.u32 %v5246, 4294901760
    %5248 = vmatpush.msra.mxu0 %v5247
    %v5249 = vand.u32 %v5173, 4294901760
    %v5250 = vsub.f32 %v5173, %v5249
    %v5251 = vand.u32 %v5250, 4294901760
    %v5252 = vsub.f32 %v5250, %v5251
    %v5253 = vand.u32 %v5252, 4294901760
    %5254 = vmatpush.msra.mxu0 %v5253
    %v5255 = vand.u32 %v5172, 4294901760
    %v5256 = vsub.f32 %v5172, %v5255
    %v5257 = vand.u32 %v5256, 4294901760
    %v5258 = vsub.f32 %v5256, %v5257
    %v5259 = vand.u32 %v5258, 4294901760
    %5260 = vmatpush.msra.mxu0 %v5259
    %v5261 = vand.u32 %v5171, 4294901760
    %v5262 = vsub.f32 %v5171, %v5261
    %v5263 = vand.u32 %v5262, 4294901760
    %v5264 = vsub.f32 %v5262, %v5263
    %v5265 = vand.u32 %v5264, 4294901760
    %5266 = vmatpush.msra.mxu0 %v5265
    %v5267 = vand.u32 %v5200, 4294901760
    %5268 = vmatmul.f32.gmra.mxu0 %v5267
    %v5269 = vpop.f32.mrf.mxu0
    %v5270 = vadd.f32 %v5229, %v5269
    %5271 = vdwg.mxu0
    %5272 = vmatpush.msra.mxu0 0.0
    %5273 = vmatpush.msra.mxu0 0.0
    %5274 = vmatpush.msra.mxu0 0.0
    %5275 = vmatpush.msra.mxu0 0.0
    %5276 = vmatpush.msra.mxu0 0.0
    %5277 = vmatpush.msra.mxu0 0.0
    %5278 = vmatpush.msra.mxu0 0.0
    %5279 = vmatpush.msra.mxu0 0.0
    %5280 = vmatpush.msra.mxu0 0.0
    %5281 = vmatpush.msra.mxu0 0.0
    %5282 = vmatpush.msra.mxu0 0.0
    %5283 = vmatpush.msra.mxu0 0.0
    %v5284 = vand.u32 %v5174, 4294901760
    %v5285 = vsub.f32 %v5174, %v5284
    %5286 = vmatpush.msra.mxu0 %v5285
    %v5287 = vand.u32 %v5173, 4294901760
    %v5288 = vsub.f32 %v5173, %v5287
    %5289 = vmatpush.msra.mxu0 %v5288
    %v5290 = vand.u32 %v5172, 4294901760
    %v5291 = vsub.f32 %v5172, %v5290
    %5292 = vmatpush.msra.mxu0 %v5291
    %v5293 = vand.u32 %v5171, 4294901760
    %v5294 = vsub.f32 %v5171, %v5293
    %5295 = vmatpush.msra.mxu0 %v5294
    %v5296 = vand.u32 %v5200, 4294901760
    %v5297 = vsub.f32 %v5200, %v5296
    %5298 = vmatmul.f32.gmra.mxu0 %v5297
    %v5299 = vpop.f32.mrf.mxu0
    %v5300 = vadd.f32 %v5270, %v5299
    %5301 = vdwg.mxu0
    %5302 = vmatpush.msra.mxu0 0.0
    %5303 = vmatpush.msra.mxu0 0.0
    %5304 = vmatpush.msra.mxu0 0.0
    %5305 = vmatpush.msra.mxu0 0.0
    %5306 = vmatpush.msra.mxu0 0.0
    %5307 = vmatpush.msra.mxu0 0.0
    %5308 = vmatpush.msra.mxu0 0.0
    %5309 = vmatpush.msra.mxu0 0.0
    %5310 = vmatpush.msra.mxu0 0.0
    %5311 = vmatpush.msra.mxu0 0.0
    %5312 = vmatpush.msra.mxu0 0.0
    %5313 = vmatpush.msra.mxu0 0.0
    %v5314 = vand.u32 %v5174, 4294901760
    %5315 = vmatpush.msra.mxu0 %v5314
    %v5316 = vand.u32 %v5173, 4294901760
    %5317 = vmatpush.msra.mxu0 %v5316
    %v5318 = vand.u32 %v5172, 4294901760
    %5319 = vmatpush.msra.mxu0 %v5318
    %v5320 = vand.u32 %v5171, 4294901760
    %5321 = vmatpush.msra.mxu0 %v5320
    %v5322 = vand.u32 %v5200, 4294901760
    %v5323 = vsub.f32 %v5200, %v5322
    %v5324 = vand.u32 %v5323, 4294901760
    %5325 = vmatmul.f32.gmra.mxu0 %v5324
    %v5326 = vpop.f32.mrf.mxu0
    %v5327 = vadd.f32 %v5300, %v5326
    %5328 = vdwg.mxu0
    %5329 = vmatpush.msra.mxu0 0.0
    %5330 = vmatpush.msra.mxu0 0.0
    %5331 = vmatpush.msra.mxu0 0.0
    %5332 = vmatpush.msra.mxu0 0.0
    %5333 = vmatpush.msra.mxu0 0.0
    %5334 = vmatpush.msra.mxu0 0.0
    %5335 = vmatpush.msra.mxu0 0.0
    %5336 = vmatpush.msra.mxu0 0.0
    %5337 = vmatpush.msra.mxu0 0.0
    %5338 = vmatpush.msra.mxu0 0.0
    %5339 = vmatpush.msra.mxu0 0.0
    %5340 = vmatpush.msra.mxu0 0.0
    %v5341 = vand.u32 %v5174, 4294901760
    %v5342 = vsub.f32 %v5174, %v5341
    %v5343 = vand.u32 %v5342, 4294901760
    %5344 = vmatpush.msra.mxu0 %v5343
    %v5345 = vand.u32 %v5173, 4294901760
    %v5346 = vsub.f32 %v5173, %v5345
    %v5347 = vand.u32 %v5346, 4294901760
    %5348 = vmatpush.msra.mxu0 %v5347
    %v5349 = vand.u32 %v5172, 4294901760
    %v5350 = vsub.f32 %v5172, %v5349
    %v5351 = vand.u32 %v5350, 4294901760
    %5352 = vmatpush.msra.mxu0 %v5351
    %v5353 = vand.u32 %v5171, 4294901760
    %v5354 = vsub.f32 %v5171, %v5353
    %v5355 = vand.u32 %v5354, 4294901760
    %5356 = vmatpush.msra.mxu0 %v5355
    %v5357 = vand.u32 %v5200, 4294901760
    %5358 = vmatmul.f32.gmra.mxu0 %v5357
    %v5359 = vpop.f32.mrf.mxu0
    %v5360 = vadd.f32 %v5327, %v5359
    %5361 = vdwg.mxu0
    %5362 = vmatpush.msra.mxu0 0.0
    %5363 = vmatpush.msra.mxu0 0.0
    %5364 = vmatpush.msra.mxu0 0.0
    %5365 = vmatpush.msra.mxu0 0.0
    %5366 = vmatpush.msra.mxu0 0.0
    %5367 = vmatpush.msra.mxu0 0.0
    %5368 = vmatpush.msra.mxu0 0.0
    %5369 = vmatpush.msra.mxu0 0.0
    %5370 = vmatpush.msra.mxu0 0.0
    %5371 = vmatpush.msra.mxu0 0.0
    %5372 = vmatpush.msra.mxu0 0.0
    %5373 = vmatpush.msra.mxu0 0.0
    %v5374 = vand.u32 %v5174, 4294901760
    %5375 = vmatpush.msra.mxu0 %v5374
    %v5376 = vand.u32 %v5173, 4294901760
    %5377 = vmatpush.msra.mxu0 %v5376
    %v5378 = vand.u32 %v5172, 4294901760
    %5379 = vmatpush.msra.mxu0 %v5378
    %v5380 = vand.u32 %v5171, 4294901760
    %5381 = vmatpush.msra.mxu0 %v5380
    %v5382 = vand.u32 %v5200, 4294901760
    %5383 = vmatmul.f32.gmra.mxu0 %v5382
    %v5384 = vpop.f32.mrf.mxu0
    %v5385 = vadd.f32 %v5360, %v5384
    %5386 = vdwg.mxu0
    %5387 = vst [vmem:[#allocation5] sm:$0xff] %v5385
    // Predicated region
    $region26: #{tpu_custom_call.1} parent=1 // pred_check
      _
    $region27: #{tpu_custom_call.1} parent=1 // pred_check_branch
      %5389 = sbr.rel (0) target = $region29
    $region28: #{tpu_custom_call.1} parent=1 // pred_region
      %5391 = vsyncadd [#allocation4], 0
      %s5393 = sshll.u32 [#allocation5], 4
      %s5394 = int_to_ptr.vmem [resolvable:$true] %s5393
      %s5395 = sshll.u32 %s5, 4
      %s5396 = int_to_ptr.hbm [resolvable:$true] %s5395
      %5398 = dma.vmem_to_hbm [thread:$0]  %s5394, 128, %s5396, [#allocation4]
    $region29: #{tpu_custom_call.1} parent=1 // pred_fallthru
      _
    // Predicated region
    $region30: #{tpu_custom_call.1} parent=1 // pred_check
      _
    $region31: #{tpu_custom_call.1} parent=1 // pred_check_branch
      %5400 = sbr.rel (0) target = $region33
    $region32: #{tpu_custom_call.1} parent=1 // pred_region
      %5402 = dma.done [#allocation4], 128
    $region33: #{tpu_custom_call.1} parent=1 // pred_fallthru
      _
    %5403 = vsyncpa [#allocation3], 1
    %5404 = vsyncpa [#allocation4], 1

</llo_original>
